<compile_context>
chip_gen: v6e
topology: v6e:2x2x1
jax: 0.10.0
libtpu: 0.0.40
codegen_flags: <defaults>
</compile_context>

<pallas_src>
import functools

import jax
import jax.numpy as jnp
from jax.experimental import pallas as pl
from jax.experimental.pallas import tpu as pltpu


def _make_fused_cnn_kernel(GP, GW, MARGIN, C1):
    """Fused conv1(5x5)+ReLU -> conv2(3x3)+ReLU -> conv3(1x1)+ReLU kernel.

    GP:     grid positions (GH*GW) of conv3's output grid (== conv2's zero-padded
            input grid, flattened row-major).
    GW:     grid width (so a (dh, dw) spatial tap is a row shift of dh*GW + dw).
    MARGIN: extra zero sublanes on each side of the activation scratch so every
            3x3 tap window is a plain static row-shifted slice (no bounds logic).
    C1:     conv1 output channels.
    """

    def kernel(x1_ref, mask_ref, w1_ref, b1_ref, w2_ref, b2_ref, w3_ref, b3_ref,
               o_ref, act_ref, x2_ref):
        f32 = jnp.float32
        mask = mask_ref[...]                                # (GP, 1), 1.0 = interior

        # ---- layer 1: 5x5 conv as ONE folded-K GEMM (K = 25*Cin) + bias + ReLU.
        a1 = jnp.dot(x1_ref[...], w1_ref[...], preferred_element_type=f32)
        a1 = jnp.maximum(a1 + b1_ref[...], 0.0)
        a1 = a1 * mask                          # border ring -> 0 (= conv2 padding)

        # Park the zero-padded conv1 output grid in VMEM; keep margins zeroed.
        zeros_m = jnp.zeros((MARGIN, C1), act_ref.dtype)
        act_ref[pl.ds(0, MARGIN), :] = zeros_m
        act_ref[pl.ds(MARGIN + GP, MARGIN), :] = zeros_m
        act_ref[pl.ds(MARGIN, GP), :] = a1.astype(act_ref.dtype)

        # ---- layer 2: 3x3 conv with all taps folded into K = 9*C1 -> ONE GEMM.
        # On the flattened padded grid, tap (dh, dw) is just a row-shifted window.
        t = 0
        for dh in (-1, 0, 1):
            for dw in (-1, 0, 1):
                shift = dh * GW + dw
                x2_ref[:, pl.ds(t * C1, C1)] = (
                    act_ref[pl.ds(MARGIN + shift, GP), :].astype(x2_ref.dtype))
                t += 1
        a2 = jnp.dot(x2_ref[...], w2_ref[...], preferred_element_type=f32)
        a2 = jnp.maximum(a2 + b2_ref[...], 0.0)

        # ---- layer 3: 1x1 conv fused as epilogue; its padding=1 border = relu(b3).
        y = jnp.dot(a2.astype(w3_ref.dtype), w3_ref[...], preferred_element_type=f32)
        y = jnp.maximum(y + b3_ref[...], 0.0)
        border = jnp.maximum(b3_ref[...], 0.0)              # (1, C3)
        o_ref[...] = jnp.where(mask > 0.0, y, border).astype(o_ref.dtype)

    return kernel


def cnn_forward(params, x_nchw, compute_dtype=jnp.float32):
    """Forward pass matching the PyTorch CNN module (NCHW in, NCHW out)."""
    (w1, b1), (w2, b2), (w3, b3) = params
    N, Cin, H, W = x_nchw.shape
    C1, _, K1, _ = w1.shape            # 128, kernel 5
    C2, _, K2, _ = w2.shape            # 64,  kernel 3
    C3 = w3.shape[0]                   # 3,   kernel 1

    # conv3(k=1, p=1) output grid == (H, W); it is also conv2's zero-padded input
    # grid (conv1 out is (H-2, W-2)).
    GH, GW = H, W
    GP = GH * GW
    MARGIN = ((GW + 1 + 7) // 8) * 8   # >= GW+1 = max |row shift| of a 3x3 tap
    KF1 = K1 * K1 * Cin                # 75
    KF2 = K2 * K2 * C1                 # 1152

    # ---- entry: single NCHW -> NHWC transpose, then pad by 2 so the folded
    # im2col is aligned with the (GH, GW) grid (border rows are masked in-kernel).
    x = jnp.transpose(x_nchw, (0, 2, 3, 1)).astype(jnp.float32)
    xp = jnp.pad(x, ((0, 0), (2, 2), (2, 2), (0, 0)))
    taps = [xp[:, kh:kh + GH, kw:kw + GW, :] for kh in range(K1) for kw in range(K1)]
    x1 = jnp.concatenate(taps, axis=-1).reshape(N, GP, KF1)      # (N, GP, 25*Cin)

    # Interior mask: 1 where the grid position is a real conv1/conv2 output.
    gh = jnp.arange(GH)[:, None]
    gw = jnp.arange(GW)[None, :]
    interior = (gh >= 1) & (gh <= GH - 2) & (gw >= 1) & (gw <= GW - 2)
    mask = interior.astype(jnp.float32).reshape(GP, 1)

    # ---- fold weights so every layer is one GEMM.
    w1f = jnp.transpose(w1, (2, 3, 1, 0)).reshape(KF1, C1)        # (75, 128)
    w2f = jnp.transpose(w2, (2, 3, 1, 0)).reshape(KF2, C2)        # (1152, 64)
    w3m = jnp.transpose(w3.reshape(C3, C2))                       # (64, 3)

    cd = compute_dtype
    x1, w1f, w2f, w3m = (a.astype(cd) for a in (x1, w1f, w2f, w3m))
    b1r = b1.reshape(1, C1).astype(jnp.float32)
    b2r = b2.reshape(1, C2).astype(jnp.float32)
    b3r = b3.reshape(1, C3).astype(jnp.float32)

    kernel = _make_fused_cnn_kernel(GP, GW, MARGIN, C1)

    out = pl.pallas_call(
        kernel,
        out_shape=jax.ShapeDtypeStruct((N, GP, C3), jnp.float32),
        grid_spec=pltpu.PrefetchScalarGridSpec(
            num_scalar_prefetch=0,
            grid=(N,),
            in_specs=[
                pl.BlockSpec((None, GP, KF1), lambda n: (n, 0, 0)),   # conv1 patches
                pl.BlockSpec((GP, 1), lambda n: (0, 0)),              # interior mask
                pl.BlockSpec((KF1, C1), lambda n: (0, 0)),            # w1 folded
                pl.BlockSpec((1, C1), lambda n: (0, 0)),              # b1
                pl.BlockSpec((KF2, C2), lambda n: (0, 0)),            # w2 folded
                pl.BlockSpec((1, C2), lambda n: (0, 0)),              # b2
                pl.BlockSpec((C2, C3), lambda n: (0, 0)),             # w3
                pl.BlockSpec((1, C3), lambda n: (0, 0)),              # b3
            ],
            out_specs=pl.BlockSpec((None, GP, C3), lambda n: (n, 0, 0)),
            scratch_shapes=[
                pltpu.VMEM((GP + 2 * MARGIN, C1), jnp.float32),  # padded conv1 output grid
                pltpu.VMEM((GP, KF2), cd),                       # folded conv2 operand
            ],
        ),
        compiler_params=pltpu.CompilerParams(
            dimension_semantics=("parallel",),
            vmem_limit_bytes=32 * 1024 * 1024,
        ),
    )(x1, mask, w1f, b1r, w2f, b2r, w3m, b3r)

    # ---- exit: reshape + single NHWC -> NCHW transpose.
    out = out.reshape(N, GH, GW, C3)
    return jnp.transpose(out, (0, 3, 1, 2))


# ------------------------- params / reference / test -------------------------

def init_conv_params(key, cin, cout, k):
    """Deterministic PyTorch-style (uniform +-1/sqrt(fan_in)) init."""
    kw_key, kb_key = jax.random.split(key)
    bound = float(1.0 / (cin * k * k) ** 0.5)
    w = jax.random.uniform(kw_key, (cout, cin, k, k), jnp.float32, -bound, bound)
    b = jax.random.uniform(kb_key, (cout,), jnp.float32, -bound, bound)
    return w, b


def init_cnn_params(key):
    k1, k2, k3 = jax.random.split(key, 3)
    return (init_conv_params(k1, 3, 128, 5),
            init_conv_params(k2, 128, 64, 3),
            init_conv_params(k3, 64, 3, 1))


def _conv_relu_ref(x, w, b, padding):
    y = jax.lax.conv_general_dilated(
        x, w, window_strides=(1, 1),
        padding=[(padding, padding), (padding, padding)],
        dimension_numbers=('NCHW', 'OIHW', 'NCHW'))
    return jnp.maximum(y + b[None, :, None, None], 0.0)


def cnn_forward_ref(params, x):
    (w1, b1), (w2, b2), (w3, b3) = params
    x = _conv_relu_ref(x, w1, b1, 1)
    x = _conv_relu_ref(x, w2, b2, 1)
    x = _conv_relu_ref(x, w3, b3, 1)
    return x


if __name__ == "__main__":
    key = jax.random.PRNGKey(0)
    pkey, xkey = jax.random.split(key)
    params = init_cnn_params(pkey)

    # batch=2, C=3, 16x16 spatial (consistent with Conv2d(3, ...)).
    x = jax.random.normal(xkey, (2, 3, 16, 16), dtype=jnp.float32)

    fwd_f32 = jax.jit(functools.partial(cnn_forward, compute_dtype=jnp.float32))
    out = jax.block_until_ready(fwd_f32(params, x))
    assert out.shape == (2, 3, 16, 16), out.shape

    ref = jax.block_until_ready(cnn_forward_ref(params, x))
    assert jnp.allclose(out, ref, atol=1e-4, rtol=1e-4), \
        float(jnp.max(jnp.abs(out - ref)))

    # bf16-operand / f32-accumulate MXU path (v6e/v7x optimization), looser tol.
    fwd_bf16 = jax.jit(functools.partial(cnn_forward, compute_dtype=jnp.bfloat16))
    out_bf16 = jax.block_until_ready(fwd_bf16(params, x))
    assert jnp.allclose(out_bf16, ref, atol=5e-2, rtol=5e-2), \
        float(jnp.max(jnp.abs(out_bf16 - ref)))

    print("KERNEL_OK")
</pallas_src>

<mosaic_0001>
module attributes {stable_mosaic.version = 11 : i64} {
  func.func @kernel(%arg0: i32, %arg1: memref<1x256x75xf32, #tpu.memory_space<vmem>>, %arg2: memref<256x1xf32, #tpu.memory_space<vmem>>, %arg3: memref<75x128xf32, #tpu.memory_space<vmem>>, %arg4: memref<1x128xf32, #tpu.memory_space<vmem>>, %arg5: memref<1152x64xf32, #tpu.memory_space<vmem>>, %arg6: memref<1x64xf32, #tpu.memory_space<vmem>>, %arg7: memref<64x3xf32, #tpu.memory_space<vmem>>, %arg8: memref<1x3xf32, #tpu.memory_space<vmem>>, %arg9: memref<1x256x3xf32, #tpu.memory_space<vmem>>, %arg10: memref<304x128xf32, #tpu.memory_space<vmem>>, %arg11: memref<256x1152xf32, #tpu.memory_space<vmem>>) attributes {dimension_semantics = [#tpu.dimension_semantics<parallel>], iteration_bounds = array<i64: 2>, scalar_prefetch = 0 : i64, scratch_operands = 2 : i64, tpu.core_type = #tpu.core_type<tc>, window_params = [{transform_indices = @transform_0, window_bounds = array<i64: 1, 256, 75>}, {pipeline_mode = #tpu.pipeline_mode<synchronous>, transform_indices = @transform_1, window_bounds = array<i64: 256, 1>}, {pipeline_mode = #tpu.pipeline_mode<synchronous>, transform_indices = @transform_2, window_bounds = array<i64: 75, 128>}, {pipeline_mode = #tpu.pipeline_mode<synchronous>, transform_indices = @transform_3, window_bounds = array<i64: 1, 128>}, {pipeline_mode = #tpu.pipeline_mode<synchronous>, transform_indices = @transform_4, window_bounds = array<i64: 1152, 64>}, {pipeline_mode = #tpu.pipeline_mode<synchronous>, transform_indices = @transform_5, window_bounds = array<i64: 1, 64>}, {pipeline_mode = #tpu.pipeline_mode<synchronous>, transform_indices = @transform_6, window_bounds = array<i64: 64, 3>}, {pipeline_mode = #tpu.pipeline_mode<synchronous>, transform_indices = @transform_7, window_bounds = array<i64: 1, 3>}, {transform_indices = @transform_8, window_bounds = array<i64: 1, 256, 3>}]} {
    %c0 = arith.constant 0 : index
    %c0_0 = arith.constant 0 : index
    %0 = vector.load %arg2[%c0, %c0_0] : memref<256x1xf32, #tpu.memory_space<vmem>>, vector<256x1xf32>
    %c0_1 = arith.constant 0 : index
    %c0_2 = arith.constant 0 : index
    %c0_3 = arith.constant 0 : index
    %1 = vector.load %arg1[%c0_1, %c0_2, %c0_3] : memref<1x256x75xf32, #tpu.memory_space<vmem>>, vector<1x256x75xf32>
    %2 = vector.shape_cast %1 : vector<1x256x75xf32> to vector<256x75xf32>
    %c0_4 = arith.constant 0 : index
    %c0_5 = arith.constant 0 : index
    %3 = vector.load %arg3[%c0_4, %c0_5] : memref<75x128xf32, #tpu.memory_space<vmem>>, vector<75x128xf32>
    %cst = arith.constant dense<0.000000e+00> : vector<256x128xf32>
    %4 = tpu.matmul %2, %3, %cst {dimension_numbers = #tpu.dot_dimension_numbers<[1], [0], [0], [1], [0, 0, 1, 1], [], []>} : vector<256x75xf32>, vector<75x128xf32>, vector<256x128xf32> -> vector<256x128xf32>
    %c0_6 = arith.constant 0 : index
    %c0_7 = arith.constant 0 : index
    %5 = vector.load %arg4[%c0_6, %c0_7] : memref<1x128xf32, #tpu.memory_space<vmem>>, vector<1x128xf32>
    %6 = vector.broadcast %5 : vector<1x128xf32> to vector<256x128xf32>
    %7 = arith.addf %4, %6 : vector<256x128xf32>
    %cst_8 = arith.constant 0.000000e+00 : f32
    %8 = vector.broadcast %cst_8 : f32 to vector<256x128xf32>
    %9 = arith.maximumf %7, %8 : vector<256x128xf32>
    %10 = vector.broadcast %0 : vector<256x1xf32> to vector<256x128xf32>
    %11 = arith.mulf %9, %10 : vector<256x128xf32>
    %cst_9 = arith.constant 0.000000e+00 : f32
    %12 = vector.broadcast %cst_9 : f32 to vector<24x128xf32>
    %c0_10 = arith.constant 0 : index
    %c0_11 = arith.constant 0 : index
    %13 = vector.load %arg10[%c0_10, %c0_11] : memref<304x128xf32, #tpu.memory_space<vmem>>, vector<24x128xf32>
    tpu.vector_store %arg10[%c0_10, %c0_11], %12 {strides = array<i32>} : memref<304x128xf32, #tpu.memory_space<vmem>>, vector<24x128xf32>,
    %c280 = arith.constant 280 : index
    %c0_12 = arith.constant 0 : index
    %14 = vector.load %arg10[%c280, %c0_12] : memref<304x128xf32, #tpu.memory_space<vmem>>, vector<24x128xf32>
    tpu.vector_store %arg10[%c280, %c0_12], %12 {strides = array<i32>} : memref<304x128xf32, #tpu.memory_space<vmem>>, vector<24x128xf32>,
    %c24 = arith.constant 24 : index
    %c0_13 = arith.constant 0 : index
    %15 = vector.load %arg10[%c24, %c0_13] : memref<304x128xf32, #tpu.memory_space<vmem>>, vector<256x128xf32>
    tpu.vector_store %arg10[%c24, %c0_13], %11 {strides = array<i32>} : memref<304x128xf32, #tpu.memory_space<vmem>>, vector<256x128xf32>,
    %c7 = arith.constant 7 : index
    %c0_14 = arith.constant 0 : index
    %16 = vector.load %arg10[%c7, %c0_14] : memref<304x128xf32, #tpu.memory_space<vmem>>, vector<256x128xf32>
    %c0_15 = arith.constant 0 : index
    %c0_16 = arith.constant 0 : index
    %17 = vector.load %arg11[%c0_15, %c0_16] : memref<256x1152xf32, #tpu.memory_space<vmem>>, vector<256x128xf32>
    tpu.vector_store %arg11[%c0_15, %c0_16], %16 {strides = array<i32>} : memref<256x1152xf32, #tpu.memory_space<vmem>>, vector<256x128xf32>,
    %c8 = arith.constant 8 : index
    %c0_17 = arith.constant 0 : index
    %18 = vector.load %arg10[%c8, %c0_17] : memref<304x128xf32, #tpu.memory_space<vmem>>, vector<256x128xf32>
    %c0_18 = arith.constant 0 : index
    %c128 = arith.constant 128 : index
    %19 = vector.load %arg11[%c0_18, %c128] : memref<256x1152xf32, #tpu.memory_space<vmem>>, vector<256x128xf32>
    tpu.vector_store %arg11[%c0_18, %c128], %18 {strides = array<i32>} : memref<256x1152xf32, #tpu.memory_space<vmem>>, vector<256x128xf32>,
    %c9 = arith.constant 9 : index
    %c0_19 = arith.constant 0 : index
    %20 = vector.load %arg10[%c9, %c0_19] : memref<304x128xf32, #tpu.memory_space<vmem>>, vector<256x128xf32>
    %c0_20 = arith.constant 0 : index
    %c256 = arith.constant 256 : index
    %21 = vector.load %arg11[%c0_20, %c256] : memref<256x1152xf32, #tpu.memory_space<vmem>>, vector<256x128xf32>
    tpu.vector_store %arg11[%c0_20, %c256], %20 {strides = array<i32>} : memref<256x1152xf32, #tpu.memory_space<vmem>>, vector<256x128xf32>,
    %c23 = arith.constant 23 : index
    %c0_21 = arith.constant 0 : index
    %22 = vector.load %arg10[%c23, %c0_21] : memref<304x128xf32, #tpu.memory_space<vmem>>, vector<256x128xf32>
    %c0_22 = arith.constant 0 : index
    %c384 = arith.constant 384 : index
    %23 = vector.load %arg11[%c0_22, %c384] : memref<256x1152xf32, #tpu.memory_space<vmem>>, vector<256x128xf32>
    tpu.vector_store %arg11[%c0_22, %c384], %22 {strides = array<i32>} : memref<256x1152xf32, #tpu.memory_space<vmem>>, vector<256x128xf32>,
    %c24_23 = arith.constant 24 : index
    %c0_24 = arith.constant 0 : index
    %24 = vector.load %arg10[%c24_23, %c0_24] : memref<304x128xf32, #tpu.memory_space<vmem>>, vector<256x128xf32>
    %c0_25 = arith.constant 0 : index
    %c512 = arith.constant 512 : index
    %25 = vector.load %arg11[%c0_25, %c512] : memref<256x1152xf32, #tpu.memory_space<vmem>>, vector<256x128xf32>
    tpu.vector_store %arg11[%c0_25, %c512], %24 {strides = array<i32>} : memref<256x1152xf32, #tpu.memory_space<vmem>>, vector<256x128xf32>,
    %c25 = arith.constant 25 : index
    %c0_26 = arith.constant 0 : index
    %26 = vector.load %arg10[%c25, %c0_26] : memref<304x128xf32, #tpu.memory_space<vmem>>, vector<256x128xf32>
    %c0_27 = arith.constant 0 : index
    %c640 = arith.constant 640 : index
    %27 = vector.load %arg11[%c0_27, %c640] : memref<256x1152xf32, #tpu.memory_space<vmem>>, vector<256x128xf32>
    tpu.vector_store %arg11[%c0_27, %c640], %26 {strides = array<i32>} : memref<256x1152xf32, #tpu.memory_space<vmem>>, vector<256x128xf32>,
    %c39 = arith.constant 39 : index
    %c0_28 = arith.constant 0 : index
    %28 = vector.load %arg10[%c39, %c0_28] : memref<304x128xf32, #tpu.memory_space<vmem>>, vector<256x128xf32>
    %c0_29 = arith.constant 0 : index
    %c768 = arith.constant 768 : index
    %29 = vector.load %arg11[%c0_29, %c768] : memref<256x1152xf32, #tpu.memory_space<vmem>>, vector<256x128xf32>
    tpu.vector_store %arg11[%c0_29, %c768], %28 {strides = array<i32>} : memref<256x1152xf32, #tpu.memory_space<vmem>>, vector<256x128xf32>,
    %c40 = arith.constant 40 : index
    %c0_30 = arith.constant 0 : index
    %30 = vector.load %arg10[%c40, %c0_30] : memref<304x128xf32, #tpu.memory_space<vmem>>, vector<256x128xf32>
    %c0_31 = arith.constant 0 : index
    %c896 = arith.constant 896 : index
    %31 = vector.load %arg11[%c0_31, %c896] : memref<256x1152xf32, #tpu.memory_space<vmem>>, vector<256x128xf32>
    tpu.vector_store %arg11[%c0_31, %c896], %30 {strides = array<i32>} : memref<256x1152xf32, #tpu.memory_space<vmem>>, vector<256x128xf32>,
    %c41 = arith.constant 41 : index
    %c0_32 = arith.constant 0 : index
    %32 = vector.load %arg10[%c41, %c0_32] : memref<304x128xf32, #tpu.memory_space<vmem>>, vector<256x128xf32>
    %c0_33 = arith.constant 0 : index
    %c1024 = arith.constant 1024 : index
    %33 = vector.load %arg11[%c0_33, %c1024] : memref<256x1152xf32, #tpu.memory_space<vmem>>, vector<256x128xf32>
    tpu.vector_store %arg11[%c0_33, %c1024], %32 {strides = array<i32>} : memref<256x1152xf32, #tpu.memory_space<vmem>>, vector<256x128xf32>,
    %c0_34 = arith.constant 0 : index
    %c0_35 = arith.constant 0 : index
    %34 = vector.load %arg11[%c0_34, %c0_35] : memref<256x1152xf32, #tpu.memory_space<vmem>>, vector<256x1152xf32>
    %c0_36 = arith.constant 0 : index
    %c0_37 = arith.constant 0 : index
    %35 = vector.load %arg5[%c0_36, %c0_37] : memref<1152x64xf32, #tpu.memory_space<vmem>>, vector<1152x64xf32>
    %cst_38 = arith.constant dense<0.000000e+00> : vector<256x64xf32>
    %36 = tpu.matmul %34, %35, %cst_38 {dimension_numbers = #tpu.dot_dimension_numbers<[1], [0], [0], [1], [0, 0, 1, 1], [], []>} : vector<256x1152xf32>, vector<1152x64xf32>, vector<256x64xf32> -> vector<256x64xf32>
    %c0_39 = arith.constant 0 : index
    %c0_40 = arith.constant 0 : index
    %37 = vector.load %arg6[%c0_39, %c0_40] : memref<1x64xf32, #tpu.memory_space<vmem>>, vector<1x64xf32>
    %38 = vector.broadcast %37 : vector<1x64xf32> to vector<256x64xf32>
    %39 = arith.addf %36, %38 : vector<256x64xf32>
    %cst_41 = arith.constant 0.000000e+00 : f32
    %40 = vector.broadcast %cst_41 : f32 to vector<256x64xf32>
    %41 = arith.maximumf %39, %40 : vector<256x64xf32>
    %c0_42 = arith.constant 0 : index
    %c0_43 = arith.constant 0 : index
    %42 = vector.load %arg7[%c0_42, %c0_43] : memref<64x3xf32, #tpu.memory_space<vmem>>, vector<64x3xf32>
    %cst_44 = arith.constant dense<0.000000e+00> : vector<256x3xf32>
    %43 = tpu.matmul %41, %42, %cst_44 {dimension_numbers = #tpu.dot_dimension_numbers<[1], [0], [0], [1], [0, 0, 1, 1], [], []>} : vector<256x64xf32>, vector<64x3xf32>, vector<256x3xf32> -> vector<256x3xf32>
    %c0_45 = arith.constant 0 : index
    %c0_46 = arith.constant 0 : index
    %44 = vector.load %arg8[%c0_45, %c0_46] : memref<1x3xf32, #tpu.memory_space<vmem>>, vector<1x3xf32>
    %45 = vector.broadcast %44 : vector<1x3xf32> to vector<256x3xf32>
    %46 = arith.addf %43, %45 : vector<256x3xf32>
    %cst_47 = arith.constant 0.000000e+00 : f32
    %47 = vector.broadcast %cst_47 : f32 to vector<256x3xf32>
    %48 = arith.maximumf %46, %47 : vector<256x3xf32>
    %c0_48 = arith.constant 0 : index
    %c0_49 = arith.constant 0 : index
    %49 = vector.load %arg8[%c0_48, %c0_49] : memref<1x3xf32, #tpu.memory_space<vmem>>, vector<1x3xf32>
    %cst_50 = arith.constant 0.000000e+00 : f32
    %50 = vector.broadcast %cst_50 : f32 to vector<1x3xf32>
    %51 = arith.maximumf %49, %50 : vector<1x3xf32>
    %cst_51 = arith.constant 0.000000e+00 : f32
    %52 = vector.broadcast %cst_51 : f32 to vector<256x1xf32>
    %53 = arith.cmpf ogt, %0, %52 : vector<256x1xf32>
    %54 = vector.shape_cast %53 : vector<256x1xi1> to vector<256x1xi1>
    %55 = vector.broadcast %54 : vector<256x1xi1> to vector<256x3xi1>
    %56 = vector.shape_cast %51 : vector<1x3xf32> to vector<1x3xf32>
    %57 = vector.broadcast %56 : vector<1x3xf32> to vector<256x3xf32>
    %58 = arith.select %55, %48, %57 : vector<256x3xi1>, vector<256x3xf32>
    %c0_52 = arith.constant 0 : index
    %c0_53 = arith.constant 0 : index
    %c0_54 = arith.constant 0 : index
    %59 = vector.load %arg9[%c0_52, %c0_53, %c0_54] : memref<1x256x3xf32, #tpu.memory_space<vmem>>, vector<1x256x3xf32>
    %60 = vector.shape_cast %59 : vector<1x256x3xf32> to vector<256x3xf32>
    %61 = vector.shape_cast %58 : vector<256x3xf32> to vector<1x256x3xf32>
    tpu.vector_store %arg9[%c0_52, %c0_53, %c0_54], %61 {strides = array<i32>} : memref<1x256x3xf32, #tpu.memory_space<vmem>>, vector<1x256x3xf32>,
    return
  }
  func.func @transform_0(%arg0: i32) -> (i32, i32, i32) {
    %c0_i32 = arith.constant 0 : i32
    %c0_i32_0 = arith.constant 0 : i32
    %c0_i32_1 = arith.constant 0 : i32
    return %arg0, %c0_i32, %c0_i32_0 : i32, i32, i32
  }
  func.func @transform_1(%arg0: i32) -> (i32, i32) {
    %c0_i32 = arith.constant 0 : i32
    %c0_i32_0 = arith.constant 0 : i32
    %c0_i32_1 = arith.constant 0 : i32
    return %c0_i32, %c0_i32_0 : i32, i32
  }
  func.func @transform_2(%arg0: i32) -> (i32, i32) {
    %c0_i32 = arith.constant 0 : i32
    %c0_i32_0 = arith.constant 0 : i32
    %c0_i32_1 = arith.constant 0 : i32
    return %c0_i32, %c0_i32_0 : i32, i32
  }
  func.func @transform_3(%arg0: i32) -> (i32, i32) {
    %c0_i32 = arith.constant 0 : i32
    %c0_i32_0 = arith.constant 0 : i32
    %c0_i32_1 = arith.constant 0 : i32
    return %c0_i32, %c0_i32_0 : i32, i32
  }
  func.func @transform_4(%arg0: i32) -> (i32, i32) {
    %c0_i32 = arith.constant 0 : i32
    %c0_i32_0 = arith.constant 0 : i32
    %c0_i32_1 = arith.constant 0 : i32
    return %c0_i32, %c0_i32_0 : i32, i32
  }
  func.func @transform_5(%arg0: i32) -> (i32, i32) {
    %c0_i32 = arith.constant 0 : i32
    %c0_i32_0 = arith.constant 0 : i32
    %c0_i32_1 = arith.constant 0 : i32
    return %c0_i32, %c0_i32_0 : i32, i32
  }
  func.func @transform_6(%arg0: i32) -> (i32, i32) {
    %c0_i32 = arith.constant 0 : i32
    %c0_i32_0 = arith.constant 0 : i32
    %c0_i32_1 = arith.constant 0 : i32
    return %c0_i32, %c0_i32_0 : i32, i32
  }
  func.func @transform_7(%arg0: i32) -> (i32, i32) {
    %c0_i32 = arith.constant 0 : i32
    %c0_i32_0 = arith.constant 0 : i32
    %c0_i32_1 = arith.constant 0 : i32
    return %c0_i32, %c0_i32_0 : i32, i32
  }
  func.func @transform_8(%arg0: i32) -> (i32, i32, i32) {
    %c0_i32 = arith.constant 0 : i32
    %c0_i32_0 = arith.constant 0 : i32
    %c0_i32_1 = arith.constant 0 : i32
    return %arg0, %c0_i32, %c0_i32_0 : i32, i32, i32
  }
}

</mosaic_0001>

<llo_original>
// kernel: cnn_forward.1
$region0: #{cnn_forward.1}
  #allocation0 [shape = 'u32[]', space=smem, size = 0x4, offset = 0x4, fixed_abs, tag = 'smem constant byte address 0x4 - core index']
  #allocation1 [shape = 'u32[144,128]{1,0:T(1,128)}', space=vmem, size = 0x12000, scoped, tag = 'internal scratch']
  #allocation2 [shape = 'f32[304,128]{1,0:T(8,128)}', space=vmem, size = 0x26000, scoped, tag = 'scratch operand']
  #allocation3 [shape = 'f32[256,1152]{1,0:T(8,128)}', space=vmem, size = 0x120000, scoped, tag = 'scratch operand']
  %s0 = inlined_call_operand.vmem [shape: f32[2,256,75], index: 0, kind: input, shape index: {}]
  %s1 = inlined_call_operand.vmem [shape: f32[256,1], index: 1, kind: input, shape index: {}]
  %s2 = inlined_call_operand.vmem [shape: f32[75,128], index: 2, kind: input, shape index: {}]
  %s3 = inlined_call_operand.vmem [shape: f32[1,128], index: 3, kind: input, shape index: {}]
  %s4 = inlined_call_operand.vmem [shape: f32[1152,64], index: 4, kind: input, shape index: {}]
  %s5 = inlined_call_operand.vmem [shape: f32[1,64], index: 5, kind: input, shape index: {}]
  %s6 = inlined_call_operand.vmem [shape: f32[64,3], index: 6, kind: input, shape index: {}]
  %s7 = inlined_call_operand.vmem [shape: f32[1,3], index: 7, kind: input, shape index: {}]
  %s8 = inlined_call_operand.vmem [shape: f32[2,256,3], index: 8, kind: output, shape index: {}]
  %s9 = sld [smem:[#allocation0]]
  $region65: #{cnn_forward.1} parent=0
    _
  %s11 = ssub.s32 1, %s9
  %s12 = scalar_select 0, %s11, %s9
  loop: start=0, step=1, limit=4
  $region2: #{cnn_forward.1} parent=0 // loop_pre_header
    _
  $region3: #{cnn_forward.1} parent=0 // loop_header
    %s14 = sphi 0, %s18
    %p15 = scmp.ge.s32.totalorder %s14, 4
    %s24 = sphi 0, %s26
    %s27 = sphi 0, %s24
    %s28 = sphi 0, %s27
    %s44 = sphi 0, %s28
    %s48 = sphi 0, %s48
    %s50 = sphi 0, %s48
    %s51 = sphi 0, %s50
    %s65 = sphi 0, %s51
    %s69 = sphi 0, %s69
    %s71 = sphi 0, %s69
    %s72 = sphi 0, %s71
    %s86 = sphi 0, %s72
    %s90 = sphi 0, %s90
    %s92 = sphi 0, %s90
    %s93 = sphi 0, %s92
    %s107 = sphi 0, %s93
    %s111 = sphi 0, %s111
    %s113 = sphi 0, %s111
    %s114 = sphi 0, %s113
    %s128 = sphi 0, %s114
    %s132 = sphi 0, %s132
    %s134 = sphi 0, %s132
    %s135 = sphi 0, %s134
    %s149 = sphi 0, %s135
    %s153 = sphi 0, %s153
    %s155 = sphi 0, %s153
    %s156 = sphi 0, %s155
    %s170 = sphi 0, %s156
    %s174 = sphi 0, %s174
    %s176 = sphi 0, %s174
    %s177 = sphi 0, %s176
    %s191 = sphi 0, %s177
    %s197 = sphi 0, %s199
    %s200 = sphi 0, %s197
    %s201 = sphi 0, %s200
    %s217 = sphi 0, %s201
  $region4: #{cnn_forward.1} parent=0 // loop_header_branch
    %17 = sbr.rel (%p15) target = $region8
  $region5: #{cnn_forward.1} parent=0 // loop_body
    %s19 = ssub.s32 %s14, 1
    %s20 = ssub.s32 %s14, 2
    %s21 = sadd.s32 %s14, 1
    %s22 = ssub.s32 %s14, %s21
    %p23 = scmp.eq.s32.totalorder %s22, 0
    %s25 = sadd.s32 %s24, 1
    %s26 = scalar_select %p23, %s24, %s25
    %p29 = pneg %p23
    %p30 = scmp.eq.s32.totalorder %s14, 1
    %p31 = por %p29, %p30
    %p32 = scmp.ne.s32.totalorder %s24, %s27
    %p33 = scmp.eq.s32.totalorder %s14, 0
    %p34 = por %p32, %p33
    %p35 = scmp.ne.s32.totalorder %s24, %s27
    %p36 = scmp.eq.s32.totalorder %s19, 1
    %p37 = por %p35, %p36
    %p38 = scmp.ne.s32.totalorder %s27, %s28
    %p39 = scmp.eq.s32.totalorder %s19, 0
    %p40 = por %p38, %p39
    %p41 = scmp.ne.s32.totalorder %s27, %s28
    %p42 = scmp.eq.s32.totalorder %s20, 1
    %p43 = por %p41, %p42
    %p45 = scmp.ne.s32.totalorder %s28, %s44
    %p46 = scmp.eq.s32.totalorder %s20, 0
    %p47 = por %p45, %p46
    %s49 = sadd.s32 %s48, 1
    %p52 = scmp.eq.s32.totalorder %s14, 1
    %p53 = scmp.ne.s32.totalorder %s48, %s50
    %p54 = scmp.eq.s32.totalorder %s14, 0
    %p55 = por %p53, %p54
    %p56 = scmp.ne.s32.totalorder %s48, %s50
    %p57 = scmp.eq.s32.totalorder %s19, 1
    %p58 = por %p56, %p57
    %p59 = scmp.ne.s32.totalorder %s50, %s51
    %p60 = scmp.eq.s32.totalorder %s19, 0
    %p61 = por %p59, %p60
    %p62 = scmp.ne.s32.totalorder %s50, %s51
    %p63 = scmp.eq.s32.totalorder %s20, 1
    %p64 = por %p62, %p63
    %p66 = scmp.ne.s32.totalorder %s51, %s65
    %p67 = scmp.eq.s32.totalorder %s20, 0
    %p68 = por %p66, %p67
    %s70 = sadd.s32 %s69, 1
    %p73 = scmp.eq.s32.totalorder %s14, 1
    %p74 = scmp.ne.s32.totalorder %s69, %s71
    %p75 = scmp.eq.s32.totalorder %s14, 0
    %p76 = por %p74, %p75
    %p77 = scmp.ne.s32.totalorder %s69, %s71
    %p78 = scmp.eq.s32.totalorder %s19, 1
    %p79 = por %p77, %p78
    %p80 = scmp.ne.s32.totalorder %s71, %s72
    %p81 = scmp.eq.s32.totalorder %s19, 0
    %p82 = por %p80, %p81
    %p83 = scmp.ne.s32.totalorder %s71, %s72
    %p84 = scmp.eq.s32.totalorder %s20, 1
    %p85 = por %p83, %p84
    %p87 = scmp.ne.s32.totalorder %s72, %s86
    %p88 = scmp.eq.s32.totalorder %s20, 0
    %p89 = por %p87, %p88
    %s91 = sadd.s32 %s90, 1
    %p94 = scmp.eq.s32.totalorder %s14, 1
    %p95 = scmp.ne.s32.totalorder %s90, %s92
    %p96 = scmp.eq.s32.totalorder %s14, 0
    %p97 = por %p95, %p96
    %p98 = scmp.ne.s32.totalorder %s90, %s92
    %p99 = scmp.eq.s32.totalorder %s19, 1
    %p100 = por %p98, %p99
    %p101 = scmp.ne.s32.totalorder %s92, %s93
    %p102 = scmp.eq.s32.totalorder %s19, 0
    %p103 = por %p101, %p102
    %p104 = scmp.ne.s32.totalorder %s92, %s93
    %p105 = scmp.eq.s32.totalorder %s20, 1
    %p106 = por %p104, %p105
    %p108 = scmp.ne.s32.totalorder %s93, %s107
    %p109 = scmp.eq.s32.totalorder %s20, 0
    %p110 = por %p108, %p109
    %s112 = sadd.s32 %s111, 1
    %p115 = scmp.eq.s32.totalorder %s14, 1
    %p116 = scmp.ne.s32.totalorder %s111, %s113
    %p117 = scmp.eq.s32.totalorder %s14, 0
    %p118 = por %p116, %p117
    %p119 = scmp.ne.s32.totalorder %s111, %s113
    %p120 = scmp.eq.s32.totalorder %s19, 1
    %p121 = por %p119, %p120
    %p122 = scmp.ne.s32.totalorder %s113, %s114
    %p123 = scmp.eq.s32.totalorder %s19, 0
    %p124 = por %p122, %p123
    %p125 = scmp.ne.s32.totalorder %s113, %s114
    %p126 = scmp.eq.s32.totalorder %s20, 1
    %p127 = por %p125, %p126
    %p129 = scmp.ne.s32.totalorder %s114, %s128
    %p130 = scmp.eq.s32.totalorder %s20, 0
    %p131 = por %p129, %p130
    %s133 = sadd.s32 %s132, 1
    %p136 = scmp.eq.s32.totalorder %s14, 1
    %p137 = scmp.ne.s32.totalorder %s132, %s134
    %p138 = scmp.eq.s32.totalorder %s14, 0
    %p139 = por %p137, %p138
    %p140 = scmp.ne.s32.totalorder %s132, %s134
    %p141 = scmp.eq.s32.totalorder %s19, 1
    %p142 = por %p140, %p141
    %p143 = scmp.ne.s32.totalorder %s134, %s135
    %p144 = scmp.eq.s32.totalorder %s19, 0
    %p145 = por %p143, %p144
    %p146 = scmp.ne.s32.totalorder %s134, %s135
    %p147 = scmp.eq.s32.totalorder %s20, 1
    %p148 = por %p146, %p147
    %p150 = scmp.ne.s32.totalorder %s135, %s149
    %p151 = scmp.eq.s32.totalorder %s20, 0
    %p152 = por %p150, %p151
    %s154 = sadd.s32 %s153, 1
    %p157 = scmp.eq.s32.totalorder %s14, 1
    %p158 = scmp.ne.s32.totalorder %s153, %s155
    %p159 = scmp.eq.s32.totalorder %s14, 0
    %p160 = por %p158, %p159
    %p161 = scmp.ne.s32.totalorder %s153, %s155
    %p162 = scmp.eq.s32.totalorder %s19, 1
    %p163 = por %p161, %p162
    %p164 = scmp.ne.s32.totalorder %s155, %s156
    %p165 = scmp.eq.s32.totalorder %s19, 0
    %p166 = por %p164, %p165
    %p167 = scmp.ne.s32.totalorder %s155, %s156
    %p168 = scmp.eq.s32.totalorder %s20, 1
    %p169 = por %p167, %p168
    %p171 = scmp.ne.s32.totalorder %s156, %s170
    %p172 = scmp.eq.s32.totalorder %s20, 0
    %p173 = por %p171, %p172
    %s175 = sadd.s32 %s174, 1
    %p178 = scmp.eq.s32.totalorder %s14, 1
    %p179 = scmp.ne.s32.totalorder %s174, %s176
    %p180 = scmp.eq.s32.totalorder %s14, 0
    %p181 = por %p179, %p180
    %p182 = scmp.ne.s32.totalorder %s174, %s176
    %p183 = scmp.eq.s32.totalorder %s19, 1
    %p184 = por %p182, %p183
    %p185 = scmp.ne.s32.totalorder %s176, %s177
    %p186 = scmp.eq.s32.totalorder %s19, 0
    %p187 = por %p185, %p186
    %p188 = scmp.ne.s32.totalorder %s176, %s177
    %p189 = scmp.eq.s32.totalorder %s20, 1
    %p190 = por %p188, %p189
    %p192 = scmp.ne.s32.totalorder %s177, %s191
    %p193 = scmp.eq.s32.totalorder %s20, 0
    %p194 = por %p192, %p193
    %s195 = ssub.s32 %s14, %s21
    %p196 = scmp.eq.s32.totalorder %s195, 0
    %s198 = sadd.s32 %s197, 1
    %s199 = scalar_select %p196, %s197, %s198
    %p202 = pneg %p196
    %p203 = scmp.eq.s32.totalorder %s14, 1
    %p204 = por %p202, %p203
    %p205 = scmp.ne.s32.totalorder %s197, %s200
    %p206 = scmp.eq.s32.totalorder %s14, 0
    %p207 = por %p205, %p206
    %p208 = scmp.ne.s32.totalorder %s197, %s200
    %p209 = scmp.eq.s32.totalorder %s19, 1
    %p210 = por %p208, %p209
    %p211 = scmp.ne.s32.totalorder %s200, %s201
    %p212 = scmp.eq.s32.totalorder %s19, 0
    %p213 = por %p211, %p212
    %p214 = scmp.ne.s32.totalorder %s200, %s201
    %p215 = scmp.eq.s32.totalorder %s20, 1
    %p216 = por %p214, %p215
    %p218 = scmp.ne.s32.totalorder %s201, %s217
    %p219 = scmp.eq.s32.totalorder %s20, 0
    %p220 = por %p218, %p219
    %p221 = scmp.le.s32.totalorder 1, %s14
    %p222 = scmp.lt.s32.totalorder %s14, 3
    %p223 = pnand %p221, %p222
    %p224 = pneg %p223
    // Predicated region
    $region9: #{cnn_forward.1} parent=5 // pred_check
      _
    $region10: #{cnn_forward.1} parent=5 // pred_check_branch
      %226 = sbr.rel (%p223) target = $region12
    $region11: #{cnn_forward.1} parent=5 // pred_region
      %s227 = ssub.s32 %s14, 1
      // Predicated region
      $region13: #{cnn_forward.1} parent=11 // pred_check
        %p228 = pneg %p61
      $region14: #{cnn_forward.1} parent=11 // pred_check_branch
        %230 = sbr.rel (%p228) target = $region16
      $region15: #{cnn_forward.1} parent=11 // pred_region
        _
      $region16: #{cnn_forward.1} parent=11 // pred_fallthru
        _
      // Predicated region
      $region17: #{cnn_forward.1} parent=11 // pred_check
        %p231 = pneg %p82
      $region18: #{cnn_forward.1} parent=11 // pred_check_branch
        %233 = sbr.rel (%p231) target = $region20
      $region19: #{cnn_forward.1} parent=11 // pred_region
        _
      $region20: #{cnn_forward.1} parent=11 // pred_fallthru
        _
      // Predicated region
      $region21: #{cnn_forward.1} parent=11 // pred_check
        %p234 = pneg %p103
      $region22: #{cnn_forward.1} parent=11 // pred_check_branch
        %236 = sbr.rel (%p234) target = $region24
      $region23: #{cnn_forward.1} parent=11 // pred_region
        _
      $region24: #{cnn_forward.1} parent=11 // pred_fallthru
        _
      // Predicated region
      $region25: #{cnn_forward.1} parent=11 // pred_check
        %p237 = pneg %p124
      $region26: #{cnn_forward.1} parent=11 // pred_check_branch
        %239 = sbr.rel (%p237) target = $region28
      $region27: #{cnn_forward.1} parent=11 // pred_region
        _
      $region28: #{cnn_forward.1} parent=11 // pred_fallthru
        _
      // Predicated region
      $region29: #{cnn_forward.1} parent=11 // pred_check
        %p240 = pneg %p145
      $region30: #{cnn_forward.1} parent=11 // pred_check_branch
        %242 = sbr.rel (%p240) target = $region32
      $region31: #{cnn_forward.1} parent=11 // pred_region
        _
      $region32: #{cnn_forward.1} parent=11 // pred_fallthru
        _
      // Predicated region
      $region33: #{cnn_forward.1} parent=11 // pred_check
        %p243 = pneg %p166
      $region34: #{cnn_forward.1} parent=11 // pred_check_branch
        %245 = sbr.rel (%p243) target = $region36
      $region35: #{cnn_forward.1} parent=11 // pred_region
        _
      $region36: #{cnn_forward.1} parent=11 // pred_fallthru
        _
      // Predicated region
      $region37: #{cnn_forward.1} parent=11 // pred_check
        %p246 = pneg %p187
      $region38: #{cnn_forward.1} parent=11 // pred_check_branch
        %248 = sbr.rel (%p246) target = $region40
      $region39: #{cnn_forward.1} parent=11 // pred_region
        _
      $region40: #{cnn_forward.1} parent=11 // pred_fallthru
        _
    $region12: #{cnn_forward.1} parent=5 // pred_fallthru
      _
    %p249 = scmp.lt.s32.totalorder %s14, 2
    // Predicated region
    $region41: #{cnn_forward.1} parent=5 // pred_check
      %p250 = pneg %p249
    $region42: #{cnn_forward.1} parent=5 // pred_check_branch
      %252 = sbr.rel (%p250) target = $region44
    $region43: #{cnn_forward.1} parent=5 // pred_region
      // Predicated region
      $region45: #{cnn_forward.1} parent=43 // pred_check
        %p253 = pneg %p34
      $region46: #{cnn_forward.1} parent=43 // pred_check_branch
        %255 = sbr.rel (%p253) target = $region48
      $region47: #{cnn_forward.1} parent=43 // pred_region
        %p256 = scmp.lt.s32.totalorder %s14, 1
        %s257 = scalar_select %p256, %s14, 1
        %s258 = smul.addr %s257, 32
        %s259 = smul.addr %s258, 8
        %s260 = scalar_lea.vmem %s0, %s259
      $region48: #{cnn_forward.1} parent=43 // pred_fallthru
        _
    $region44: #{cnn_forward.1} parent=5 // pred_fallthru
      _
    %p261 = scmp.le.s32.totalorder 1, %s14
    %p262 = scmp.lt.s32.totalorder %s14, 3
    %p263 = pnand %p261, %p262
    %p264 = pneg %p263
    // Predicated region
    $region49: #{cnn_forward.1} parent=5 // pred_check
      _
    $region50: #{cnn_forward.1} parent=5 // pred_check_branch
      %266 = sbr.rel (%p263) target = $region52
    $region51: #{cnn_forward.1} parent=5 // pred_region
      %s267 = ssub.s32 %s14, 1
      %p268 = scmp.lt.s32.totalorder %s19, 1
      %s269 = scalar_select %p268, %s19, 1
      %s270 = smul.addr %s269, 32
      %s271 = smul.addr %s270, 8
      %s272 = scalar_lea.vmem %s0, %s271
      %p273 = pneg %p40
      %p274 = pneg %p37
      %p275 = pneg %p61
      %p276 = pneg %p58
      %p277 = pneg %p82
      %p278 = pneg %p79
      %p279 = pneg %p103
      %p280 = pneg %p100
      %p281 = pneg %p124
      %p282 = pneg %p121
      %p283 = pneg %p145
      %p284 = pneg %p142
      %p285 = pneg %p166
      %p286 = pneg %p163
      %p287 = pneg %p187
      %p288 = pneg %p184
      %p289 = pneg %p213
      %p290 = pneg %p210
      %p291 = scmp.lt.s32.totalorder %s19, 1
      %s292 = scalar_select %p291, %s19, 1
      %s293 = smul.addr %s292, 32
      %s294 = smul.addr %s293, 8
      %s295 = scalar_lea.vmem %s8, %s294
      %p296 = scmp.lt.s32.totalorder %s19, 1
      %s297 = scalar_select %p296, %s19, 1
      %s298 = smul.addr %s297, 32
      %s299 = smul.addr %s298, 8
      %s300 = scalar_lea.vmem %s0, %s299
      %p301 = scmp.lt.s32.totalorder %s19, 1
      %s302 = scalar_select %p301, %s19, 1
      %s303 = smul.addr %s302, 32
      %s304 = smul.addr %s303, 8
      %s305 = scalar_lea.vmem %s8, %s304
      %v306 = vld [vmem:[%s1] sm:$0xff]
      %v307 = vld [vmem:[%s1 + $0x8] sm:$0xff]
      %v308 = vld [vmem:[%s1 + $0x10] sm:$0xff]
      %v309 = vld [vmem:[%s1 + $0x18] sm:$0xff]
      %v310 = vld [vmem:[%s1 + $0x20] sm:$0xff]
      %v311 = vld [vmem:[%s1 + $0x28] sm:$0xff]
      %v312 = vld [vmem:[%s1 + $0x30] sm:$0xff]
      %v313 = vld [vmem:[%s1 + $0x38] sm:$0xff]
      %v314 = vld [vmem:[%s1 + $0x40] sm:$0xff]
      %v315 = vld [vmem:[%s1 + $0x48] sm:$0xff]
      %v316 = vld [vmem:[%s1 + $0x50] sm:$0xff]
      %v317 = vld [vmem:[%s1 + $0x58] sm:$0xff]
      %v318 = vld [vmem:[%s1 + $0x60] sm:$0xff]
      %v319 = vld [vmem:[%s1 + $0x68] sm:$0xff]
      %v320 = vld [vmem:[%s1 + $0x70] sm:$0xff]
      %v321 = vld [vmem:[%s1 + $0x78] sm:$0xff]
      %v322 = vld [vmem:[%s1 + $0x80] sm:$0xff]
      %v323 = vld [vmem:[%s1 + $0x88] sm:$0xff]
      %v324 = vld [vmem:[%s1 + $0x90] sm:$0xff]
      %v325 = vld [vmem:[%s1 + $0x98] sm:$0xff]
      %v326 = vld [vmem:[%s1 + $0xa0] sm:$0xff]
      %v327 = vld [vmem:[%s1 + $0xa8] sm:$0xff]
      %v328 = vld [vmem:[%s1 + $0xb0] sm:$0xff]
      %v329 = vld [vmem:[%s1 + $0xb8] sm:$0xff]
      %v330 = vld [vmem:[%s1 + $0xc0] sm:$0xff]
      %v331 = vld [vmem:[%s1 + $0xc8] sm:$0xff]
      %v332 = vld [vmem:[%s1 + $0xd0] sm:$0xff]
      %v333 = vld [vmem:[%s1 + $0xd8] sm:$0xff]
      %v334 = vld [vmem:[%s1 + $0xe0] sm:$0xff]
      %v335 = vld [vmem:[%s1 + $0xe8] sm:$0xff]
      %v336 = vld [vmem:[%s1 + $0xf0] sm:$0xff]
      %v337 = vld [vmem:[%s1 + $0xf8] sm:$0xff]
      %v338 = vld [vmem:[%s300] sm:$0xff]
      %v339 = vld [vmem:[%s300 + $0x8] sm:$0xff]
      %v340 = vld [vmem:[%s300 + $0x10] sm:$0xff]
      %v341 = vld [vmem:[%s300 + $0x18] sm:$0xff]
      %v342 = vld [vmem:[%s300 + $0x20] sm:$0xff]
      %v343 = vld [vmem:[%s300 + $0x28] sm:$0xff]
      %v344 = vld [vmem:[%s300 + $0x30] sm:$0xff]
      %v345 = vld [vmem:[%s300 + $0x38] sm:$0xff]
      %v346 = vld [vmem:[%s300 + $0x40] sm:$0xff]
      %v347 = vld [vmem:[%s300 + $0x48] sm:$0xff]
      %v348 = vld [vmem:[%s300 + $0x50] sm:$0xff]
      %v349 = vld [vmem:[%s300 + $0x58] sm:$0xff]
      %v350 = vld [vmem:[%s300 + $0x60] sm:$0xff]
      %v351 = vld [vmem:[%s300 + $0x68] sm:$0xff]
      %v352 = vld [vmem:[%s300 + $0x70] sm:$0xff]
      %v353 = vld [vmem:[%s300 + $0x78] sm:$0xff]
      %v354 = vld [vmem:[%s300 + $0x80] sm:$0xff]
      %v355 = vld [vmem:[%s300 + $0x88] sm:$0xff]
      %v356 = vld [vmem:[%s300 + $0x90] sm:$0xff]
      %v357 = vld [vmem:[%s300 + $0x98] sm:$0xff]
      %v358 = vld [vmem:[%s300 + $0xa0] sm:$0xff]
      %v359 = vld [vmem:[%s300 + $0xa8] sm:$0xff]
      %v360 = vld [vmem:[%s300 + $0xb0] sm:$0xff]
      %v361 = vld [vmem:[%s300 + $0xb8] sm:$0xff]
      %v362 = vld [vmem:[%s300 + $0xc0] sm:$0xff]
      %v363 = vld [vmem:[%s300 + $0xc8] sm:$0xff]
      %v364 = vld [vmem:[%s300 + $0xd0] sm:$0xff]
      %v365 = vld [vmem:[%s300 + $0xd8] sm:$0xff]
      %v366 = vld [vmem:[%s300 + $0xe0] sm:$0xff]
      %v367 = vld [vmem:[%s300 + $0xe8] sm:$0xff]
      %v368 = vld [vmem:[%s300 + $0xf0] sm:$0xff]
      %v369 = vld [vmem:[%s300 + $0xf8] sm:$0xff]
      %v370 = vld [vmem:[%s2] sm:$0xff]
      %v371 = vld [vmem:[%s2 + $0x8] sm:$0xff]
      %v372 = vld [vmem:[%s2 + $0x10] sm:$0xff]
      %v373 = vld [vmem:[%s2 + $0x18] sm:$0xff]
      %v374 = vld [vmem:[%s2 + $0x20] sm:$0xff]
      %v375 = vld [vmem:[%s2 + $0x28] sm:$0xff]
      %v376 = vld [vmem:[%s2 + $0x30] sm:$0xff]
      %v377 = vld [vmem:[%s2 + $0x38] sm:$0xff]
      %v378 = vld [vmem:[%s2 + $0x40] sm:$0xff]
      %v379 = vld [vmem:[%s2 + $0x48] sm:$0x7]
      %v380 = vld [vmem:[%s3] sm:$0x1]
      %v382 = vlaneseq
      %v383 = vshrl.u32 %v382, 7
      %v384 = vsub.s32 0, %v383
      %v385 = vrot.slane %v380, %v384
      %vm387 = vcmask 613376
      %v389 = vsel %vm387, %v338, 0
      %v392 = vsel %vm387, %v339, 0
      %v395 = vsel %vm387, %v340, 0
      %v398 = vsel %vm387, %v341, 0
      %v401 = vsel %vm387, %v342, 0
      %v404 = vsel %vm387, %v343, 0
      %v407 = vsel %vm387, %v344, 0
      %v410 = vsel %vm387, %v345, 0
      %v413 = vsel %vm387, %v346, 0
      %v416 = vsel %vm387, %v347, 0
      %v419 = vsel %vm387, %v348, 0
      %v422 = vsel %vm387, %v349, 0
      %v425 = vsel %vm387, %v350, 0
      %v428 = vsel %vm387, %v351, 0
      %v431 = vsel %vm387, %v352, 0
      %v434 = vsel %vm387, %v353, 0
      %v437 = vsel %vm387, %v354, 0
      %v440 = vsel %vm387, %v355, 0
      %v443 = vsel %vm387, %v356, 0
      %v446 = vsel %vm387, %v357, 0
      %v449 = vsel %vm387, %v358, 0
      %v452 = vsel %vm387, %v359, 0
      %v455 = vsel %vm387, %v360, 0
      %v458 = vsel %vm387, %v361, 0
      %v461 = vsel %vm387, %v362, 0
      %v464 = vsel %vm387, %v363, 0
      %v467 = vsel %vm387, %v364, 0
      %v470 = vsel %vm387, %v365, 0
      %v473 = vsel %vm387, %v366, 0
      %v476 = vsel %vm387, %v367, 0
      %v479 = vsel %vm387, %v368, 0
      %v482 = vsel %vm387, %v369, 0
      %vm484 = vcmask 1042432
      %v486 = vsel %vm484, %v379, 0
      %488 = vmatprep.subr.mxu0 0.0
      %489 = vmatpush1.msra.mxu0 0.0
      %490 = vmatprep.subr.mxu0 0.0
      %491 = vmatpush1.msra.mxu0 0.0
      %492 = vmatprep.subr.mxu0 0.0
      %493 = vmatpush1.msra.mxu0 0.0
      %494 = vmatprep.subr.mxu0 0.0
      %495 = vmatpush1.msra.mxu0 0.0
      %496 = vmatprep.subr.mxu0 0.0
      %497 = vmatpush1.msra.mxu0 0.0
      %498 = vmatprep.subr.mxu0 0.0
      %499 = vmatpush1.msra.mxu0 0.0
      %500 = vmatprep.subr.mxu0 0.0
      %501 = vmatpush1.msra.mxu0 %v486
      %502 = vmatprep.subr.mxu0 0.0
      %503 = vmatpush1.msra.mxu0 %v378
      %504 = vmatprep.subr.mxu0 0.0
      %505 = vmatpush1.msra.mxu0 %v377
      %506 = vmatprep.subr.mxu0 0.0
      %507 = vmatpush1.msra.mxu0 %v376
      %508 = vmatprep.subr.mxu0 0.0
      %509 = vmatpush1.msra.mxu0 %v375
      %510 = vmatprep.subr.mxu0 0.0
      %511 = vmatpush1.msra.mxu0 %v374
      %512 = vmatprep.subr.mxu0 0.0
      %513 = vmatpush1.msra.mxu0 %v373
      %514 = vmatprep.subr.mxu0 0.0
      %515 = vmatpush1.msra.mxu0 %v372
      %516 = vmatprep.subr.mxu0 0.0
      %517 = vmatpush1.msra.mxu0 %v371
      %518 = vmatprep.subr.mxu0 0.0
      %519 = vmatpush1.msra.mxu0 %v370
      %520 = vmatprep.subr.mxu0 0.0
      %521 = vmatpush2.msra.mxu0 0.0
      %522 = vmatprep.subr.mxu0 0.0
      %523 = vmatpush2.msra.mxu0 0.0
      %524 = vmatprep.subr.mxu0 0.0
      %525 = vmatpush2.msra.mxu0 0.0
      %526 = vmatprep.subr.mxu0 0.0
      %527 = vmatpush2.msra.mxu0 0.0
      %528 = vmatprep.subr.mxu0 0.0
      %529 = vmatpush2.msra.mxu0 0.0
      %530 = vmatprep.subr.mxu0 0.0
      %531 = vmatpush2.msra.mxu0 0.0
      %532 = vmatprep.subr.mxu0 0.0
      %533 = vmatpush2.msra.mxu0 0.0
      %534 = vmatprep.subr.mxu0 0.0
      %535 = vmatpush2.msra.mxu0 0.0
      %536 = vmatprep.subr.mxu0 0.0
      %537 = vmatpush2.msra.mxu0 0.0
      %538 = vmatprep.subr.mxu0 0.0
      %539 = vmatpush2.msra.mxu0 0.0
      %540 = vmatprep.subr.mxu0 0.0
      %541 = vmatpush2.msra.mxu0 0.0
      %542 = vmatprep.subr.mxu0 0.0
      %543 = vmatpush2.msra.mxu0 0.0
      %544 = vmatprep.subr.mxu0 0.0
      %545 = vmatpush2.msra.mxu0 0.0
      %546 = vmatprep.subr.mxu0 0.0
      %547 = vmatpush2.msra.mxu0 0.0
      %548 = vmatprep.subr.mxu0 0.0
      %549 = vmatpush2.msra.mxu0 0.0
      %550 = vmatprep.subr.mxu0 0.0
      %551 = vmatpush2.msra.mxu0 0.0
      %552 = vmatprep.mubr.f32.mxu0 0.0
      %553 = vmatmul.mubr.f32.gmra.mxu0 %v389
      %v554 = vpop.f32.mrf.mxu0
      %v555 = vadd.f32 %v385, %v554
      %v556 = vpop.f32.mrf.mxu0
      %557 = vmatprep.mubr.f32.mxu0 0.0
      %558 = vmatmul.mubr.f32.gmra.mxu0 %v392
      %v559 = vpop.f32.mrf.mxu0
      %v560 = vadd.f32 %v385, %v559
      %v561 = vpop.f32.mrf.mxu0
      %562 = vmatprep.mubr.f32.mxu0 0.0
      %563 = vmatmul.mubr.f32.gmra.mxu0 %v395
      %v564 = vpop.f32.mrf.mxu0
      %v565 = vadd.f32 %v385, %v564
      %v566 = vpop.f32.mrf.mxu0
      %567 = vmatprep.mubr.f32.mxu0 0.0
      %568 = vmatmul.mubr.f32.gmra.mxu0 %v398
      %v569 = vpop.f32.mrf.mxu0
      %v570 = vadd.f32 %v385, %v569
      %v571 = vpop.f32.mrf.mxu0
      %572 = vmatprep.mubr.f32.mxu0 0.0
      %573 = vmatmul.mubr.f32.gmra.mxu0 %v401
      %v574 = vpop.f32.mrf.mxu0
      %v575 = vadd.f32 %v385, %v574
      %v576 = vpop.f32.mrf.mxu0
      %577 = vmatprep.mubr.f32.mxu0 0.0
      %578 = vmatmul.mubr.f32.gmra.mxu0 %v404
      %v579 = vpop.f32.mrf.mxu0
      %v580 = vadd.f32 %v385, %v579
      %v581 = vpop.f32.mrf.mxu0
      %582 = vmatprep.mubr.f32.mxu0 0.0
      %583 = vmatmul.mubr.f32.gmra.mxu0 %v407
      %v584 = vpop.f32.mrf.mxu0
      %v585 = vadd.f32 %v385, %v584
      %v586 = vpop.f32.mrf.mxu0
      %587 = vmatprep.mubr.f32.mxu0 0.0
      %588 = vmatmul.mubr.f32.gmra.mxu0 %v410
      %v589 = vpop.f32.mrf.mxu0
      %v590 = vadd.f32 %v385, %v589
      %v591 = vpop.f32.mrf.mxu0
      %592 = vmatprep.mubr.f32.mxu0 0.0
      %593 = vmatmul.mubr.f32.gmra.mxu0 %v413
      %v594 = vpop.f32.mrf.mxu0
      %v595 = vadd.f32 %v385, %v594
      %v596 = vpop.f32.mrf.mxu0
      %597 = vmatprep.mubr.f32.mxu0 0.0
      %598 = vmatmul.mubr.f32.gmra.mxu0 %v416
      %v599 = vpop.f32.mrf.mxu0
      %v600 = vadd.f32 %v385, %v599
      %v601 = vpop.f32.mrf.mxu0
      %602 = vmatprep.mubr.f32.mxu0 0.0
      %603 = vmatmul.mubr.f32.gmra.mxu0 %v419
      %v604 = vpop.f32.mrf.mxu0
      %v605 = vadd.f32 %v385, %v604
      %v606 = vpop.f32.mrf.mxu0
      %607 = vmatprep.mubr.f32.mxu0 0.0
      %608 = vmatmul.mubr.f32.gmra.mxu0 %v422
      %v609 = vpop.f32.mrf.mxu0
      %v610 = vadd.f32 %v385, %v609
      %v611 = vpop.f32.mrf.mxu0
      %612 = vmatprep.mubr.f32.mxu0 0.0
      %613 = vmatmul.mubr.f32.gmra.mxu0 %v425
      %v614 = vpop.f32.mrf.mxu0
      %v615 = vadd.f32 %v385, %v614
      %v616 = vpop.f32.mrf.mxu0
      %617 = vmatprep.mubr.f32.mxu0 0.0
      %618 = vmatmul.mubr.f32.gmra.mxu0 %v428
      %v619 = vpop.f32.mrf.mxu0
      %v620 = vadd.f32 %v385, %v619
      %v621 = vpop.f32.mrf.mxu0
      %622 = vmatprep.mubr.f32.mxu0 0.0
      %623 = vmatmul.mubr.f32.gmra.mxu0 %v431
      %v624 = vpop.f32.mrf.mxu0
      %v625 = vadd.f32 %v385, %v624
      %v626 = vpop.f32.mrf.mxu0
      %627 = vmatprep.mubr.f32.mxu0 0.0
      %628 = vmatmul.mubr.f32.gmra.mxu0 %v434
      %v629 = vpop.f32.mrf.mxu0
      %v630 = vadd.f32 %v385, %v629
      %v631 = vpop.f32.mrf.mxu0
      %632 = vmatprep.mubr.f32.mxu0 0.0
      %633 = vmatmul.mubr.f32.gmra.mxu0 %v437
      %v634 = vpop.f32.mrf.mxu0
      %v635 = vadd.f32 %v385, %v634
      %v636 = vpop.f32.mrf.mxu0
      %637 = vmatprep.mubr.f32.mxu0 0.0
      %638 = vmatmul.mubr.f32.gmra.mxu0 %v440
      %v639 = vpop.f32.mrf.mxu0
      %v640 = vadd.f32 %v385, %v639
      %v641 = vpop.f32.mrf.mxu0
      %642 = vmatprep.mubr.f32.mxu0 0.0
      %643 = vmatmul.mubr.f32.gmra.mxu0 %v443
      %v644 = vpop.f32.mrf.mxu0
      %v645 = vadd.f32 %v385, %v644
      %v646 = vpop.f32.mrf.mxu0
      %647 = vmatprep.mubr.f32.mxu0 0.0
      %648 = vmatmul.mubr.f32.gmra.mxu0 %v446
      %v649 = vpop.f32.mrf.mxu0
      %v650 = vadd.f32 %v385, %v649
      %v651 = vpop.f32.mrf.mxu0
      %652 = vmatprep.mubr.f32.mxu0 0.0
      %653 = vmatmul.mubr.f32.gmra.mxu0 %v449
      %v654 = vpop.f32.mrf.mxu0
      %v655 = vadd.f32 %v385, %v654
      %v656 = vpop.f32.mrf.mxu0
      %657 = vmatprep.mubr.f32.mxu0 0.0
      %658 = vmatmul.mubr.f32.gmra.mxu0 %v452
      %v659 = vpop.f32.mrf.mxu0
      %v660 = vadd.f32 %v385, %v659
      %v661 = vpop.f32.mrf.mxu0
      %662 = vmatprep.mubr.f32.mxu0 0.0
      %663 = vmatmul.mubr.f32.gmra.mxu0 %v455
      %v664 = vpop.f32.mrf.mxu0
      %v665 = vadd.f32 %v385, %v664
      %v666 = vpop.f32.mrf.mxu0
      %667 = vmatprep.mubr.f32.mxu0 0.0
      %668 = vmatmul.mubr.f32.gmra.mxu0 %v458
      %v669 = vpop.f32.mrf.mxu0
      %v670 = vadd.f32 %v385, %v669
      %v671 = vpop.f32.mrf.mxu0
      %672 = vmatprep.mubr.f32.mxu0 0.0
      %673 = vmatmul.mubr.f32.gmra.mxu0 %v461
      %v674 = vpop.f32.mrf.mxu0
      %v675 = vadd.f32 %v385, %v674
      %v676 = vpop.f32.mrf.mxu0
      %677 = vmatprep.mubr.f32.mxu0 0.0
      %678 = vmatmul.mubr.f32.gmra.mxu0 %v464
      %v679 = vpop.f32.mrf.mxu0
      %v680 = vadd.f32 %v385, %v679
      %v681 = vpop.f32.mrf.mxu0
      %682 = vmatprep.mubr.f32.mxu0 0.0
      %683 = vmatmul.mubr.f32.gmra.mxu0 %v467
      %v684 = vpop.f32.mrf.mxu0
      %v685 = vadd.f32 %v385, %v684
      %v686 = vpop.f32.mrf.mxu0
      %687 = vmatprep.mubr.f32.mxu0 0.0
      %688 = vmatmul.mubr.f32.gmra.mxu0 %v470
      %v689 = vpop.f32.mrf.mxu0
      %v690 = vadd.f32 %v385, %v689
      %v691 = vpop.f32.mrf.mxu0
      %692 = vmatprep.mubr.f32.mxu0 0.0
      %693 = vmatmul.mubr.f32.gmra.mxu0 %v473
      %v694 = vpop.f32.mrf.mxu0
      %v695 = vadd.f32 %v385, %v694
      %v696 = vpop.f32.mrf.mxu0
      %697 = vmatprep.mubr.f32.mxu0 0.0
      %698 = vmatmul.mubr.f32.gmra.mxu0 %v476
      %v699 = vpop.f32.mrf.mxu0
      %v700 = vadd.f32 %v385, %v699
      %v701 = vpop.f32.mrf.mxu0
      %702 = vmatprep.mubr.f32.mxu0 0.0
      %703 = vmatmul.mubr.f32.gmra.mxu0 %v479
      %v704 = vpop.f32.mrf.mxu0
      %v705 = vadd.f32 %v385, %v704
      %v706 = vpop.f32.mrf.mxu0
      %707 = vmatprep.mubr.f32.mxu0 0.0
      %708 = vmatmul.mubr.f32.gmra.mxu0 %v482
      %v709 = vpop.f32.mrf.mxu0
      %v710 = vadd.f32 %v385, %v709
      %v711 = vpop.f32.mrf.mxu0
      %712 = vdwg.mxu0
      %v713 = vmax.f32 %v555, 0.0
      %v714 = vmax.f32 %v560, 0.0
      %v715 = vmax.f32 %v565, 0.0
      %v716 = vmax.f32 %v570, 0.0
      %v717 = vmax.f32 %v575, 0.0
      %v718 = vmax.f32 %v580, 0.0
      %v719 = vmax.f32 %v585, 0.0
      %v720 = vmax.f32 %v590, 0.0
      %v721 = vmax.f32 %v595, 0.0
      %v722 = vmax.f32 %v600, 0.0
      %v723 = vmax.f32 %v605, 0.0
      %v724 = vmax.f32 %v610, 0.0
      %v725 = vmax.f32 %v615, 0.0
      %v726 = vmax.f32 %v620, 0.0
      %v727 = vmax.f32 %v625, 0.0
      %v728 = vmax.f32 %v630, 0.0
      %v729 = vmax.f32 %v635, 0.0
      %v730 = vmax.f32 %v640, 0.0
      %v731 = vmax.f32 %v645, 0.0
      %v732 = vmax.f32 %v650, 0.0
      %v733 = vmax.f32 %v655, 0.0
      %v734 = vmax.f32 %v660, 0.0
      %v735 = vmax.f32 %v665, 0.0
      %v736 = vmax.f32 %v670, 0.0
      %v737 = vmax.f32 %v675, 0.0
      %v738 = vmax.f32 %v680, 0.0
      %v739 = vmax.f32 %v685, 0.0
      %v740 = vmax.f32 %v690, 0.0
      %v741 = vmax.f32 %v695, 0.0
      %v742 = vmax.f32 %v700, 0.0
      %v743 = vmax.f32 %v705, 0.0
      %v744 = vmax.f32 %v710, 0.0
      %746 = vset.pattern.permute.xlu0 0
      %747 = vperm.xlu0 %746, %v306
      %v748 = vpop.permute.xlu0 %747
      %751 = vset.pattern.permute.xlu0 0
      %752 = vperm.xlu0 %751, %v307
      %v753 = vpop.permute.xlu0 %752
      %756 = vset.pattern.permute.xlu0 0
      %757 = vperm.xlu0 %756, %v308
      %v758 = vpop.permute.xlu0 %757
      %761 = vset.pattern.permute.xlu0 0
      %762 = vperm.xlu0 %761, %v309
      %v763 = vpop.permute.xlu0 %762
      %766 = vset.pattern.permute.xlu0 0
      %767 = vperm.xlu0 %766, %v310
      %v768 = vpop.permute.xlu0 %767
      %771 = vset.pattern.permute.xlu0 0
      %772 = vperm.xlu0 %771, %v311
      %v773 = vpop.permute.xlu0 %772
      %776 = vset.pattern.permute.xlu0 0
      %777 = vperm.xlu0 %776, %v312
      %v778 = vpop.permute.xlu0 %777
      %781 = vset.pattern.permute.xlu0 0
      %782 = vperm.xlu0 %781, %v313
      %v783 = vpop.permute.xlu0 %782
      %786 = vset.pattern.permute.xlu0 0
      %787 = vperm.xlu0 %786, %v314
      %v788 = vpop.permute.xlu0 %787
      %791 = vset.pattern.permute.xlu0 0
      %792 = vperm.xlu0 %791, %v315
      %v793 = vpop.permute.xlu0 %792
      %796 = vset.pattern.permute.xlu0 0
      %797 = vperm.xlu0 %796, %v316
      %v798 = vpop.permute.xlu0 %797
      %801 = vset.pattern.permute.xlu0 0
      %802 = vperm.xlu0 %801, %v317
      %v803 = vpop.permute.xlu0 %802
      %806 = vset.pattern.permute.xlu0 0
      %807 = vperm.xlu0 %806, %v318
      %v808 = vpop.permute.xlu0 %807
      %811 = vset.pattern.permute.xlu0 0
      %812 = vperm.xlu0 %811, %v319
      %v813 = vpop.permute.xlu0 %812
      %816 = vset.pattern.permute.xlu0 0
      %817 = vperm.xlu0 %816, %v320
      %v818 = vpop.permute.xlu0 %817
      %821 = vset.pattern.permute.xlu0 0
      %822 = vperm.xlu0 %821, %v321
      %v823 = vpop.permute.xlu0 %822
      %826 = vset.pattern.permute.xlu0 0
      %827 = vperm.xlu0 %826, %v322
      %v828 = vpop.permute.xlu0 %827
      %831 = vset.pattern.permute.xlu0 0
      %832 = vperm.xlu0 %831, %v323
      %v833 = vpop.permute.xlu0 %832
      %836 = vset.pattern.permute.xlu0 0
      %837 = vperm.xlu0 %836, %v324
      %v838 = vpop.permute.xlu0 %837
      %841 = vset.pattern.permute.xlu0 0
      %842 = vperm.xlu0 %841, %v325
      %v843 = vpop.permute.xlu0 %842
      %846 = vset.pattern.permute.xlu0 0
      %847 = vperm.xlu0 %846, %v326
      %v848 = vpop.permute.xlu0 %847
      %851 = vset.pattern.permute.xlu0 0
      %852 = vperm.xlu0 %851, %v327
      %v853 = vpop.permute.xlu0 %852
      %856 = vset.pattern.permute.xlu0 0
      %857 = vperm.xlu0 %856, %v328
      %v858 = vpop.permute.xlu0 %857
      %861 = vset.pattern.permute.xlu0 0
      %862 = vperm.xlu0 %861, %v329
      %v863 = vpop.permute.xlu0 %862
      %866 = vset.pattern.permute.xlu0 0
      %867 = vperm.xlu0 %866, %v330
      %v868 = vpop.permute.xlu0 %867
      %871 = vset.pattern.permute.xlu0 0
      %872 = vperm.xlu0 %871, %v331
      %v873 = vpop.permute.xlu0 %872
      %876 = vset.pattern.permute.xlu0 0
      %877 = vperm.xlu0 %876, %v332
      %v878 = vpop.permute.xlu0 %877
      %881 = vset.pattern.permute.xlu0 0
      %882 = vperm.xlu0 %881, %v333
      %v883 = vpop.permute.xlu0 %882
      %886 = vset.pattern.permute.xlu0 0
      %887 = vperm.xlu0 %886, %v334
      %v888 = vpop.permute.xlu0 %887
      %891 = vset.pattern.permute.xlu0 0
      %892 = vperm.xlu0 %891, %v335
      %v893 = vpop.permute.xlu0 %892
      %896 = vset.pattern.permute.xlu0 0
      %897 = vperm.xlu0 %896, %v336
      %v898 = vpop.permute.xlu0 %897
      %901 = vset.pattern.permute.xlu0 0
      %902 = vperm.xlu0 %901, %v337
      %v903 = vpop.permute.xlu0 %902
      %v905 = vmul.f32 %v713, %v748
      %v906 = vmul.f32 %v714, %v753
      %v907 = vmul.f32 %v715, %v758
      %v908 = vmul.f32 %v716, %v763
      %v909 = vmul.f32 %v717, %v768
      %v910 = vmul.f32 %v718, %v773
      %v911 = vmul.f32 %v719, %v778
      %v912 = vmul.f32 %v720, %v783
      %v913 = vmul.f32 %v721, %v788
      %v914 = vmul.f32 %v722, %v793
      %v915 = vmul.f32 %v723, %v798
      %v916 = vmul.f32 %v724, %v803
      %v917 = vmul.f32 %v725, %v808
      %v918 = vmul.f32 %v726, %v813
      %v919 = vmul.f32 %v727, %v818
      %v920 = vmul.f32 %v728, %v823
      %v921 = vmul.f32 %v729, %v828
      %v922 = vmul.f32 %v730, %v833
      %v923 = vmul.f32 %v731, %v838
      %v924 = vmul.f32 %v732, %v843
      %v925 = vmul.f32 %v733, %v848
      %v926 = vmul.f32 %v734, %v853
      %v927 = vmul.f32 %v735, %v858
      %v928 = vmul.f32 %v736, %v863
      %v929 = vmul.f32 %v737, %v868
      %v930 = vmul.f32 %v738, %v873
      %v931 = vmul.f32 %v739, %v878
      %v932 = vmul.f32 %v740, %v883
      %v933 = vmul.f32 %v741, %v888
      %v934 = vmul.f32 %v742, %v893
      %v935 = vmul.f32 %v743, %v898
      %v936 = vmul.f32 %v744, %v903
      %937 = vst [vmem:[#allocation2] sm:$0xff] 0.0
      %938 = vst [vmem:[#allocation2 + $0x8] sm:$0xff] 0.0
      %939 = vst [vmem:[#allocation2 + $0x10] sm:$0xff] 0.0
      %940 = vst [vmem:[#allocation2 + $0x118] sm:$0xff] 0.0
      %941 = vst [vmem:[#allocation2 + $0x120] sm:$0xff] 0.0
      %942 = vst [vmem:[#allocation2 + $0x128] sm:$0xff] 0.0
      %943 = vst [vmem:[#allocation2 + $0x18] sm:$0xff] %v905
      %944 = vst [vmem:[#allocation2 + $0x20] sm:$0xff] %v906
      %945 = vst [vmem:[#allocation2 + $0x28] sm:$0xff] %v907
      %946 = vst [vmem:[#allocation2 + $0x30] sm:$0xff] %v908
      %947 = vst [vmem:[#allocation2 + $0x38] sm:$0xff] %v909
      %948 = vst [vmem:[#allocation2 + $0x40] sm:$0xff] %v910
      %949 = vst [vmem:[#allocation2 + $0x48] sm:$0xff] %v911
      %950 = vst [vmem:[#allocation2 + $0x50] sm:$0xff] %v912
      %951 = vst [vmem:[#allocation2 + $0x58] sm:$0xff] %v913
      %952 = vst [vmem:[#allocation2 + $0x60] sm:$0xff] %v914
      %953 = vst [vmem:[#allocation2 + $0x68] sm:$0xff] %v915
      %954 = vst [vmem:[#allocation2 + $0x70] sm:$0xff] %v916
      %955 = vst [vmem:[#allocation2 + $0x78] sm:$0xff] %v917
      %956 = vst [vmem:[#allocation2 + $0x80] sm:$0xff] %v918
      %957 = vst [vmem:[#allocation2 + $0x88] sm:$0xff] %v919
      %958 = vst [vmem:[#allocation2 + $0x90] sm:$0xff] %v920
      %959 = vst [vmem:[#allocation2 + $0x98] sm:$0xff] %v921
      %960 = vst [vmem:[#allocation2 + $0xa0] sm:$0xff] %v922
      %961 = vst [vmem:[#allocation2 + $0xa8] sm:$0xff] %v923
      %962 = vst [vmem:[#allocation2 + $0xb0] sm:$0xff] %v924
      %963 = vst [vmem:[#allocation2 + $0xb8] sm:$0xff] %v925
      %964 = vst [vmem:[#allocation2 + $0xc0] sm:$0xff] %v926
      %965 = vst [vmem:[#allocation2 + $0xc8] sm:$0xff] %v927
      %966 = vst [vmem:[#allocation2 + $0xd0] sm:$0xff] %v928
      %967 = vst [vmem:[#allocation2 + $0xd8] sm:$0xff] %v929
      %968 = vst [vmem:[#allocation2 + $0xe0] sm:$0xff] %v930
      %969 = vst [vmem:[#allocation2 + $0xe8] sm:$0xff] %v931
      %970 = vst [vmem:[#allocation2 + $0xf0] sm:$0xff] %v932
      %971 = vst [vmem:[#allocation2 + $0xf8] sm:$0xff] %v933
      %972 = vst [vmem:[#allocation2 + $0x100] sm:$0xff] %v934
      %973 = vst [vmem:[#allocation2 + $0x108] sm:$0xff] %v935
      %974 = vst [vmem:[#allocation2 + $0x110] sm:$0xff] %v936
      %v975 = vld [vmem:[#allocation2 + $0x7] sm:$0xff]
      %v976 = vld [vmem:[#allocation2 + $0xf] sm:$0xff]
      %v977 = vld [vmem:[#allocation2 + $0x17] sm:$0xff]
      %v978 = vld [vmem:[#allocation2 + $0x1f] sm:$0xff]
      %v979 = vld [vmem:[#allocation2 + $0x27] sm:$0xff]
      %v980 = vld [vmem:[#allocation2 + $0x2f] sm:$0xff]
      %v981 = vld [vmem:[#allocation2 + $0x37] sm:$0xff]
      %v982 = vld [vmem:[#allocation2 + $0x3f] sm:$0xff]
      %v983 = vld [vmem:[#allocation2 + $0x47] sm:$0xff]
      %v984 = vld [vmem:[#allocation2 + $0x4f] sm:$0xff]
      %v985 = vld [vmem:[#allocation2 + $0x57] sm:$0xff]
      %v986 = vld [vmem:[#allocation2 + $0x5f] sm:$0xff]
      %v987 = vld [vmem:[#allocation2 + $0x67] sm:$0xff]
      %v988 = vld [vmem:[#allocation2 + $0x6f] sm:$0xff]
      %v989 = vld [vmem:[#allocation2 + $0x77] sm:$0xff]
      %v990 = vld [vmem:[#allocation2 + $0x7f] sm:$0xff]
      %v991 = vld [vmem:[#allocation2 + $0x87] sm:$0xff]
      %v992 = vld [vmem:[#allocation2 + $0x8f] sm:$0xff]
      %v993 = vld [vmem:[#allocation2 + $0x97] sm:$0xff]
      %v994 = vld [vmem:[#allocation2 + $0x9f] sm:$0xff]
      %v995 = vld [vmem:[#allocation2 + $0xa7] sm:$0xff]
      %v996 = vld [vmem:[#allocation2 + $0xaf] sm:$0xff]
      %v997 = vld [vmem:[#allocation2 + $0xb7] sm:$0xff]
      %v998 = vld [vmem:[#allocation2 + $0xbf] sm:$0xff]
      %v999 = vld [vmem:[#allocation2 + $0xc7] sm:$0xff]
      %v1000 = vld [vmem:[#allocation2 + $0xcf] sm:$0xff]
      %v1001 = vld [vmem:[#allocation2 + $0xd7] sm:$0xff]
      %v1002 = vld [vmem:[#allocation2 + $0xdf] sm:$0xff]
      %v1003 = vld [vmem:[#allocation2 + $0xe7] sm:$0xff]
      %v1004 = vld [vmem:[#allocation2 + $0xef] sm:$0xff]
      %v1005 = vld [vmem:[#allocation2 + $0xf7] sm:$0xff]
      %v1006 = vld [vmem:[#allocation2 + $0xff] sm:$0xff]
      %1007 = vst [vmem:[#allocation3] sm:$0xff] %v975
      %1008 = vst [vmem:[#allocation3 + $0x48] sm:$0xff] %v976
      %1009 = vst [vmem:[#allocation3 + $0x90] sm:$0xff] %v977
      %1010 = vst [vmem:[#allocation3 + $0xd8] sm:$0xff] %v978
      %1011 = vst [vmem:[#allocation3 + $0x120] sm:$0xff] %v979
      %1012 = vst [vmem:[#allocation3 + $0x168] sm:$0xff] %v980
      %1013 = vst [vmem:[#allocation3 + $0x1b0] sm:$0xff] %v981
      %1014 = vst [vmem:[#allocation3 + $0x1f8] sm:$0xff] %v982
      %1015 = vst [vmem:[#allocation3 + $0x240] sm:$0xff] %v983
      %1016 = vst [vmem:[#allocation3 + $0x288] sm:$0xff] %v984
      %1017 = vst [vmem:[#allocation3 + $0x2d0] sm:$0xff] %v985
      %1018 = vst [vmem:[#allocation3 + $0x318] sm:$0xff] %v986
      %1019 = vst [vmem:[#allocation3 + $0x360] sm:$0xff] %v987
      %1020 = vst [vmem:[#allocation3 + $0x3a8] sm:$0xff] %v988
      %1021 = vst [vmem:[#allocation3 + $0x3f0] sm:$0xff] %v989
      %1022 = vst [vmem:[#allocation3 + $0x438] sm:$0xff] %v990
      %1023 = vst [vmem:[#allocation3 + $0x480] sm:$0xff] %v991
      %1024 = vst [vmem:[#allocation3 + $0x4c8] sm:$0xff] %v992
      %1025 = vst [vmem:[#allocation3 + $0x510] sm:$0xff] %v993
      %1026 = vst [vmem:[#allocation3 + $0x558] sm:$0xff] %v994
      %1027 = vst [vmem:[#allocation3 + $0x5a0] sm:$0xff] %v995
      %1028 = vst [vmem:[#allocation3 + $0x5e8] sm:$0xff] %v996
      %1029 = vst [vmem:[#allocation3 + $0x630] sm:$0xff] %v997
      %1030 = vst [vmem:[#allocation3 + $0x678] sm:$0xff] %v998
      %1031 = vst [vmem:[#allocation3 + $0x6c0] sm:$0xff] %v999
      %1032 = vst [vmem:[#allocation3 + $0x708] sm:$0xff] %v1000
      %1033 = vst [vmem:[#allocation3 + $0x750] sm:$0xff] %v1001
      %1034 = vst [vmem:[#allocation3 + $0x798] sm:$0xff] %v1002
      %1035 = vst [vmem:[#allocation3 + $0x7e0] sm:$0xff] %v1003
      %1036 = vst [vmem:[#allocation3 + $0x828] sm:$0xff] %v1004
      %1037 = vst [vmem:[#allocation3 + $0x870] sm:$0xff] %v1005
      %1038 = vst [vmem:[#allocation3 + $0x8b8] sm:$0xff] %v1006
      %v1039 = vld [vmem:[#allocation2 + $0x8] sm:$0xff]
      %v1040 = vld [vmem:[#allocation2 + $0x10] sm:$0xff]
      %v1041 = vld [vmem:[#allocation2 + $0x18] sm:$0xff]
      %v1042 = vld [vmem:[#allocation2 + $0x20] sm:$0xff]
      %v1043 = vld [vmem:[#allocation2 + $0x28] sm:$0xff]
      %v1044 = vld [vmem:[#allocation2 + $0x30] sm:$0xff]
      %v1045 = vld [vmem:[#allocation2 + $0x38] sm:$0xff]
      %v1046 = vld [vmem:[#allocation2 + $0x40] sm:$0xff]
      %v1047 = vld [vmem:[#allocation2 + $0x48] sm:$0xff]
      %v1048 = vld [vmem:[#allocation2 + $0x50] sm:$0xff]
      %v1049 = vld [vmem:[#allocation2 + $0x58] sm:$0xff]
      %v1050 = vld [vmem:[#allocation2 + $0x60] sm:$0xff]
      %v1051 = vld [vmem:[#allocation2 + $0x68] sm:$0xff]
      %v1052 = vld [vmem:[#allocation2 + $0x70] sm:$0xff]
      %v1053 = vld [vmem:[#allocation2 + $0x78] sm:$0xff]
      %v1054 = vld [vmem:[#allocation2 + $0x80] sm:$0xff]
      %v1055 = vld [vmem:[#allocation2 + $0x88] sm:$0xff]
      %v1056 = vld [vmem:[#allocation2 + $0x90] sm:$0xff]
      %v1057 = vld [vmem:[#allocation2 + $0x98] sm:$0xff]
      %v1058 = vld [vmem:[#allocation2 + $0xa0] sm:$0xff]
      %v1059 = vld [vmem:[#allocation2 + $0xa8] sm:$0xff]
      %v1060 = vld [vmem:[#allocation2 + $0xb0] sm:$0xff]
      %v1061 = vld [vmem:[#allocation2 + $0xb8] sm:$0xff]
      %v1062 = vld [vmem:[#allocation2 + $0xc0] sm:$0xff]
      %v1063 = vld [vmem:[#allocation2 + $0xc8] sm:$0xff]
      %v1064 = vld [vmem:[#allocation2 + $0xd0] sm:$0xff]
      %v1065 = vld [vmem:[#allocation2 + $0xd8] sm:$0xff]
      %v1066 = vld [vmem:[#allocation2 + $0xe0] sm:$0xff]
      %v1067 = vld [vmem:[#allocation2 + $0xe8] sm:$0xff]
      %v1068 = vld [vmem:[#allocation2 + $0xf0] sm:$0xff]
      %v1069 = vld [vmem:[#allocation2 + $0xf8] sm:$0xff]
      %v1070 = vld [vmem:[#allocation2 + $0x100] sm:$0xff]
      %1071 = vst [vmem:[#allocation3 + $0x8] sm:$0xff] %v1039
      %1072 = vst [vmem:[#allocation3 + $0x50] sm:$0xff] %v1040
      %1073 = vst [vmem:[#allocation3 + $0x98] sm:$0xff] %v1041
      %1074 = vst [vmem:[#allocation3 + $0xe0] sm:$0xff] %v1042
      %1075 = vst [vmem:[#allocation3 + $0x128] sm:$0xff] %v1043
      %1076 = vst [vmem:[#allocation3 + $0x170] sm:$0xff] %v1044
      %1077 = vst [vmem:[#allocation3 + $0x1b8] sm:$0xff] %v1045
      %1078 = vst [vmem:[#allocation3 + $0x200] sm:$0xff] %v1046
      %1079 = vst [vmem:[#allocation3 + $0x248] sm:$0xff] %v1047
      %1080 = vst [vmem:[#allocation3 + $0x290] sm:$0xff] %v1048
      %1081 = vst [vmem:[#allocation3 + $0x2d8] sm:$0xff] %v1049
      %1082 = vst [vmem:[#allocation3 + $0x320] sm:$0xff] %v1050
      %1083 = vst [vmem:[#allocation3 + $0x368] sm:$0xff] %v1051
      %1084 = vst [vmem:[#allocation3 + $0x3b0] sm:$0xff] %v1052
      %1085 = vst [vmem:[#allocation3 + $0x3f8] sm:$0xff] %v1053
      %1086 = vst [vmem:[#allocation3 + $0x440] sm:$0xff] %v1054
      %1087 = vst [vmem:[#allocation3 + $0x488] sm:$0xff] %v1055
      %1088 = vst [vmem:[#allocation3 + $0x4d0] sm:$0xff] %v1056
      %1089 = vst [vmem:[#allocation3 + $0x518] sm:$0xff] %v1057
      %1090 = vst [vmem:[#allocation3 + $0x560] sm:$0xff] %v1058
      %1091 = vst [vmem:[#allocation3 + $0x5a8] sm:$0xff] %v1059
      %1092 = vst [vmem:[#allocation3 + $0x5f0] sm:$0xff] %v1060
      %1093 = vst [vmem:[#allocation3 + $0x638] sm:$0xff] %v1061
      %1094 = vst [vmem:[#allocation3 + $0x680] sm:$0xff] %v1062
      %1095 = vst [vmem:[#allocation3 + $0x6c8] sm:$0xff] %v1063
      %1096 = vst [vmem:[#allocation3 + $0x710] sm:$0xff] %v1064
      %1097 = vst [vmem:[#allocation3 + $0x758] sm:$0xff] %v1065
      %1098 = vst [vmem:[#allocation3 + $0x7a0] sm:$0xff] %v1066
      %1099 = vst [vmem:[#allocation3 + $0x7e8] sm:$0xff] %v1067
      %1100 = vst [vmem:[#allocation3 + $0x830] sm:$0xff] %v1068
      %1101 = vst [vmem:[#allocation3 + $0x878] sm:$0xff] %v1069
      %1102 = vst [vmem:[#allocation3 + $0x8c0] sm:$0xff] %v1070
      %v1103 = vld [vmem:[#allocation2 + $0x9] sm:$0xff]
      %v1104 = vld [vmem:[#allocation2 + $0x11] sm:$0xff]
      %v1105 = vld [vmem:[#allocation2 + $0x19] sm:$0xff]
      %v1106 = vld [vmem:[#allocation2 + $0x21] sm:$0xff]
      %v1107 = vld [vmem:[#allocation2 + $0x29] sm:$0xff]
      %v1108 = vld [vmem:[#allocation2 + $0x31] sm:$0xff]
      %v1109 = vld [vmem:[#allocation2 + $0x39] sm:$0xff]
      %v1110 = vld [vmem:[#allocation2 + $0x41] sm:$0xff]
      %v1111 = vld [vmem:[#allocation2 + $0x49] sm:$0xff]
      %v1112 = vld [vmem:[#allocation2 + $0x51] sm:$0xff]
      %v1113 = vld [vmem:[#allocation2 + $0x59] sm:$0xff]
      %v1114 = vld [vmem:[#allocation2 + $0x61] sm:$0xff]
      %v1115 = vld [vmem:[#allocation2 + $0x69] sm:$0xff]
      %v1116 = vld [vmem:[#allocation2 + $0x71] sm:$0xff]
      %v1117 = vld [vmem:[#allocation2 + $0x79] sm:$0xff]
      %v1118 = vld [vmem:[#allocation2 + $0x81] sm:$0xff]
      %v1119 = vld [vmem:[#allocation2 + $0x89] sm:$0xff]
      %v1120 = vld [vmem:[#allocation2 + $0x91] sm:$0xff]
      %v1121 = vld [vmem:[#allocation2 + $0x99] sm:$0xff]
      %v1122 = vld [vmem:[#allocation2 + $0xa1] sm:$0xff]
      %v1123 = vld [vmem:[#allocation2 + $0xa9] sm:$0xff]
      %v1124 = vld [vmem:[#allocation2 + $0xb1] sm:$0xff]
      %v1125 = vld [vmem:[#allocation2 + $0xb9] sm:$0xff]
      %v1126 = vld [vmem:[#allocation2 + $0xc1] sm:$0xff]
      %v1127 = vld [vmem:[#allocation2 + $0xc9] sm:$0xff]
      %v1128 = vld [vmem:[#allocation2 + $0xd1] sm:$0xff]
      %v1129 = vld [vmem:[#allocation2 + $0xd9] sm:$0xff]
      %v1130 = vld [vmem:[#allocation2 + $0xe1] sm:$0xff]
      %v1131 = vld [vmem:[#allocation2 + $0xe9] sm:$0xff]
      %v1132 = vld [vmem:[#allocation2 + $0xf1] sm:$0xff]
      %v1133 = vld [vmem:[#allocation2 + $0xf9] sm:$0xff]
      %v1134 = vld [vmem:[#allocation2 + $0x101] sm:$0xff]
      %1135 = vst [vmem:[#allocation3 + $0x10] sm:$0xff] %v1103
      %1136 = vst [vmem:[#allocation3 + $0x58] sm:$0xff] %v1104
      %1137 = vst [vmem:[#allocation3 + $0xa0] sm:$0xff] %v1105
      %1138 = vst [vmem:[#allocation3 + $0xe8] sm:$0xff] %v1106
      %1139 = vst [vmem:[#allocation3 + $0x130] sm:$0xff] %v1107
      %1140 = vst [vmem:[#allocation3 + $0x178] sm:$0xff] %v1108
      %1141 = vst [vmem:[#allocation3 + $0x1c0] sm:$0xff] %v1109
      %1142 = vst [vmem:[#allocation3 + $0x208] sm:$0xff] %v1110
      %1143 = vst [vmem:[#allocation3 + $0x250] sm:$0xff] %v1111
      %1144 = vst [vmem:[#allocation3 + $0x298] sm:$0xff] %v1112
      %1145 = vst [vmem:[#allocation3 + $0x2e0] sm:$0xff] %v1113
      %1146 = vst [vmem:[#allocation3 + $0x328] sm:$0xff] %v1114
      %1147 = vst [vmem:[#allocation3 + $0x370] sm:$0xff] %v1115
      %1148 = vst [vmem:[#allocation3 + $0x3b8] sm:$0xff] %v1116
      %1149 = vst [vmem:[#allocation3 + $0x400] sm:$0xff] %v1117
      %1150 = vst [vmem:[#allocation3 + $0x448] sm:$0xff] %v1118
      %1151 = vst [vmem:[#allocation3 + $0x490] sm:$0xff] %v1119
      %1152 = vst [vmem:[#allocation3 + $0x4d8] sm:$0xff] %v1120
      %1153 = vst [vmem:[#allocation3 + $0x520] sm:$0xff] %v1121
      %1154 = vst [vmem:[#allocation3 + $0x568] sm:$0xff] %v1122
      %1155 = vst [vmem:[#allocation3 + $0x5b0] sm:$0xff] %v1123
      %1156 = vst [vmem:[#allocation3 + $0x5f8] sm:$0xff] %v1124
      %1157 = vst [vmem:[#allocation3 + $0x640] sm:$0xff] %v1125
      %1158 = vst [vmem:[#allocation3 + $0x688] sm:$0xff] %v1126
      %1159 = vst [vmem:[#allocation3 + $0x6d0] sm:$0xff] %v1127
      %1160 = vst [vmem:[#allocation3 + $0x718] sm:$0xff] %v1128
      %1161 = vst [vmem:[#allocation3 + $0x760] sm:$0xff] %v1129
      %1162 = vst [vmem:[#allocation3 + $0x7a8] sm:$0xff] %v1130
      %1163 = vst [vmem:[#allocation3 + $0x7f0] sm:$0xff] %v1131
      %1164 = vst [vmem:[#allocation3 + $0x838] sm:$0xff] %v1132
      %1165 = vst [vmem:[#allocation3 + $0x880] sm:$0xff] %v1133
      %1166 = vst [vmem:[#allocation3 + $0x8c8] sm:$0xff] %v1134
      %v1167 = vld [vmem:[#allocation2 + $0x17] sm:$0xff]
      %v1168 = vld [vmem:[#allocation2 + $0x1f] sm:$0xff]
      %v1169 = vld [vmem:[#allocation2 + $0x27] sm:$0xff]
      %v1170 = vld [vmem:[#allocation2 + $0x2f] sm:$0xff]
      %v1171 = vld [vmem:[#allocation2 + $0x37] sm:$0xff]
      %v1172 = vld [vmem:[#allocation2 + $0x3f] sm:$0xff]
      %v1173 = vld [vmem:[#allocation2 + $0x47] sm:$0xff]
      %v1174 = vld [vmem:[#allocation2 + $0x4f] sm:$0xff]
      %v1175 = vld [vmem:[#allocation2 + $0x57] sm:$0xff]
      %v1176 = vld [vmem:[#allocation2 + $0x5f] sm:$0xff]
      %v1177 = vld [vmem:[#allocation2 + $0x67] sm:$0xff]
      %v1178 = vld [vmem:[#allocation2 + $0x6f] sm:$0xff]
      %v1179 = vld [vmem:[#allocation2 + $0x77] sm:$0xff]
      %v1180 = vld [vmem:[#allocation2 + $0x7f] sm:$0xff]
      %v1181 = vld [vmem:[#allocation2 + $0x87] sm:$0xff]
      %v1182 = vld [vmem:[#allocation2 + $0x8f] sm:$0xff]
      %v1183 = vld [vmem:[#allocation2 + $0x97] sm:$0xff]
      %v1184 = vld [vmem:[#allocation2 + $0x9f] sm:$0xff]
      %v1185 = vld [vmem:[#allocation2 + $0xa7] sm:$0xff]
      %v1186 = vld [vmem:[#allocation2 + $0xaf] sm:$0xff]
      %v1187 = vld [vmem:[#allocation2 + $0xb7] sm:$0xff]
      %v1188 = vld [vmem:[#allocation2 + $0xbf] sm:$0xff]
      %v1189 = vld [vmem:[#allocation2 + $0xc7] sm:$0xff]
      %v1190 = vld [vmem:[#allocation2 + $0xcf] sm:$0xff]
      %v1191 = vld [vmem:[#allocation2 + $0xd7] sm:$0xff]
      %v1192 = vld [vmem:[#allocation2 + $0xdf] sm:$0xff]
      %v1193 = vld [vmem:[#allocation2 + $0xe7] sm:$0xff]
      %v1194 = vld [vmem:[#allocation2 + $0xef] sm:$0xff]
      %v1195 = vld [vmem:[#allocation2 + $0xf7] sm:$0xff]
      %v1196 = vld [vmem:[#allocation2 + $0xff] sm:$0xff]
      %v1197 = vld [vmem:[#allocation2 + $0x107] sm:$0xff]
      %v1198 = vld [vmem:[#allocation2 + $0x10f] sm:$0xff]
      %1199 = vst [vmem:[#allocation3 + $0x18] sm:$0xff] %v1167
      %1200 = vst [vmem:[#allocation3 + $0x60] sm:$0xff] %v1168
      %1201 = vst [vmem:[#allocation3 + $0xa8] sm:$0xff] %v1169
      %1202 = vst [vmem:[#allocation3 + $0xf0] sm:$0xff] %v1170
      %1203 = vst [vmem:[#allocation3 + $0x138] sm:$0xff] %v1171
      %1204 = vst [vmem:[#allocation3 + $0x180] sm:$0xff] %v1172
      %1205 = vst [vmem:[#allocation3 + $0x1c8] sm:$0xff] %v1173
      %1206 = vst [vmem:[#allocation3 + $0x210] sm:$0xff] %v1174
      %1207 = vst [vmem:[#allocation3 + $0x258] sm:$0xff] %v1175
      %1208 = vst [vmem:[#allocation3 + $0x2a0] sm:$0xff] %v1176
      %1209 = vst [vmem:[#allocation3 + $0x2e8] sm:$0xff] %v1177
      %1210 = vst [vmem:[#allocation3 + $0x330] sm:$0xff] %v1178
      %1211 = vst [vmem:[#allocation3 + $0x378] sm:$0xff] %v1179
      %1212 = vst [vmem:[#allocation3 + $0x3c0] sm:$0xff] %v1180
      %1213 = vst [vmem:[#allocation3 + $0x408] sm:$0xff] %v1181
      %1214 = vst [vmem:[#allocation3 + $0x450] sm:$0xff] %v1182
      %1215 = vst [vmem:[#allocation3 + $0x498] sm:$0xff] %v1183
      %1216 = vst [vmem:[#allocation3 + $0x4e0] sm:$0xff] %v1184
      %1217 = vst [vmem:[#allocation3 + $0x528] sm:$0xff] %v1185
      %1218 = vst [vmem:[#allocation3 + $0x570] sm:$0xff] %v1186
      %1219 = vst [vmem:[#allocation3 + $0x5b8] sm:$0xff] %v1187
      %1220 = vst [vmem:[#allocation3 + $0x600] sm:$0xff] %v1188
      %1221 = vst [vmem:[#allocation3 + $0x648] sm:$0xff] %v1189
      %1222 = vst [vmem:[#allocation3 + $0x690] sm:$0xff] %v1190
      %1223 = vst [vmem:[#allocation3 + $0x6d8] sm:$0xff] %v1191
      %1224 = vst [vmem:[#allocation3 + $0x720] sm:$0xff] %v1192
      %1225 = vst [vmem:[#allocation3 + $0x768] sm:$0xff] %v1193
      %1226 = vst [vmem:[#allocation3 + $0x7b0] sm:$0xff] %v1194
      %1227 = vst [vmem:[#allocation3 + $0x7f8] sm:$0xff] %v1195
      %1228 = vst [vmem:[#allocation3 + $0x840] sm:$0xff] %v1196
      %1229 = vst [vmem:[#allocation3 + $0x888] sm:$0xff] %v1197
      %1230 = vst [vmem:[#allocation3 + $0x8d0] sm:$0xff] %v1198
      %v1231 = vld [vmem:[#allocation2 + $0x18] sm:$0xff]
      %v1232 = vld [vmem:[#allocation2 + $0x20] sm:$0xff]
      %v1233 = vld [vmem:[#allocation2 + $0x28] sm:$0xff]
      %v1234 = vld [vmem:[#allocation2 + $0x30] sm:$0xff]
      %v1235 = vld [vmem:[#allocation2 + $0x38] sm:$0xff]
      %v1236 = vld [vmem:[#allocation2 + $0x40] sm:$0xff]
      %v1237 = vld [vmem:[#allocation2 + $0x48] sm:$0xff]
      %v1238 = vld [vmem:[#allocation2 + $0x50] sm:$0xff]
      %v1239 = vld [vmem:[#allocation2 + $0x58] sm:$0xff]
      %v1240 = vld [vmem:[#allocation2 + $0x60] sm:$0xff]
      %v1241 = vld [vmem:[#allocation2 + $0x68] sm:$0xff]
      %v1242 = vld [vmem:[#allocation2 + $0x70] sm:$0xff]
      %v1243 = vld [vmem:[#allocation2 + $0x78] sm:$0xff]
      %v1244 = vld [vmem:[#allocation2 + $0x80] sm:$0xff]
      %v1245 = vld [vmem:[#allocation2 + $0x88] sm:$0xff]
      %v1246 = vld [vmem:[#allocation2 + $0x90] sm:$0xff]
      %v1247 = vld [vmem:[#allocation2 + $0x98] sm:$0xff]
      %v1248 = vld [vmem:[#allocation2 + $0xa0] sm:$0xff]
      %v1249 = vld [vmem:[#allocation2 + $0xa8] sm:$0xff]
      %v1250 = vld [vmem:[#allocation2 + $0xb0] sm:$0xff]
      %v1251 = vld [vmem:[#allocation2 + $0xb8] sm:$0xff]
      %v1252 = vld [vmem:[#allocation2 + $0xc0] sm:$0xff]
      %v1253 = vld [vmem:[#allocation2 + $0xc8] sm:$0xff]
      %v1254 = vld [vmem:[#allocation2 + $0xd0] sm:$0xff]
      %v1255 = vld [vmem:[#allocation2 + $0xd8] sm:$0xff]
      %v1256 = vld [vmem:[#allocation2 + $0xe0] sm:$0xff]
      %v1257 = vld [vmem:[#allocation2 + $0xe8] sm:$0xff]
      %v1258 = vld [vmem:[#allocation2 + $0xf0] sm:$0xff]
      %v1259 = vld [vmem:[#allocation2 + $0xf8] sm:$0xff]
      %v1260 = vld [vmem:[#allocation2 + $0x100] sm:$0xff]
      %v1261 = vld [vmem:[#allocation2 + $0x108] sm:$0xff]
      %v1262 = vld [vmem:[#allocation2 + $0x110] sm:$0xff]
      %1263 = vst [vmem:[#allocation3 + $0x20] sm:$0xff] %v1231
      %1264 = vst [vmem:[#allocation3 + $0x68] sm:$0xff] %v1232
      %1265 = vst [vmem:[#allocation3 + $0xb0] sm:$0xff] %v1233
      %1266 = vst [vmem:[#allocation3 + $0xf8] sm:$0xff] %v1234
      %1267 = vst [vmem:[#allocation3 + $0x140] sm:$0xff] %v1235
      %1268 = vst [vmem:[#allocation3 + $0x188] sm:$0xff] %v1236
      %1269 = vst [vmem:[#allocation3 + $0x1d0] sm:$0xff] %v1237
      %1270 = vst [vmem:[#allocation3 + $0x218] sm:$0xff] %v1238
      %1271 = vst [vmem:[#allocation3 + $0x260] sm:$0xff] %v1239
      %1272 = vst [vmem:[#allocation3 + $0x2a8] sm:$0xff] %v1240
      %1273 = vst [vmem:[#allocation3 + $0x2f0] sm:$0xff] %v1241
      %1274 = vst [vmem:[#allocation3 + $0x338] sm:$0xff] %v1242
      %1275 = vst [vmem:[#allocation3 + $0x380] sm:$0xff] %v1243
      %1276 = vst [vmem:[#allocation3 + $0x3c8] sm:$0xff] %v1244
      %1277 = vst [vmem:[#allocation3 + $0x410] sm:$0xff] %v1245
      %1278 = vst [vmem:[#allocation3 + $0x458] sm:$0xff] %v1246
      %1279 = vst [vmem:[#allocation3 + $0x4a0] sm:$0xff] %v1247
      %1280 = vst [vmem:[#allocation3 + $0x4e8] sm:$0xff] %v1248
      %1281 = vst [vmem:[#allocation3 + $0x530] sm:$0xff] %v1249
      %1282 = vst [vmem:[#allocation3 + $0x578] sm:$0xff] %v1250
      %1283 = vst [vmem:[#allocation3 + $0x5c0] sm:$0xff] %v1251
      %1284 = vst [vmem:[#allocation3 + $0x608] sm:$0xff] %v1252
      %1285 = vst [vmem:[#allocation3 + $0x650] sm:$0xff] %v1253
      %1286 = vst [vmem:[#allocation3 + $0x698] sm:$0xff] %v1254
      %1287 = vst [vmem:[#allocation3 + $0x6e0] sm:$0xff] %v1255
      %1288 = vst [vmem:[#allocation3 + $0x728] sm:$0xff] %v1256
      %1289 = vst [vmem:[#allocation3 + $0x770] sm:$0xff] %v1257
      %1290 = vst [vmem:[#allocation3 + $0x7b8] sm:$0xff] %v1258
      %1291 = vst [vmem:[#allocation3 + $0x800] sm:$0xff] %v1259
      %1292 = vst [vmem:[#allocation3 + $0x848] sm:$0xff] %v1260
      %1293 = vst [vmem:[#allocation3 + $0x890] sm:$0xff] %v1261
      %1294 = vst [vmem:[#allocation3 + $0x8d8] sm:$0xff] %v1262
      %v1295 = vld [vmem:[#allocation2 + $0x19] sm:$0xff]
      %v1296 = vld [vmem:[#allocation2 + $0x21] sm:$0xff]
      %v1297 = vld [vmem:[#allocation2 + $0x29] sm:$0xff]
      %v1298 = vld [vmem:[#allocation2 + $0x31] sm:$0xff]
      %v1299 = vld [vmem:[#allocation2 + $0x39] sm:$0xff]
      %v1300 = vld [vmem:[#allocation2 + $0x41] sm:$0xff]
      %v1301 = vld [vmem:[#allocation2 + $0x49] sm:$0xff]
      %v1302 = vld [vmem:[#allocation2 + $0x51] sm:$0xff]
      %v1303 = vld [vmem:[#allocation2 + $0x59] sm:$0xff]
      %v1304 = vld [vmem:[#allocation2 + $0x61] sm:$0xff]
      %v1305 = vld [vmem:[#allocation2 + $0x69] sm:$0xff]
      %v1306 = vld [vmem:[#allocation2 + $0x71] sm:$0xff]
      %v1307 = vld [vmem:[#allocation2 + $0x79] sm:$0xff]
      %v1308 = vld [vmem:[#allocation2 + $0x81] sm:$0xff]
      %v1309 = vld [vmem:[#allocation2 + $0x89] sm:$0xff]
      %v1310 = vld [vmem:[#allocation2 + $0x91] sm:$0xff]
      %v1311 = vld [vmem:[#allocation2 + $0x99] sm:$0xff]
      %v1312 = vld [vmem:[#allocation2 + $0xa1] sm:$0xff]
      %v1313 = vld [vmem:[#allocation2 + $0xa9] sm:$0xff]
      %v1314 = vld [vmem:[#allocation2 + $0xb1] sm:$0xff]
      %v1315 = vld [vmem:[#allocation2 + $0xb9] sm:$0xff]
      %v1316 = vld [vmem:[#allocation2 + $0xc1] sm:$0xff]
      %v1317 = vld [vmem:[#allocation2 + $0xc9] sm:$0xff]
      %v1318 = vld [vmem:[#allocation2 + $0xd1] sm:$0xff]
      %v1319 = vld [vmem:[#allocation2 + $0xd9] sm:$0xff]
      %v1320 = vld [vmem:[#allocation2 + $0xe1] sm:$0xff]
      %v1321 = vld [vmem:[#allocation2 + $0xe9] sm:$0xff]
      %v1322 = vld [vmem:[#allocation2 + $0xf1] sm:$0xff]
      %v1323 = vld [vmem:[#allocation2 + $0xf9] sm:$0xff]
      %v1324 = vld [vmem:[#allocation2 + $0x101] sm:$0xff]
      %v1325 = vld [vmem:[#allocation2 + $0x109] sm:$0xff]
      %v1326 = vld [vmem:[#allocation2 + $0x111] sm:$0xff]
      %1327 = vst [vmem:[#allocation3 + $0x28] sm:$0xff] %v1295
      %1328 = vst [vmem:[#allocation3 + $0x70] sm:$0xff] %v1296
      %1329 = vst [vmem:[#allocation3 + $0xb8] sm:$0xff] %v1297
      %1330 = vst [vmem:[#allocation3 + $0x100] sm:$0xff] %v1298
      %1331 = vst [vmem:[#allocation3 + $0x148] sm:$0xff] %v1299
      %1332 = vst [vmem:[#allocation3 + $0x190] sm:$0xff] %v1300
      %1333 = vst [vmem:[#allocation3 + $0x1d8] sm:$0xff] %v1301
      %1334 = vst [vmem:[#allocation3 + $0x220] sm:$0xff] %v1302
      %1335 = vst [vmem:[#allocation3 + $0x268] sm:$0xff] %v1303
      %1336 = vst [vmem:[#allocation3 + $0x2b0] sm:$0xff] %v1304
      %1337 = vst [vmem:[#allocation3 + $0x2f8] sm:$0xff] %v1305
      %1338 = vst [vmem:[#allocation3 + $0x340] sm:$0xff] %v1306
      %1339 = vst [vmem:[#allocation3 + $0x388] sm:$0xff] %v1307
      %1340 = vst [vmem:[#allocation3 + $0x3d0] sm:$0xff] %v1308
      %1341 = vst [vmem:[#allocation3 + $0x418] sm:$0xff] %v1309
      %1342 = vst [vmem:[#allocation3 + $0x460] sm:$0xff] %v1310
      %1343 = vst [vmem:[#allocation3 + $0x4a8] sm:$0xff] %v1311
      %1344 = vst [vmem:[#allocation3 + $0x4f0] sm:$0xff] %v1312
      %1345 = vst [vmem:[#allocation3 + $0x538] sm:$0xff] %v1313
      %1346 = vst [vmem:[#allocation3 + $0x580] sm:$0xff] %v1314
      %1347 = vst [vmem:[#allocation3 + $0x5c8] sm:$0xff] %v1315
      %1348 = vst [vmem:[#allocation3 + $0x610] sm:$0xff] %v1316
      %1349 = vst [vmem:[#allocation3 + $0x658] sm:$0xff] %v1317
      %1350 = vst [vmem:[#allocation3 + $0x6a0] sm:$0xff] %v1318
      %1351 = vst [vmem:[#allocation3 + $0x6e8] sm:$0xff] %v1319
      %1352 = vst [vmem:[#allocation3 + $0x730] sm:$0xff] %v1320
      %1353 = vst [vmem:[#allocation3 + $0x778] sm:$0xff] %v1321
      %1354 = vst [vmem:[#allocation3 + $0x7c0] sm:$0xff] %v1322
      %1355 = vst [vmem:[#allocation3 + $0x808] sm:$0xff] %v1323
      %1356 = vst [vmem:[#allocation3 + $0x850] sm:$0xff] %v1324
      %1357 = vst [vmem:[#allocation3 + $0x898] sm:$0xff] %v1325
      %1358 = vst [vmem:[#allocation3 + $0x8e0] sm:$0xff] %v1326
      %v1359 = vld [vmem:[#allocation2 + $0x27] sm:$0xff]
      %v1360 = vld [vmem:[#allocation2 + $0x2f] sm:$0xff]
      %v1361 = vld [vmem:[#allocation2 + $0x37] sm:$0xff]
      %v1362 = vld [vmem:[#allocation2 + $0x3f] sm:$0xff]
      %v1363 = vld [vmem:[#allocation2 + $0x47] sm:$0xff]
      %v1364 = vld [vmem:[#allocation2 + $0x4f] sm:$0xff]
      %v1365 = vld [vmem:[#allocation2 + $0x57] sm:$0xff]
      %v1366 = vld [vmem:[#allocation2 + $0x5f] sm:$0xff]
      %v1367 = vld [vmem:[#allocation2 + $0x67] sm:$0xff]
      %v1368 = vld [vmem:[#allocation2 + $0x6f] sm:$0xff]
      %v1369 = vld [vmem:[#allocation2 + $0x77] sm:$0xff]
      %v1370 = vld [vmem:[#allocation2 + $0x7f] sm:$0xff]
      %v1371 = vld [vmem:[#allocation2 + $0x87] sm:$0xff]
      %v1372 = vld [vmem:[#allocation2 + $0x8f] sm:$0xff]
      %v1373 = vld [vmem:[#allocation2 + $0x97] sm:$0xff]
      %v1374 = vld [vmem:[#allocation2 + $0x9f] sm:$0xff]
      %v1375 = vld [vmem:[#allocation2 + $0xa7] sm:$0xff]
      %v1376 = vld [vmem:[#allocation2 + $0xaf] sm:$0xff]
      %v1377 = vld [vmem:[#allocation2 + $0xb7] sm:$0xff]
      %v1378 = vld [vmem:[#allocation2 + $0xbf] sm:$0xff]
      %v1379 = vld [vmem:[#allocation2 + $0xc7] sm:$0xff]
      %v1380 = vld [vmem:[#allocation2 + $0xcf] sm:$0xff]
      %v1381 = vld [vmem:[#allocation2 + $0xd7] sm:$0xff]
      %v1382 = vld [vmem:[#allocation2 + $0xdf] sm:$0xff]
      %v1383 = vld [vmem:[#allocation2 + $0xe7] sm:$0xff]
      %v1384 = vld [vmem:[#allocation2 + $0xef] sm:$0xff]
      %v1385 = vld [vmem:[#allocation2 + $0xf7] sm:$0xff]
      %v1386 = vld [vmem:[#allocation2 + $0xff] sm:$0xff]
      %v1387 = vld [vmem:[#allocation2 + $0x107] sm:$0xff]
      %v1388 = vld [vmem:[#allocation2 + $0x10f] sm:$0xff]
      %v1389 = vld [vmem:[#allocation2 + $0x117] sm:$0xff]
      %v1390 = vld [vmem:[#allocation2 + $0x11f] sm:$0xff]
      %1391 = vst [vmem:[#allocation3 + $0x30] sm:$0xff] %v1359
      %1392 = vst [vmem:[#allocation3 + $0x78] sm:$0xff] %v1360
      %1393 = vst [vmem:[#allocation3 + $0xc0] sm:$0xff] %v1361
      %1394 = vst [vmem:[#allocation3 + $0x108] sm:$0xff] %v1362
      %1395 = vst [vmem:[#allocation3 + $0x150] sm:$0xff] %v1363
      %1396 = vst [vmem:[#allocation3 + $0x198] sm:$0xff] %v1364
      %1397 = vst [vmem:[#allocation3 + $0x1e0] sm:$0xff] %v1365
      %1398 = vst [vmem:[#allocation3 + $0x228] sm:$0xff] %v1366
      %1399 = vst [vmem:[#allocation3 + $0x270] sm:$0xff] %v1367
      %1400 = vst [vmem:[#allocation3 + $0x2b8] sm:$0xff] %v1368
      %1401 = vst [vmem:[#allocation3 + $0x300] sm:$0xff] %v1369
      %1402 = vst [vmem:[#allocation3 + $0x348] sm:$0xff] %v1370
      %1403 = vst [vmem:[#allocation3 + $0x390] sm:$0xff] %v1371
      %1404 = vst [vmem:[#allocation3 + $0x3d8] sm:$0xff] %v1372
      %1405 = vst [vmem:[#allocation3 + $0x420] sm:$0xff] %v1373
      %1406 = vst [vmem:[#allocation3 + $0x468] sm:$0xff] %v1374
      %1407 = vst [vmem:[#allocation3 + $0x4b0] sm:$0xff] %v1375
      %1408 = vst [vmem:[#allocation3 + $0x4f8] sm:$0xff] %v1376
      %1409 = vst [vmem:[#allocation3 + $0x540] sm:$0xff] %v1377
      %1410 = vst [vmem:[#allocation3 + $0x588] sm:$0xff] %v1378
      %1411 = vst [vmem:[#allocation3 + $0x5d0] sm:$0xff] %v1379
      %1412 = vst [vmem:[#allocation3 + $0x618] sm:$0xff] %v1380
      %1413 = vst [vmem:[#allocation3 + $0x660] sm:$0xff] %v1381
      %1414 = vst [vmem:[#allocation3 + $0x6a8] sm:$0xff] %v1382
      %1415 = vst [vmem:[#allocation3 + $0x6f0] sm:$0xff] %v1383
      %1416 = vst [vmem:[#allocation3 + $0x738] sm:$0xff] %v1384
      %1417 = vst [vmem:[#allocation3 + $0x780] sm:$0xff] %v1385
      %1418 = vst [vmem:[#allocation3 + $0x7c8] sm:$0xff] %v1386
      %1419 = vst [vmem:[#allocation3 + $0x810] sm:$0xff] %v1387
      %1420 = vst [vmem:[#allocation3 + $0x858] sm:$0xff] %v1388
      %1421 = vst [vmem:[#allocation3 + $0x8a0] sm:$0xff] %v1389
      %1422 = vst [vmem:[#allocation3 + $0x8e8] sm:$0xff] %v1390
      %v1423 = vld [vmem:[#allocation2 + $0x28] sm:$0xff]
      %v1424 = vld [vmem:[#allocation2 + $0x30] sm:$0xff]
      %v1425 = vld [vmem:[#allocation2 + $0x38] sm:$0xff]
      %v1426 = vld [vmem:[#allocation2 + $0x40] sm:$0xff]
      %v1427 = vld [vmem:[#allocation2 + $0x48] sm:$0xff]
      %v1428 = vld [vmem:[#allocation2 + $0x50] sm:$0xff]
      %v1429 = vld [vmem:[#allocation2 + $0x58] sm:$0xff]
      %v1430 = vld [vmem:[#allocation2 + $0x60] sm:$0xff]
      %v1431 = vld [vmem:[#allocation2 + $0x68] sm:$0xff]
      %v1432 = vld [vmem:[#allocation2 + $0x70] sm:$0xff]
      %v1433 = vld [vmem:[#allocation2 + $0x78] sm:$0xff]
      %v1434 = vld [vmem:[#allocation2 + $0x80] sm:$0xff]
      %v1435 = vld [vmem:[#allocation2 + $0x88] sm:$0xff]
      %v1436 = vld [vmem:[#allocation2 + $0x90] sm:$0xff]
      %v1437 = vld [vmem:[#allocation2 + $0x98] sm:$0xff]
      %v1438 = vld [vmem:[#allocation2 + $0xa0] sm:$0xff]
      %v1439 = vld [vmem:[#allocation2 + $0xa8] sm:$0xff]
      %v1440 = vld [vmem:[#allocation2 + $0xb0] sm:$0xff]
      %v1441 = vld [vmem:[#allocation2 + $0xb8] sm:$0xff]
      %v1442 = vld [vmem:[#allocation2 + $0xc0] sm:$0xff]
      %v1443 = vld [vmem:[#allocation2 + $0xc8] sm:$0xff]
      %v1444 = vld [vmem:[#allocation2 + $0xd0] sm:$0xff]
      %v1445 = vld [vmem:[#allocation2 + $0xd8] sm:$0xff]
      %v1446 = vld [vmem:[#allocation2 + $0xe0] sm:$0xff]
      %v1447 = vld [vmem:[#allocation2 + $0xe8] sm:$0xff]
      %v1448 = vld [vmem:[#allocation2 + $0xf0] sm:$0xff]
      %v1449 = vld [vmem:[#allocation2 + $0xf8] sm:$0xff]
      %v1450 = vld [vmem:[#allocation2 + $0x100] sm:$0xff]
      %v1451 = vld [vmem:[#allocation2 + $0x108] sm:$0xff]
      %v1452 = vld [vmem:[#allocation2 + $0x110] sm:$0xff]
      %v1453 = vld [vmem:[#allocation2 + $0x118] sm:$0xff]
      %v1454 = vld [vmem:[#allocation2 + $0x120] sm:$0xff]
      %1455 = vst [vmem:[#allocation3 + $0x38] sm:$0xff] %v1423
      %1456 = vst [vmem:[#allocation3 + $0x80] sm:$0xff] %v1424
      %1457 = vst [vmem:[#allocation3 + $0xc8] sm:$0xff] %v1425
      %1458 = vst [vmem:[#allocation3 + $0x110] sm:$0xff] %v1426
      %1459 = vst [vmem:[#allocation3 + $0x158] sm:$0xff] %v1427
      %1460 = vst [vmem:[#allocation3 + $0x1a0] sm:$0xff] %v1428
      %1461 = vst [vmem:[#allocation3 + $0x1e8] sm:$0xff] %v1429
      %1462 = vst [vmem:[#allocation3 + $0x230] sm:$0xff] %v1430
      %1463 = vst [vmem:[#allocation3 + $0x278] sm:$0xff] %v1431
      %1464 = vst [vmem:[#allocation3 + $0x2c0] sm:$0xff] %v1432
      %1465 = vst [vmem:[#allocation3 + $0x308] sm:$0xff] %v1433
      %1466 = vst [vmem:[#allocation3 + $0x350] sm:$0xff] %v1434
      %1467 = vst [vmem:[#allocation3 + $0x398] sm:$0xff] %v1435
      %1468 = vst [vmem:[#allocation3 + $0x3e0] sm:$0xff] %v1436
      %1469 = vst [vmem:[#allocation3 + $0x428] sm:$0xff] %v1437
      %1470 = vst [vmem:[#allocation3 + $0x470] sm:$0xff] %v1438
      %1471 = vst [vmem:[#allocation3 + $0x4b8] sm:$0xff] %v1439
      %1472 = vst [vmem:[#allocation3 + $0x500] sm:$0xff] %v1440
      %1473 = vst [vmem:[#allocation3 + $0x548] sm:$0xff] %v1441
      %1474 = vst [vmem:[#allocation3 + $0x590] sm:$0xff] %v1442
      %1475 = vst [vmem:[#allocation3 + $0x5d8] sm:$0xff] %v1443
      %1476 = vst [vmem:[#allocation3 + $0x620] sm:$0xff] %v1444
      %1477 = vst [vmem:[#allocation3 + $0x668] sm:$0xff] %v1445
      %1478 = vst [vmem:[#allocation3 + $0x6b0] sm:$0xff] %v1446
      %1479 = vst [vmem:[#allocation3 + $0x6f8] sm:$0xff] %v1447
      %1480 = vst [vmem:[#allocation3 + $0x740] sm:$0xff] %v1448
      %1481 = vst [vmem:[#allocation3 + $0x788] sm:$0xff] %v1449
      %1482 = vst [vmem:[#allocation3 + $0x7d0] sm:$0xff] %v1450
      %1483 = vst [vmem:[#allocation3 + $0x818] sm:$0xff] %v1451
      %1484 = vst [vmem:[#allocation3 + $0x860] sm:$0xff] %v1452
      %1485 = vst [vmem:[#allocation3 + $0x8a8] sm:$0xff] %v1453
      %1486 = vst [vmem:[#allocation3 + $0x8f0] sm:$0xff] %v1454
      %v1487 = vld [vmem:[#allocation2 + $0x29] sm:$0xff]
      %v1488 = vld [vmem:[#allocation2 + $0x31] sm:$0xff]
      %v1489 = vld [vmem:[#allocation2 + $0x39] sm:$0xff]
      %v1490 = vld [vmem:[#allocation2 + $0x41] sm:$0xff]
      %v1491 = vld [vmem:[#allocation2 + $0x49] sm:$0xff]
      %v1492 = vld [vmem:[#allocation2 + $0x51] sm:$0xff]
      %v1493 = vld [vmem:[#allocation2 + $0x59] sm:$0xff]
      %v1494 = vld [vmem:[#allocation2 + $0x61] sm:$0xff]
      %v1495 = vld [vmem:[#allocation2 + $0x69] sm:$0xff]
      %v1496 = vld [vmem:[#allocation2 + $0x71] sm:$0xff]
      %v1497 = vld [vmem:[#allocation2 + $0x79] sm:$0xff]
      %v1498 = vld [vmem:[#allocation2 + $0x81] sm:$0xff]
      %v1499 = vld [vmem:[#allocation2 + $0x89] sm:$0xff]
      %v1500 = vld [vmem:[#allocation2 + $0x91] sm:$0xff]
      %v1501 = vld [vmem:[#allocation2 + $0x99] sm:$0xff]
      %v1502 = vld [vmem:[#allocation2 + $0xa1] sm:$0xff]
      %v1503 = vld [vmem:[#allocation2 + $0xa9] sm:$0xff]
      %v1504 = vld [vmem:[#allocation2 + $0xb1] sm:$0xff]
      %v1505 = vld [vmem:[#allocation2 + $0xb9] sm:$0xff]
      %v1506 = vld [vmem:[#allocation2 + $0xc1] sm:$0xff]
      %v1507 = vld [vmem:[#allocation2 + $0xc9] sm:$0xff]
      %v1508 = vld [vmem:[#allocation2 + $0xd1] sm:$0xff]
      %v1509 = vld [vmem:[#allocation2 + $0xd9] sm:$0xff]
      %v1510 = vld [vmem:[#allocation2 + $0xe1] sm:$0xff]
      %v1511 = vld [vmem:[#allocation2 + $0xe9] sm:$0xff]
      %v1512 = vld [vmem:[#allocation2 + $0xf1] sm:$0xff]
      %v1513 = vld [vmem:[#allocation2 + $0xf9] sm:$0xff]
      %v1514 = vld [vmem:[#allocation2 + $0x101] sm:$0xff]
      %v1515 = vld [vmem:[#allocation2 + $0x109] sm:$0xff]
      %v1516 = vld [vmem:[#allocation2 + $0x111] sm:$0xff]
      %v1517 = vld [vmem:[#allocation2 + $0x119] sm:$0xff]
      %v1518 = vld [vmem:[#allocation2 + $0x121] sm:$0xff]
      %1519 = vst [vmem:[#allocation3 + $0x40] sm:$0xff] %v1487
      %1520 = vst [vmem:[#allocation3 + $0x88] sm:$0xff] %v1488
      %1521 = vst [vmem:[#allocation3 + $0xd0] sm:$0xff] %v1489
      %1522 = vst [vmem:[#allocation3 + $0x118] sm:$0xff] %v1490
      %1523 = vst [vmem:[#allocation3 + $0x160] sm:$0xff] %v1491
      %1524 = vst [vmem:[#allocation3 + $0x1a8] sm:$0xff] %v1492
      %1525 = vst [vmem:[#allocation3 + $0x1f0] sm:$0xff] %v1493
      %1526 = vst [vmem:[#allocation3 + $0x238] sm:$0xff] %v1494
      %1527 = vst [vmem:[#allocation3 + $0x280] sm:$0xff] %v1495
      %1528 = vst [vmem:[#allocation3 + $0x2c8] sm:$0xff] %v1496
      %1529 = vst [vmem:[#allocation3 + $0x310] sm:$0xff] %v1497
      %1530 = vst [vmem:[#allocation3 + $0x358] sm:$0xff] %v1498
      %1531 = vst [vmem:[#allocation3 + $0x3a0] sm:$0xff] %v1499
      %1532 = vst [vmem:[#allocation3 + $0x3e8] sm:$0xff] %v1500
      %1533 = vst [vmem:[#allocation3 + $0x430] sm:$0xff] %v1501
      %1534 = vst [vmem:[#allocation3 + $0x478] sm:$0xff] %v1502
      %1535 = vst [vmem:[#allocation3 + $0x4c0] sm:$0xff] %v1503
      %1536 = vst [vmem:[#allocation3 + $0x508] sm:$0xff] %v1504
      %1537 = vst [vmem:[#allocation3 + $0x550] sm:$0xff] %v1505
      %1538 = vst [vmem:[#allocation3 + $0x598] sm:$0xff] %v1506
      %1539 = vst [vmem:[#allocation3 + $0x5e0] sm:$0xff] %v1507
      %1540 = vst [vmem:[#allocation3 + $0x628] sm:$0xff] %v1508
      %1541 = vst [vmem:[#allocation3 + $0x670] sm:$0xff] %v1509
      %1542 = vst [vmem:[#allocation3 + $0x6b8] sm:$0xff] %v1510
      %1543 = vst [vmem:[#allocation3 + $0x700] sm:$0xff] %v1511
      %1544 = vst [vmem:[#allocation3 + $0x748] sm:$0xff] %v1512
      %1545 = vst [vmem:[#allocation3 + $0x790] sm:$0xff] %v1513
      %1546 = vst [vmem:[#allocation3 + $0x7d8] sm:$0xff] %v1514
      %1547 = vst [vmem:[#allocation3 + $0x820] sm:$0xff] %v1515
      %1548 = vst [vmem:[#allocation3 + $0x868] sm:$0xff] %v1516
      %1549 = vst [vmem:[#allocation3 + $0x8b0] sm:$0xff] %v1517
      %1550 = vst [vmem:[#allocation3 + $0x8f8] sm:$0xff] %v1518
      %v1551 = vld [vmem:[#allocation3] sm:$0xff]
      %v1552 = vld [vmem:[#allocation3 + $0x8] sm:$0xff]
      %v1553 = vld [vmem:[#allocation3 + $0x10] sm:$0xff]
      %v1554 = vld [vmem:[#allocation3 + $0x18] sm:$0xff]
      %v1555 = vld [vmem:[#allocation3 + $0x20] sm:$0xff]
      %v1556 = vld [vmem:[#allocation3 + $0x28] sm:$0xff]
      %v1557 = vld [vmem:[#allocation3 + $0x30] sm:$0xff]
      %v1558 = vld [vmem:[#allocation3 + $0x38] sm:$0xff]
      %v1559 = vld [vmem:[#allocation3 + $0x40] sm:$0xff]
      %v1560 = vld [vmem:[#allocation3 + $0x48] sm:$0xff]
      %v1561 = vld [vmem:[#allocation3 + $0x50] sm:$0xff]
      %v1562 = vld [vmem:[#allocation3 + $0x58] sm:$0xff]
      %v1563 = vld [vmem:[#allocation3 + $0x60] sm:$0xff]
      %v1564 = vld [vmem:[#allocation3 + $0x68] sm:$0xff]
      %v1565 = vld [vmem:[#allocation3 + $0x70] sm:$0xff]
      %v1566 = vld [vmem:[#allocation3 + $0x78] sm:$0xff]
      %v1567 = vld [vmem:[#allocation3 + $0x80] sm:$0xff]
      %v1568 = vld [vmem:[#allocation3 + $0x88] sm:$0xff]
      %v1569 = vld [vmem:[#allocation3 + $0x90] sm:$0xff]
      %v1570 = vld [vmem:[#allocation3 + $0x98] sm:$0xff]
      %v1571 = vld [vmem:[#allocation3 + $0xa0] sm:$0xff]
      %v1572 = vld [vmem:[#allocation3 + $0xa8] sm:$0xff]
      %v1573 = vld [vmem:[#allocation3 + $0xb0] sm:$0xff]
      %v1574 = vld [vmem:[#allocation3 + $0xb8] sm:$0xff]
      %v1575 = vld [vmem:[#allocation3 + $0xc0] sm:$0xff]
      %v1576 = vld [vmem:[#allocation3 + $0xc8] sm:$0xff]
      %v1577 = vld [vmem:[#allocation3 + $0xd0] sm:$0xff]
      %v1578 = vld [vmem:[#allocation3 + $0xd8] sm:$0xff]
      %v1579 = vld [vmem:[#allocation3 + $0xe0] sm:$0xff]
      %v1580 = vld [vmem:[#allocation3 + $0xe8] sm:$0xff]
      %v1581 = vld [vmem:[#allocation3 + $0xf0] sm:$0xff]
      %v1582 = vld [vmem:[#allocation3 + $0xf8] sm:$0xff]
      %v1583 = vld [vmem:[#allocation3 + $0x100] sm:$0xff]
      %v1584 = vld [vmem:[#allocation3 + $0x108] sm:$0xff]
      %v1585 = vld [vmem:[#allocation3 + $0x110] sm:$0xff]
      %v1586 = vld [vmem:[#allocation3 + $0x118] sm:$0xff]
      %v1587 = vld [vmem:[#allocation3 + $0x120] sm:$0xff]
      %v1588 = vld [vmem:[#allocation3 + $0x128] sm:$0xff]
      %v1589 = vld [vmem:[#allocation3 + $0x130] sm:$0xff]
      %v1590 = vld [vmem:[#allocation3 + $0x138] sm:$0xff]
      %v1591 = vld [vmem:[#allocation3 + $0x140] sm:$0xff]
      %v1592 = vld [vmem:[#allocation3 + $0x148] sm:$0xff]
      %v1593 = vld [vmem:[#allocation3 + $0x150] sm:$0xff]
      %v1594 = vld [vmem:[#allocation3 + $0x158] sm:$0xff]
      %v1595 = vld [vmem:[#allocation3 + $0x160] sm:$0xff]
      %v1596 = vld [vmem:[#allocation3 + $0x168] sm:$0xff]
      %v1597 = vld [vmem:[#allocation3 + $0x170] sm:$0xff]
      %v1598 = vld [vmem:[#allocation3 + $0x178] sm:$0xff]
      %v1599 = vld [vmem:[#allocation3 + $0x180] sm:$0xff]
      %v1600 = vld [vmem:[#allocation3 + $0x188] sm:$0xff]
      %v1601 = vld [vmem:[#allocation3 + $0x190] sm:$0xff]
      %v1602 = vld [vmem:[#allocation3 + $0x198] sm:$0xff]
      %v1603 = vld [vmem:[#allocation3 + $0x1a0] sm:$0xff]
      %v1604 = vld [vmem:[#allocation3 + $0x1a8] sm:$0xff]
      %v1605 = vld [vmem:[#allocation3 + $0x1b0] sm:$0xff]
      %v1606 = vld [vmem:[#allocation3 + $0x1b8] sm:$0xff]
      %v1607 = vld [vmem:[#allocation3 + $0x1c0] sm:$0xff]
      %v1608 = vld [vmem:[#allocation3 + $0x1c8] sm:$0xff]
      %v1609 = vld [vmem:[#allocation3 + $0x1d0] sm:$0xff]
      %v1610 = vld [vmem:[#allocation3 + $0x1d8] sm:$0xff]
      %v1611 = vld [vmem:[#allocation3 + $0x1e0] sm:$0xff]
      %v1612 = vld [vmem:[#allocation3 + $0x1e8] sm:$0xff]
      %v1613 = vld [vmem:[#allocation3 + $0x1f0] sm:$0xff]
      %v1614 = vld [vmem:[#allocation3 + $0x1f8] sm:$0xff]
      %v1615 = vld [vmem:[#allocation3 + $0x200] sm:$0xff]
      %v1616 = vld [vmem:[#allocation3 + $0x208] sm:$0xff]
      %v1617 = vld [vmem:[#allocation3 + $0x210] sm:$0xff]
      %v1618 = vld [vmem:[#allocation3 + $0x218] sm:$0xff]
      %v1619 = vld [vmem:[#allocation3 + $0x220] sm:$0xff]
      %v1620 = vld [vmem:[#allocation3 + $0x228] sm:$0xff]
      %v1621 = vld [vmem:[#allocation3 + $0x230] sm:$0xff]
      %v1622 = vld [vmem:[#allocation3 + $0x238] sm:$0xff]
      %v1623 = vld [vmem:[#allocation3 + $0x240] sm:$0xff]
      %v1624 = vld [vmem:[#allocation3 + $0x248] sm:$0xff]
      %v1625 = vld [vmem:[#allocation3 + $0x250] sm:$0xff]
      %v1626 = vld [vmem:[#allocation3 + $0x258] sm:$0xff]
      %v1627 = vld [vmem:[#allocation3 + $0x260] sm:$0xff]
      %v1628 = vld [vmem:[#allocation3 + $0x268] sm:$0xff]
      %v1629 = vld [vmem:[#allocation3 + $0x270] sm:$0xff]
      %v1630 = vld [vmem:[#allocation3 + $0x278] sm:$0xff]
      %v1631 = vld [vmem:[#allocation3 + $0x280] sm:$0xff]
      %v1632 = vld [vmem:[#allocation3 + $0x288] sm:$0xff]
      %v1633 = vld [vmem:[#allocation3 + $0x290] sm:$0xff]
      %v1634 = vld [vmem:[#allocation3 + $0x298] sm:$0xff]
      %v1635 = vld [vmem:[#allocation3 + $0x2a0] sm:$0xff]
      %v1636 = vld [vmem:[#allocation3 + $0x2a8] sm:$0xff]
      %v1637 = vld [vmem:[#allocation3 + $0x2b0] sm:$0xff]
      %v1638 = vld [vmem:[#allocation3 + $0x2b8] sm:$0xff]
      %v1639 = vld [vmem:[#allocation3 + $0x2c0] sm:$0xff]
      %v1640 = vld [vmem:[#allocation3 + $0x2c8] sm:$0xff]
      %v1641 = vld [vmem:[#allocation3 + $0x2d0] sm:$0xff]
      %v1642 = vld [vmem:[#allocation3 + $0x2d8] sm:$0xff]
      %v1643 = vld [vmem:[#allocation3 + $0x2e0] sm:$0xff]
      %v1644 = vld [vmem:[#allocation3 + $0x2e8] sm:$0xff]
      %v1645 = vld [vmem:[#allocation3 + $0x2f0] sm:$0xff]
      %v1646 = vld [vmem:[#allocation3 + $0x2f8] sm:$0xff]
      %v1647 = vld [vmem:[#allocation3 + $0x300] sm:$0xff]
      %v1648 = vld [vmem:[#allocation3 + $0x308] sm:$0xff]
      %v1649 = vld [vmem:[#allocation3 + $0x310] sm:$0xff]
      %v1650 = vld [vmem:[#allocation3 + $0x318] sm:$0xff]
      %v1651 = vld [vmem:[#allocation3 + $0x320] sm:$0xff]
      %v1652 = vld [vmem:[#allocation3 + $0x328] sm:$0xff]
      %v1653 = vld [vmem:[#allocation3 + $0x330] sm:$0xff]
      %v1654 = vld [vmem:[#allocation3 + $0x338] sm:$0xff]
      %v1655 = vld [vmem:[#allocation3 + $0x340] sm:$0xff]
      %v1656 = vld [vmem:[#allocation3 + $0x348] sm:$0xff]
      %v1657 = vld [vmem:[#allocation3 + $0x350] sm:$0xff]
      %v1658 = vld [vmem:[#allocation3 + $0x358] sm:$0xff]
      %v1659 = vld [vmem:[#allocation3 + $0x360] sm:$0xff]
      %v1660 = vld [vmem:[#allocation3 + $0x368] sm:$0xff]
      %v1661 = vld [vmem:[#allocation3 + $0x370] sm:$0xff]
      %v1662 = vld [vmem:[#allocation3 + $0x378] sm:$0xff]
      %v1663 = vld [vmem:[#allocation3 + $0x380] sm:$0xff]
      %v1664 = vld [vmem:[#allocation3 + $0x388] sm:$0xff]
      %v1665 = vld [vmem:[#allocation3 + $0x390] sm:$0xff]
      %v1666 = vld [vmem:[#allocation3 + $0x398] sm:$0xff]
      %v1667 = vld [vmem:[#allocation3 + $0x3a0] sm:$0xff]
      %v1668 = vld [vmem:[#allocation3 + $0x3a8] sm:$0xff]
      %v1669 = vld [vmem:[#allocation3 + $0x3b0] sm:$0xff]
      %v1670 = vld [vmem:[#allocation3 + $0x3b8] sm:$0xff]
      %v1671 = vld [vmem:[#allocation3 + $0x3c0] sm:$0xff]
      %v1672 = vld [vmem:[#allocation3 + $0x3c8] sm:$0xff]
      %v1673 = vld [vmem:[#allocation3 + $0x3d0] sm:$0xff]
      %v1674 = vld [vmem:[#allocation3 + $0x3d8] sm:$0xff]
      %v1675 = vld [vmem:[#allocation3 + $0x3e0] sm:$0xff]
      %v1676 = vld [vmem:[#allocation3 + $0x3e8] sm:$0xff]
      %v1677 = vld [vmem:[#allocation3 + $0x3f0] sm:$0xff]
      %v1678 = vld [vmem:[#allocation3 + $0x3f8] sm:$0xff]
      %v1679 = vld [vmem:[#allocation3 + $0x400] sm:$0xff]
      %v1680 = vld [vmem:[#allocation3 + $0x408] sm:$0xff]
      %v1681 = vld [vmem:[#allocation3 + $0x410] sm:$0xff]
      %v1682 = vld [vmem:[#allocation3 + $0x418] sm:$0xff]
      %v1683 = vld [vmem:[#allocation3 + $0x420] sm:$0xff]
      %v1684 = vld [vmem:[#allocation3 + $0x428] sm:$0xff]
      %v1685 = vld [vmem:[#allocation3 + $0x430] sm:$0xff]
      %v1686 = vld [vmem:[#allocation3 + $0x438] sm:$0xff]
      %v1687 = vld [vmem:[#allocation3 + $0x440] sm:$0xff]
      %v1688 = vld [vmem:[#allocation3 + $0x448] sm:$0xff]
      %v1689 = vld [vmem:[#allocation3 + $0x450] sm:$0xff]
      %v1690 = vld [vmem:[#allocation3 + $0x458] sm:$0xff]
      %v1691 = vld [vmem:[#allocation3 + $0x460] sm:$0xff]
      %v1692 = vld [vmem:[#allocation3 + $0x468] sm:$0xff]
      %v1693 = vld [vmem:[#allocation3 + $0x470] sm:$0xff]
      %v1694 = vld [vmem:[#allocation3 + $0x478] sm:$0xff]
      %v1695 = vld [vmem:[#allocation3 + $0x480] sm:$0xff]
      %v1696 = vld [vmem:[#allocation3 + $0x488] sm:$0xff]
      %v1697 = vld [vmem:[#allocation3 + $0x490] sm:$0xff]
      %v1698 = vld [vmem:[#allocation3 + $0x498] sm:$0xff]
      %v1699 = vld [vmem:[#allocation3 + $0x4a0] sm:$0xff]
      %v1700 = vld [vmem:[#allocation3 + $0x4a8] sm:$0xff]
      %v1701 = vld [vmem:[#allocation3 + $0x4b0] sm:$0xff]
      %v1702 = vld [vmem:[#allocation3 + $0x4b8] sm:$0xff]
      %v1703 = vld [vmem:[#allocation3 + $0x4c0] sm:$0xff]
      %v1704 = vld [vmem:[#allocation3 + $0x4c8] sm:$0xff]
      %v1705 = vld [vmem:[#allocation3 + $0x4d0] sm:$0xff]
      %v1706 = vld [vmem:[#allocation3 + $0x4d8] sm:$0xff]
      %v1707 = vld [vmem:[#allocation3 + $0x4e0] sm:$0xff]
      %v1708 = vld [vmem:[#allocation3 + $0x4e8] sm:$0xff]
      %v1709 = vld [vmem:[#allocation3 + $0x4f0] sm:$0xff]
      %v1710 = vld [vmem:[#allocation3 + $0x4f8] sm:$0xff]
      %v1711 = vld [vmem:[#allocation3 + $0x500] sm:$0xff]
      %v1712 = vld [vmem:[#allocation3 + $0x508] sm:$0xff]
      %v1713 = vld [vmem:[#allocation3 + $0x510] sm:$0xff]
      %v1714 = vld [vmem:[#allocation3 + $0x518] sm:$0xff]
      %v1715 = vld [vmem:[#allocation3 + $0x520] sm:$0xff]
      %v1716 = vld [vmem:[#allocation3 + $0x528] sm:$0xff]
      %v1717 = vld [vmem:[#allocation3 + $0x530] sm:$0xff]
      %v1718 = vld [vmem:[#allocation3 + $0x538] sm:$0xff]
      %v1719 = vld [vmem:[#allocation3 + $0x540] sm:$0xff]
      %v1720 = vld [vmem:[#allocation3 + $0x548] sm:$0xff]
      %v1721 = vld [vmem:[#allocation3 + $0x550] sm:$0xff]
      %v1722 = vld [vmem:[#allocation3 + $0x558] sm:$0xff]
      %v1723 = vld [vmem:[#allocation3 + $0x560] sm:$0xff]
      %v1724 = vld [vmem:[#allocation3 + $0x568] sm:$0xff]
      %v1725 = vld [vmem:[#allocation3 + $0x570] sm:$0xff]
      %v1726 = vld [vmem:[#allocation3 + $0x578] sm:$0xff]
      %v1727 = vld [vmem:[#allocation3 + $0x580] sm:$0xff]
      %v1728 = vld [vmem:[#allocation3 + $0x588] sm:$0xff]
      %v1729 = vld [vmem:[#allocation3 + $0x590] sm:$0xff]
      %v1730 = vld [vmem:[#allocation3 + $0x598] sm:$0xff]
      %v1731 = vld [vmem:[#allocation3 + $0x5a0] sm:$0xff]
      %v1732 = vld [vmem:[#allocation3 + $0x5a8] sm:$0xff]
      %v1733 = vld [vmem:[#allocation3 + $0x5b0] sm:$0xff]
      %v1734 = vld [vmem:[#allocation3 + $0x5b8] sm:$0xff]
      %v1735 = vld [vmem:[#allocation3 + $0x5c0] sm:$0xff]
      %v1736 = vld [vmem:[#allocation3 + $0x5c8] sm:$0xff]
      %v1737 = vld [vmem:[#allocation3 + $0x5d0] sm:$0xff]
      %v1738 = vld [vmem:[#allocation3 + $0x5d8] sm:$0xff]
      %v1739 = vld [vmem:[#allocation3 + $0x5e0] sm:$0xff]
      %v1740 = vld [vmem:[#allocation3 + $0x5e8] sm:$0xff]
      %v1741 = vld [vmem:[#allocation3 + $0x5f0] sm:$0xff]
      %v1742 = vld [vmem:[#allocation3 + $0x5f8] sm:$0xff]
      %v1743 = vld [vmem:[#allocation3 + $0x600] sm:$0xff]
      %v1744 = vld [vmem:[#allocation3 + $0x608] sm:$0xff]
      %v1745 = vld [vmem:[#allocation3 + $0x610] sm:$0xff]
      %v1746 = vld [vmem:[#allocation3 + $0x618] sm:$0xff]
      %v1747 = vld [vmem:[#allocation3 + $0x620] sm:$0xff]
      %v1748 = vld [vmem:[#allocation3 + $0x628] sm:$0xff]
      %v1749 = vld [vmem:[#allocation3 + $0x630] sm:$0xff]
      %v1750 = vld [vmem:[#allocation3 + $0x638] sm:$0xff]
      %v1751 = vld [vmem:[#allocation3 + $0x640] sm:$0xff]
      %v1752 = vld [vmem:[#allocation3 + $0x648] sm:$0xff]
      %v1753 = vld [vmem:[#allocation3 + $0x650] sm:$0xff]
      %v1754 = vld [vmem:[#allocation3 + $0x658] sm:$0xff]
      %v1755 = vld [vmem:[#allocation3 + $0x660] sm:$0xff]
      %v1756 = vld [vmem:[#allocation3 + $0x668] sm:$0xff]
      %v1757 = vld [vmem:[#allocation3 + $0x670] sm:$0xff]
      %v1758 = vld [vmem:[#allocation3 + $0x678] sm:$0xff]
      %v1759 = vld [vmem:[#allocation3 + $0x680] sm:$0xff]
      %v1760 = vld [vmem:[#allocation3 + $0x688] sm:$0xff]
      %v1761 = vld [vmem:[#allocation3 + $0x690] sm:$0xff]
      %v1762 = vld [vmem:[#allocation3 + $0x698] sm:$0xff]
      %v1763 = vld [vmem:[#allocation3 + $0x6a0] sm:$0xff]
      %v1764 = vld [vmem:[#allocation3 + $0x6a8] sm:$0xff]
      %v1765 = vld [vmem:[#allocation3 + $0x6b0] sm:$0xff]
      %v1766 = vld [vmem:[#allocation3 + $0x6b8] sm:$0xff]
      %v1767 = vld [vmem:[#allocation3 + $0x6c0] sm:$0xff]
      %v1768 = vld [vmem:[#allocation3 + $0x6c8] sm:$0xff]
      %v1769 = vld [vmem:[#allocation3 + $0x6d0] sm:$0xff]
      %v1770 = vld [vmem:[#allocation3 + $0x6d8] sm:$0xff]
      %v1771 = vld [vmem:[#allocation3 + $0x6e0] sm:$0xff]
      %v1772 = vld [vmem:[#allocation3 + $0x6e8] sm:$0xff]
      %v1773 = vld [vmem:[#allocation3 + $0x6f0] sm:$0xff]
      %v1774 = vld [vmem:[#allocation3 + $0x6f8] sm:$0xff]
      %v1775 = vld [vmem:[#allocation3 + $0x700] sm:$0xff]
      %v1776 = vld [vmem:[#allocation3 + $0x708] sm:$0xff]
      %v1777 = vld [vmem:[#allocation3 + $0x710] sm:$0xff]
      %v1778 = vld [vmem:[#allocation3 + $0x718] sm:$0xff]
      %v1779 = vld [vmem:[#allocation3 + $0x720] sm:$0xff]
      %v1780 = vld [vmem:[#allocation3 + $0x728] sm:$0xff]
      %v1781 = vld [vmem:[#allocation3 + $0x730] sm:$0xff]
      %v1782 = vld [vmem:[#allocation3 + $0x738] sm:$0xff]
      %v1783 = vld [vmem:[#allocation3 + $0x740] sm:$0xff]
      %v1784 = vld [vmem:[#allocation3 + $0x748] sm:$0xff]
      %v1785 = vld [vmem:[#allocation3 + $0x750] sm:$0xff]
      %v1786 = vld [vmem:[#allocation3 + $0x758] sm:$0xff]
      %v1787 = vld [vmem:[#allocation3 + $0x760] sm:$0xff]
      %v1788 = vld [vmem:[#allocation3 + $0x768] sm:$0xff]
      %v1789 = vld [vmem:[#allocation3 + $0x770] sm:$0xff]
      %v1790 = vld [vmem:[#allocation3 + $0x778] sm:$0xff]
      %v1791 = vld [vmem:[#allocation3 + $0x780] sm:$0xff]
      %v1792 = vld [vmem:[#allocation3 + $0x788] sm:$0xff]
      %v1793 = vld [vmem:[#allocation3 + $0x790] sm:$0xff]
      %v1794 = vld [vmem:[#allocation3 + $0x798] sm:$0xff]
      %v1795 = vld [vmem:[#allocation3 + $0x7a0] sm:$0xff]
      %v1796 = vld [vmem:[#allocation3 + $0x7a8] sm:$0xff]
      %v1797 = vld [vmem:[#allocation3 + $0x7b0] sm:$0xff]
      %v1798 = vld [vmem:[#allocation3 + $0x7b8] sm:$0xff]
      %v1799 = vld [vmem:[#allocation3 + $0x7c0] sm:$0xff]
      %v1800 = vld [vmem:[#allocation3 + $0x7c8] sm:$0xff]
      %v1801 = vld [vmem:[#allocation3 + $0x7d0] sm:$0xff]
      %v1802 = vld [vmem:[#allocation3 + $0x7d8] sm:$0xff]
      %v1803 = vld [vmem:[#allocation3 + $0x7e0] sm:$0xff]
      %v1804 = vld [vmem:[#allocation3 + $0x7e8] sm:$0xff]
      %v1805 = vld [vmem:[#allocation3 + $0x7f0] sm:$0xff]
      %v1806 = vld [vmem:[#allocation3 + $0x7f8] sm:$0xff]
      %v1807 = vld [vmem:[#allocation3 + $0x800] sm:$0xff]
      %v1808 = vld [vmem:[#allocation3 + $0x808] sm:$0xff]
      %v1809 = vld [vmem:[#allocation3 + $0x810] sm:$0xff]
      %v1810 = vld [vmem:[#allocation3 + $0x818] sm:$0xff]
      %v1811 = vld [vmem:[#allocation3 + $0x820] sm:$0xff]
      %v1812 = vld [vmem:[#allocation3 + $0x828] sm:$0xff]
      %v1813 = vld [vmem:[#allocation3 + $0x830] sm:$0xff]
      %v1814 = vld [vmem:[#allocation3 + $0x838] sm:$0xff]
      %v1815 = vld [vmem:[#allocation3 + $0x840] sm:$0xff]
      %v1816 = vld [vmem:[#allocation3 + $0x848] sm:$0xff]
      %v1817 = vld [vmem:[#allocation3 + $0x850] sm:$0xff]
      %v1818 = vld [vmem:[#allocation3 + $0x858] sm:$0xff]
      %v1819 = vld [vmem:[#allocation3 + $0x860] sm:$0xff]
      %v1820 = vld [vmem:[#allocation3 + $0x868] sm:$0xff]
      %v1821 = vld [vmem:[#allocation3 + $0x870] sm:$0xff]
      %v1822 = vld [vmem:[#allocation3 + $0x878] sm:$0xff]
      %v1823 = vld [vmem:[#allocation3 + $0x880] sm:$0xff]
      %v1824 = vld [vmem:[#allocation3 + $0x888] sm:$0xff]
      %v1825 = vld [vmem:[#allocation3 + $0x890] sm:$0xff]
      %v1826 = vld [vmem:[#allocation3 + $0x898] sm:$0xff]
      %v1827 = vld [vmem:[#allocation3 + $0x8a0] sm:$0xff]
      %v1828 = vld [vmem:[#allocation3 + $0x8a8] sm:$0xff]
      %v1829 = vld [vmem:[#allocation3 + $0x8b0] sm:$0xff]
      %v1830 = vld [vmem:[#allocation3 + $0x8b8] sm:$0xff]
      %v1831 = vld [vmem:[#allocation3 + $0x8c0] sm:$0xff]
      %v1832 = vld [vmem:[#allocation3 + $0x8c8] sm:$0xff]
      %v1833 = vld [vmem:[#allocation3 + $0x8d0] sm:$0xff]
      %v1834 = vld [vmem:[#allocation3 + $0x8d8] sm:$0xff]
      %v1835 = vld [vmem:[#allocation3 + $0x8e0] sm:$0xff]
      %v1836 = vld [vmem:[#allocation3 + $0x8e8] sm:$0xff]
      %v1837 = vld [vmem:[#allocation3 + $0x8f0] sm:$0xff]
      %v1838 = vld [vmem:[#allocation3 + $0x8f8] sm:$0xff]
      %v1839 = vld [vmem:[%s4] sm:$0xff]
      %v1840 = vld [vmem:[%s4 + $0x8] sm:$0xff]
      %v1841 = vld [vmem:[%s4 + $0x10] sm:$0xff]
      %v1842 = vld [vmem:[%s4 + $0x18] sm:$0xff]
      %v1843 = vld [vmem:[%s4 + $0x20] sm:$0xff]
      %v1844 = vld [vmem:[%s4 + $0x28] sm:$0xff]
      %v1845 = vld [vmem:[%s4 + $0x30] sm:$0xff]
      %v1846 = vld [vmem:[%s4 + $0x38] sm:$0xff]
      %v1847 = vld [vmem:[%s4 + $0x40] sm:$0xff]
      %v1848 = vld [vmem:[%s4 + $0x48] sm:$0xff]
      %v1849 = vld [vmem:[%s4 + $0x50] sm:$0xff]
      %v1850 = vld [vmem:[%s4 + $0x58] sm:$0xff]
      %v1851 = vld [vmem:[%s4 + $0x60] sm:$0xff]
      %v1852 = vld [vmem:[%s4 + $0x68] sm:$0xff]
      %v1853 = vld [vmem:[%s4 + $0x70] sm:$0xff]
      %v1854 = vld [vmem:[%s4 + $0x78] sm:$0xff]
      %v1855 = vld [vmem:[%s4 + $0x80] sm:$0xff]
      %v1856 = vld [vmem:[%s4 + $0x88] sm:$0xff]
      %v1857 = vld [vmem:[%s4 + $0x90] sm:$0xff]
      %v1858 = vld [vmem:[%s4 + $0x98] sm:$0xff]
      %v1859 = vld [vmem:[%s4 + $0xa0] sm:$0xff]
      %v1860 = vld [vmem:[%s4 + $0xa8] sm:$0xff]
      %v1861 = vld [vmem:[%s4 + $0xb0] sm:$0xff]
      %v1862 = vld [vmem:[%s4 + $0xb8] sm:$0xff]
      %v1863 = vld [vmem:[%s4 + $0xc0] sm:$0xff]
      %v1864 = vld [vmem:[%s4 + $0xc8] sm:$0xff]
      %v1865 = vld [vmem:[%s4 + $0xd0] sm:$0xff]
      %v1866 = vld [vmem:[%s4 + $0xd8] sm:$0xff]
      %v1867 = vld [vmem:[%s4 + $0xe0] sm:$0xff]
      %v1868 = vld [vmem:[%s4 + $0xe8] sm:$0xff]
      %v1869 = vld [vmem:[%s4 + $0xf0] sm:$0xff]
      %v1870 = vld [vmem:[%s4 + $0xf8] sm:$0xff]
      %v1871 = vld [vmem:[%s4 + $0x100] sm:$0xff]
      %v1872 = vld [vmem:[%s4 + $0x108] sm:$0xff]
      %v1873 = vld [vmem:[%s4 + $0x110] sm:$0xff]
      %v1874 = vld [vmem:[%s4 + $0x118] sm:$0xff]
      %v1875 = vld [vmem:[%s4 + $0x120] sm:$0xff]
      %v1876 = vld [vmem:[%s4 + $0x128] sm:$0xff]
      %v1877 = vld [vmem:[%s4 + $0x130] sm:$0xff]
      %v1878 = vld [vmem:[%s4 + $0x138] sm:$0xff]
      %v1879 = vld [vmem:[%s4 + $0x140] sm:$0xff]
      %v1880 = vld [vmem:[%s4 + $0x148] sm:$0xff]
      %v1881 = vld [vmem:[%s4 + $0x150] sm:$0xff]
      %v1882 = vld [vmem:[%s4 + $0x158] sm:$0xff]
      %v1883 = vld [vmem:[%s4 + $0x160] sm:$0xff]
      %v1884 = vld [vmem:[%s4 + $0x168] sm:$0xff]
      %v1885 = vld [vmem:[%s4 + $0x170] sm:$0xff]
      %v1886 = vld [vmem:[%s4 + $0x178] sm:$0xff]
      %v1887 = vld [vmem:[%s4 + $0x180] sm:$0xff]
      %v1888 = vld [vmem:[%s4 + $0x188] sm:$0xff]
      %v1889 = vld [vmem:[%s4 + $0x190] sm:$0xff]
      %v1890 = vld [vmem:[%s4 + $0x198] sm:$0xff]
      %v1891 = vld [vmem:[%s4 + $0x1a0] sm:$0xff]
      %v1892 = vld [vmem:[%s4 + $0x1a8] sm:$0xff]
      %v1893 = vld [vmem:[%s4 + $0x1b0] sm:$0xff]
      %v1894 = vld [vmem:[%s4 + $0x1b8] sm:$0xff]
      %v1895 = vld [vmem:[%s4 + $0x1c0] sm:$0xff]
      %v1896 = vld [vmem:[%s4 + $0x1c8] sm:$0xff]
      %v1897 = vld [vmem:[%s4 + $0x1d0] sm:$0xff]
      %v1898 = vld [vmem:[%s4 + $0x1d8] sm:$0xff]
      %v1899 = vld [vmem:[%s4 + $0x1e0] sm:$0xff]
      %v1900 = vld [vmem:[%s4 + $0x1e8] sm:$0xff]
      %v1901 = vld [vmem:[%s4 + $0x1f0] sm:$0xff]
      %v1902 = vld [vmem:[%s4 + $0x1f8] sm:$0xff]
      %v1903 = vld [vmem:[%s4 + $0x200] sm:$0xff]
      %v1904 = vld [vmem:[%s4 + $0x208] sm:$0xff]
      %v1905 = vld [vmem:[%s4 + $0x210] sm:$0xff]
      %v1906 = vld [vmem:[%s4 + $0x218] sm:$0xff]
      %v1907 = vld [vmem:[%s4 + $0x220] sm:$0xff]
      %v1908 = vld [vmem:[%s4 + $0x228] sm:$0xff]
      %v1909 = vld [vmem:[%s4 + $0x230] sm:$0xff]
      %v1910 = vld [vmem:[%s4 + $0x238] sm:$0xff]
      %v1911 = vld [vmem:[%s4 + $0x240] sm:$0xff]
      %v1912 = vld [vmem:[%s4 + $0x248] sm:$0xff]
      %v1913 = vld [vmem:[%s4 + $0x250] sm:$0xff]
      %v1914 = vld [vmem:[%s4 + $0x258] sm:$0xff]
      %v1915 = vld [vmem:[%s4 + $0x260] sm:$0xff]
      %v1916 = vld [vmem:[%s4 + $0x268] sm:$0xff]
      %v1917 = vld [vmem:[%s4 + $0x270] sm:$0xff]
      %v1918 = vld [vmem:[%s4 + $0x278] sm:$0xff]
      %v1919 = vld [vmem:[%s4 + $0x280] sm:$0xff]
      %v1920 = vld [vmem:[%s4 + $0x288] sm:$0xff]
      %v1921 = vld [vmem:[%s4 + $0x290] sm:$0xff]
      %v1922 = vld [vmem:[%s4 + $0x298] sm:$0xff]
      %v1923 = vld [vmem:[%s4 + $0x2a0] sm:$0xff]
      %v1924 = vld [vmem:[%s4 + $0x2a8] sm:$0xff]
      %v1925 = vld [vmem:[%s4 + $0x2b0] sm:$0xff]
      %v1926 = vld [vmem:[%s4 + $0x2b8] sm:$0xff]
      %v1927 = vld [vmem:[%s4 + $0x2c0] sm:$0xff]
      %v1928 = vld [vmem:[%s4 + $0x2c8] sm:$0xff]
      %v1929 = vld [vmem:[%s4 + $0x2d0] sm:$0xff]
      %v1930 = vld [vmem:[%s4 + $0x2d8] sm:$0xff]
      %v1931 = vld [vmem:[%s4 + $0x2e0] sm:$0xff]
      %v1932 = vld [vmem:[%s4 + $0x2e8] sm:$0xff]
      %v1933 = vld [vmem:[%s4 + $0x2f0] sm:$0xff]
      %v1934 = vld [vmem:[%s4 + $0x2f8] sm:$0xff]
      %v1935 = vld [vmem:[%s4 + $0x300] sm:$0xff]
      %v1936 = vld [vmem:[%s4 + $0x308] sm:$0xff]
      %v1937 = vld [vmem:[%s4 + $0x310] sm:$0xff]
      %v1938 = vld [vmem:[%s4 + $0x318] sm:$0xff]
      %v1939 = vld [vmem:[%s4 + $0x320] sm:$0xff]
      %v1940 = vld [vmem:[%s4 + $0x328] sm:$0xff]
      %v1941 = vld [vmem:[%s4 + $0x330] sm:$0xff]
      %v1942 = vld [vmem:[%s4 + $0x338] sm:$0xff]
      %v1943 = vld [vmem:[%s4 + $0x340] sm:$0xff]
      %v1944 = vld [vmem:[%s4 + $0x348] sm:$0xff]
      %v1945 = vld [vmem:[%s4 + $0x350] sm:$0xff]
      %v1946 = vld [vmem:[%s4 + $0x358] sm:$0xff]
      %v1947 = vld [vmem:[%s4 + $0x360] sm:$0xff]
      %v1948 = vld [vmem:[%s4 + $0x368] sm:$0xff]
      %v1949 = vld [vmem:[%s4 + $0x370] sm:$0xff]
      %v1950 = vld [vmem:[%s4 + $0x378] sm:$0xff]
      %v1951 = vld [vmem:[%s4 + $0x380] sm:$0xff]
      %v1952 = vld [vmem:[%s4 + $0x388] sm:$0xff]
      %v1953 = vld [vmem:[%s4 + $0x390] sm:$0xff]
      %v1954 = vld [vmem:[%s4 + $0x398] sm:$0xff]
      %v1955 = vld [vmem:[%s4 + $0x3a0] sm:$0xff]
      %v1956 = vld [vmem:[%s4 + $0x3a8] sm:$0xff]
      %v1957 = vld [vmem:[%s4 + $0x3b0] sm:$0xff]
      %v1958 = vld [vmem:[%s4 + $0x3b8] sm:$0xff]
      %v1959 = vld [vmem:[%s4 + $0x3c0] sm:$0xff]
      %v1960 = vld [vmem:[%s4 + $0x3c8] sm:$0xff]
      %v1961 = vld [vmem:[%s4 + $0x3d0] sm:$0xff]
      %v1962 = vld [vmem:[%s4 + $0x3d8] sm:$0xff]
      %v1963 = vld [vmem:[%s4 + $0x3e0] sm:$0xff]
      %v1964 = vld [vmem:[%s4 + $0x3e8] sm:$0xff]
      %v1965 = vld [vmem:[%s4 + $0x3f0] sm:$0xff]
      %v1966 = vld [vmem:[%s4 + $0x3f8] sm:$0xff]
      %v1967 = vld [vmem:[%s4 + $0x400] sm:$0xff]
      %v1968 = vld [vmem:[%s4 + $0x408] sm:$0xff]
      %v1969 = vld [vmem:[%s4 + $0x410] sm:$0xff]
      %v1970 = vld [vmem:[%s4 + $0x418] sm:$0xff]
      %v1971 = vld [vmem:[%s4 + $0x420] sm:$0xff]
      %v1972 = vld [vmem:[%s4 + $0x428] sm:$0xff]
      %v1973 = vld [vmem:[%s4 + $0x430] sm:$0xff]
      %v1974 = vld [vmem:[%s4 + $0x438] sm:$0xff]
      %v1975 = vld [vmem:[%s4 + $0x440] sm:$0xff]
      %v1976 = vld [vmem:[%s4 + $0x448] sm:$0xff]
      %v1977 = vld [vmem:[%s4 + $0x450] sm:$0xff]
      %v1978 = vld [vmem:[%s4 + $0x458] sm:$0xff]
      %v1979 = vld [vmem:[%s4 + $0x460] sm:$0xff]
      %v1980 = vld [vmem:[%s4 + $0x468] sm:$0xff]
      %v1981 = vld [vmem:[%s4 + $0x470] sm:$0xff]
      %v1982 = vld [vmem:[%s4 + $0x478] sm:$0xff]
      %v1983 = vld [vmem:[%s5] sm:$0x1]
      %v1985 = vlaneseq
      %v1986 = vshrl.u32 %v1985, 7
      %v1987 = vsub.s32 0, %v1986
      %v1988 = vrot.slane %v1983, %v1987
      %1990 = vmatprep.subr.mxu0 0.0
      %1991 = vmatpush1.msra.mxu0 %v1854
      %1992 = vmatprep.subr.mxu0 0.0
      %1993 = vmatpush1.msra.mxu0 %v1853
      %1994 = vmatprep.subr.mxu0 0.0
      %1995 = vmatpush1.msra.mxu0 %v1852
      %1996 = vmatprep.subr.mxu0 0.0
      %1997 = vmatpush1.msra.mxu0 %v1851
      %1998 = vmatprep.subr.mxu0 0.0
      %1999 = vmatpush1.msra.mxu0 %v1850
      %2000 = vmatprep.subr.mxu0 0.0
      %2001 = vmatpush1.msra.mxu0 %v1849
      %2002 = vmatprep.subr.mxu0 0.0
      %2003 = vmatpush1.msra.mxu0 %v1848
      %2004 = vmatprep.subr.mxu0 0.0
      %2005 = vmatpush1.msra.mxu0 %v1847
      %2006 = vmatprep.subr.mxu0 0.0
      %2007 = vmatpush1.msra.mxu0 %v1846
      %2008 = vmatprep.subr.mxu0 0.0
      %2009 = vmatpush1.msra.mxu0 %v1845
      %2010 = vmatprep.subr.mxu0 0.0
      %2011 = vmatpush1.msra.mxu0 %v1844
      %2012 = vmatprep.subr.mxu0 0.0
      %2013 = vmatpush1.msra.mxu0 %v1843
      %2014 = vmatprep.subr.mxu0 0.0
      %2015 = vmatpush1.msra.mxu0 %v1842
      %2016 = vmatprep.subr.mxu0 0.0
      %2017 = vmatpush1.msra.mxu0 %v1841
      %2018 = vmatprep.subr.mxu0 0.0
      %2019 = vmatpush1.msra.mxu0 %v1840
      %2020 = vmatprep.subr.mxu0 0.0
      %2021 = vmatpush1.msra.mxu0 %v1839
      %2022 = vmatprep.subr.mxu0 0.0
      %2023 = vmatpush2.msra.mxu0 %v1870
      %2024 = vmatprep.subr.mxu0 0.0
      %2025 = vmatpush2.msra.mxu0 %v1869
      %2026 = vmatprep.subr.mxu0 0.0
      %2027 = vmatpush2.msra.mxu0 %v1868
      %2028 = vmatprep.subr.mxu0 0.0
      %2029 = vmatpush2.msra.mxu0 %v1867
      %2030 = vmatprep.subr.mxu0 0.0
      %2031 = vmatpush2.msra.mxu0 %v1866
      %2032 = vmatprep.subr.mxu0 0.0
      %2033 = vmatpush2.msra.mxu0 %v1865
      %2034 = vmatprep.subr.mxu0 0.0
      %2035 = vmatpush2.msra.mxu0 %v1864
      %2036 = vmatprep.subr.mxu0 0.0
      %2037 = vmatpush2.msra.mxu0 %v1863
      %2038 = vmatprep.subr.mxu0 0.0
      %2039 = vmatpush2.msra.mxu0 %v1862
      %2040 = vmatprep.subr.mxu0 0.0
      %2041 = vmatpush2.msra.mxu0 %v1861
      %2042 = vmatprep.subr.mxu0 0.0
      %2043 = vmatpush2.msra.mxu0 %v1860
      %2044 = vmatprep.subr.mxu0 0.0
      %2045 = vmatpush2.msra.mxu0 %v1859
      %2046 = vmatprep.subr.mxu0 0.0
      %2047 = vmatpush2.msra.mxu0 %v1858
      %2048 = vmatprep.subr.mxu0 0.0
      %2049 = vmatpush2.msra.mxu0 %v1857
      %2050 = vmatprep.subr.mxu0 0.0
      %2051 = vmatpush2.msra.mxu0 %v1856
      %2052 = vmatprep.subr.mxu0 0.0
      %2053 = vmatpush2.msra.mxu0 %v1855
      %2054 = vmatprep.mubr.f32.mxu0 %v1552
      %2055 = vmatmul.mubr.f32.gmra.mxu0 %v1551
      %v2056 = vpop.f32.mrf.mxu0
      %v2057 = vadd.f32 %v1988, %v2056
      %v2058 = vpop.f32.mrf.mxu0
      %2059 = vmatprep.mubr.f32.mxu0 %v1561
      %2060 = vmatmul.mubr.f32.gmra.mxu0 %v1560
      %v2061 = vpop.f32.mrf.mxu0
      %v2062 = vadd.f32 %v1988, %v2061
      %v2063 = vpop.f32.mrf.mxu0
      %2064 = vmatprep.mubr.f32.mxu0 %v1570
      %2065 = vmatmul.mubr.f32.gmra.mxu0 %v1569
      %v2066 = vpop.f32.mrf.mxu0
      %v2067 = vadd.f32 %v1988, %v2066
      %v2068 = vpop.f32.mrf.mxu0
      %2069 = vmatprep.mubr.f32.mxu0 %v1579
      %2070 = vmatmul.mubr.f32.gmra.mxu0 %v1578
      %v2071 = vpop.f32.mrf.mxu0
      %v2072 = vadd.f32 %v1988, %v2071
      %v2073 = vpop.f32.mrf.mxu0
      %2074 = vmatprep.mubr.f32.mxu0 %v1588
      %2075 = vmatmul.mubr.f32.gmra.mxu0 %v1587
      %v2076 = vpop.f32.mrf.mxu0
      %v2077 = vadd.f32 %v1988, %v2076
      %v2078 = vpop.f32.mrf.mxu0
      %2079 = vmatprep.mubr.f32.mxu0 %v1597
      %2080 = vmatmul.mubr.f32.gmra.mxu0 %v1596
      %v2081 = vpop.f32.mrf.mxu0
      %v2082 = vadd.f32 %v1988, %v2081
      %v2083 = vpop.f32.mrf.mxu0
      %2084 = vmatprep.mubr.f32.mxu0 %v1606
      %2085 = vmatmul.mubr.f32.gmra.mxu0 %v1605
      %v2086 = vpop.f32.mrf.mxu0
      %v2087 = vadd.f32 %v1988, %v2086
      %v2088 = vpop.f32.mrf.mxu0
      %2089 = vmatprep.mubr.f32.mxu0 %v1615
      %2090 = vmatmul.mubr.f32.gmra.mxu0 %v1614
      %v2091 = vpop.f32.mrf.mxu0
      %v2092 = vadd.f32 %v1988, %v2091
      %v2093 = vpop.f32.mrf.mxu0
      %2094 = vmatprep.mubr.f32.mxu0 %v1624
      %2095 = vmatmul.mubr.f32.gmra.mxu0 %v1623
      %v2096 = vpop.f32.mrf.mxu0
      %v2097 = vadd.f32 %v1988, %v2096
      %v2098 = vpop.f32.mrf.mxu0
      %2099 = vmatprep.mubr.f32.mxu0 %v1633
      %2100 = vmatmul.mubr.f32.gmra.mxu0 %v1632
      %v2101 = vpop.f32.mrf.mxu0
      %v2102 = vadd.f32 %v1988, %v2101
      %v2103 = vpop.f32.mrf.mxu0
      %2104 = vmatprep.mubr.f32.mxu0 %v1642
      %2105 = vmatmul.mubr.f32.gmra.mxu0 %v1641
      %v2106 = vpop.f32.mrf.mxu0
      %v2107 = vadd.f32 %v1988, %v2106
      %v2108 = vpop.f32.mrf.mxu0
      %2109 = vmatprep.mubr.f32.mxu0 %v1651
      %2110 = vmatmul.mubr.f32.gmra.mxu0 %v1650
      %v2111 = vpop.f32.mrf.mxu0
      %v2112 = vadd.f32 %v1988, %v2111
      %v2113 = vpop.f32.mrf.mxu0
      %2114 = vmatprep.mubr.f32.mxu0 %v1660
      %2115 = vmatmul.mubr.f32.gmra.mxu0 %v1659
      %v2116 = vpop.f32.mrf.mxu0
      %v2117 = vadd.f32 %v1988, %v2116
      %v2118 = vpop.f32.mrf.mxu0
      %2119 = vmatprep.mubr.f32.mxu0 %v1669
      %2120 = vmatmul.mubr.f32.gmra.mxu0 %v1668
      %v2121 = vpop.f32.mrf.mxu0
      %v2122 = vadd.f32 %v1988, %v2121
      %v2123 = vpop.f32.mrf.mxu0
      %2124 = vmatprep.mubr.f32.mxu0 %v1678
      %2125 = vmatmul.mubr.f32.gmra.mxu0 %v1677
      %v2126 = vpop.f32.mrf.mxu0
      %v2127 = vadd.f32 %v1988, %v2126
      %v2128 = vpop.f32.mrf.mxu0
      %2129 = vmatprep.mubr.f32.mxu0 %v1687
      %2130 = vmatmul.mubr.f32.gmra.mxu0 %v1686
      %v2131 = vpop.f32.mrf.mxu0
      %v2132 = vadd.f32 %v1988, %v2131
      %v2133 = vpop.f32.mrf.mxu0
      %2134 = vmatprep.mubr.f32.mxu0 %v1696
      %2135 = vmatmul.mubr.f32.gmra.mxu0 %v1695
      %v2136 = vpop.f32.mrf.mxu0
      %v2137 = vadd.f32 %v1988, %v2136
      %v2138 = vpop.f32.mrf.mxu0
      %2139 = vmatprep.mubr.f32.mxu0 %v1705
      %2140 = vmatmul.mubr.f32.gmra.mxu0 %v1704
      %v2141 = vpop.f32.mrf.mxu0
      %v2142 = vadd.f32 %v1988, %v2141
      %v2143 = vpop.f32.mrf.mxu0
      %2144 = vmatprep.mubr.f32.mxu0 %v1714
      %2145 = vmatmul.mubr.f32.gmra.mxu0 %v1713
      %v2146 = vpop.f32.mrf.mxu0
      %v2147 = vadd.f32 %v1988, %v2146
      %v2148 = vpop.f32.mrf.mxu0
      %2149 = vmatprep.mubr.f32.mxu0 %v1723
      %2150 = vmatmul.mubr.f32.gmra.mxu0 %v1722
      %v2151 = vpop.f32.mrf.mxu0
      %v2152 = vadd.f32 %v1988, %v2151
      %v2153 = vpop.f32.mrf.mxu0
      %2154 = vmatprep.mubr.f32.mxu0 %v1732
      %2155 = vmatmul.mubr.f32.gmra.mxu0 %v1731
      %v2156 = vpop.f32.mrf.mxu0
      %v2157 = vadd.f32 %v1988, %v2156
      %v2158 = vpop.f32.mrf.mxu0
      %2159 = vmatprep.mubr.f32.mxu0 %v1741
      %2160 = vmatmul.mubr.f32.gmra.mxu0 %v1740
      %v2161 = vpop.f32.mrf.mxu0
      %v2162 = vadd.f32 %v1988, %v2161
      %v2163 = vpop.f32.mrf.mxu0
      %2164 = vmatprep.mubr.f32.mxu0 %v1750
      %2165 = vmatmul.mubr.f32.gmra.mxu0 %v1749
      %v2166 = vpop.f32.mrf.mxu0
      %v2167 = vadd.f32 %v1988, %v2166
      %v2168 = vpop.f32.mrf.mxu0
      %2169 = vmatprep.mubr.f32.mxu0 %v1759
      %2170 = vmatmul.mubr.f32.gmra.mxu0 %v1758
      %v2171 = vpop.f32.mrf.mxu0
      %v2172 = vadd.f32 %v1988, %v2171
      %v2173 = vpop.f32.mrf.mxu0
      %2174 = vmatprep.mubr.f32.mxu0 %v1768
      %2175 = vmatmul.mubr.f32.gmra.mxu0 %v1767
      %v2176 = vpop.f32.mrf.mxu0
      %v2177 = vadd.f32 %v1988, %v2176
      %v2178 = vpop.f32.mrf.mxu0
      %2179 = vmatprep.mubr.f32.mxu0 %v1777
      %2180 = vmatmul.mubr.f32.gmra.mxu0 %v1776
      %v2181 = vpop.f32.mrf.mxu0
      %v2182 = vadd.f32 %v1988, %v2181
      %v2183 = vpop.f32.mrf.mxu0
      %2184 = vmatprep.mubr.f32.mxu0 %v1786
      %2185 = vmatmul.mubr.f32.gmra.mxu0 %v1785
      %v2186 = vpop.f32.mrf.mxu0
      %v2187 = vadd.f32 %v1988, %v2186
      %v2188 = vpop.f32.mrf.mxu0
      %2189 = vmatprep.mubr.f32.mxu0 %v1795
      %2190 = vmatmul.mubr.f32.gmra.mxu0 %v1794
      %v2191 = vpop.f32.mrf.mxu0
      %v2192 = vadd.f32 %v1988, %v2191
      %v2193 = vpop.f32.mrf.mxu0
      %2194 = vmatprep.mubr.f32.mxu0 %v1804
      %2195 = vmatmul.mubr.f32.gmra.mxu0 %v1803
      %v2196 = vpop.f32.mrf.mxu0
      %v2197 = vadd.f32 %v1988, %v2196
      %v2198 = vpop.f32.mrf.mxu0
      %2199 = vmatprep.mubr.f32.mxu0 %v1813
      %2200 = vmatmul.mubr.f32.gmra.mxu0 %v1812
      %v2201 = vpop.f32.mrf.mxu0
      %v2202 = vadd.f32 %v1988, %v2201
      %v2203 = vpop.f32.mrf.mxu0
      %2204 = vmatprep.mubr.f32.mxu0 %v1822
      %2205 = vmatmul.mubr.f32.gmra.mxu0 %v1821
      %v2206 = vpop.f32.mrf.mxu0
      %v2207 = vadd.f32 %v1988, %v2206
      %v2208 = vpop.f32.mrf.mxu0
      %2209 = vmatprep.mubr.f32.mxu0 %v1831
      %2210 = vmatmul.mubr.f32.gmra.mxu0 %v1830
      %v2211 = vpop.f32.mrf.mxu0
      %v2212 = vadd.f32 %v1988, %v2211
      %v2213 = vpop.f32.mrf.mxu0
      %2214 = vdwg.mxu0
      %2215 = vmatprep.subr.mxu0 0.0
      %2216 = vmatpush1.msra.mxu0 %v1886
      %2217 = vmatprep.subr.mxu0 0.0
      %2218 = vmatpush1.msra.mxu0 %v1885
      %2219 = vmatprep.subr.mxu0 0.0
      %2220 = vmatpush1.msra.mxu0 %v1884
      %2221 = vmatprep.subr.mxu0 0.0
      %2222 = vmatpush1.msra.mxu0 %v1883
      %2223 = vmatprep.subr.mxu0 0.0
      %2224 = vmatpush1.msra.mxu0 %v1882
      %2225 = vmatprep.subr.mxu0 0.0
      %2226 = vmatpush1.msra.mxu0 %v1881
      %2227 = vmatprep.subr.mxu0 0.0
      %2228 = vmatpush1.msra.mxu0 %v1880
      %2229 = vmatprep.subr.mxu0 0.0
      %2230 = vmatpush1.msra.mxu0 %v1879
      %2231 = vmatprep.subr.mxu0 0.0
      %2232 = vmatpush1.msra.mxu0 %v1878
      %2233 = vmatprep.subr.mxu0 0.0
      %2234 = vmatpush1.msra.mxu0 %v1877
      %2235 = vmatprep.subr.mxu0 0.0
      %2236 = vmatpush1.msra.mxu0 %v1876
      %2237 = vmatprep.subr.mxu0 0.0
      %2238 = vmatpush1.msra.mxu0 %v1875
      %2239 = vmatprep.subr.mxu0 0.0
      %2240 = vmatpush1.msra.mxu0 %v1874
      %2241 = vmatprep.subr.mxu0 0.0
      %2242 = vmatpush1.msra.mxu0 %v1873
      %2243 = vmatprep.subr.mxu0 0.0
      %2244 = vmatpush1.msra.mxu0 %v1872
      %2245 = vmatprep.subr.mxu0 0.0
      %2246 = vmatpush1.msra.mxu0 %v1871
      %2247 = vmatprep.subr.mxu0 0.0
      %2248 = vmatpush2.msra.mxu0 %v1902
      %2249 = vmatprep.subr.mxu0 0.0
      %2250 = vmatpush2.msra.mxu0 %v1901
      %2251 = vmatprep.subr.mxu0 0.0
      %2252 = vmatpush2.msra.mxu0 %v1900
      %2253 = vmatprep.subr.mxu0 0.0
      %2254 = vmatpush2.msra.mxu0 %v1899
      %2255 = vmatprep.subr.mxu0 0.0
      %2256 = vmatpush2.msra.mxu0 %v1898
      %2257 = vmatprep.subr.mxu0 0.0
      %2258 = vmatpush2.msra.mxu0 %v1897
      %2259 = vmatprep.subr.mxu0 0.0
      %2260 = vmatpush2.msra.mxu0 %v1896
      %2261 = vmatprep.subr.mxu0 0.0
      %2262 = vmatpush2.msra.mxu0 %v1895
      %2263 = vmatprep.subr.mxu0 0.0
      %2264 = vmatpush2.msra.mxu0 %v1894
      %2265 = vmatprep.subr.mxu0 0.0
      %2266 = vmatpush2.msra.mxu0 %v1893
      %2267 = vmatprep.subr.mxu0 0.0
      %2268 = vmatpush2.msra.mxu0 %v1892
      %2269 = vmatprep.subr.mxu0 0.0
      %2270 = vmatpush2.msra.mxu0 %v1891
      %2271 = vmatprep.subr.mxu0 0.0
      %2272 = vmatpush2.msra.mxu0 %v1890
      %2273 = vmatprep.subr.mxu0 0.0
      %2274 = vmatpush2.msra.mxu0 %v1889
      %2275 = vmatprep.subr.mxu0 0.0
      %2276 = vmatpush2.msra.mxu0 %v1888
      %2277 = vmatprep.subr.mxu0 0.0
      %2278 = vmatpush2.msra.mxu0 %v1887
      %2279 = vmatprep.mubr.f32.mxu0 %v1554
      %2280 = vmatmul.mubr.f32.gmra.mxu0 %v1553
      %v2281 = vpop.f32.mrf.mxu0
      %v2282 = vadd.f32 %v2057, %v2281
      %v2283 = vpop.f32.mrf.mxu0
      %2284 = vmatprep.mubr.f32.mxu0 %v1563
      %2285 = vmatmul.mubr.f32.gmra.mxu0 %v1562
      %v2286 = vpop.f32.mrf.mxu0
      %v2287 = vadd.f32 %v2062, %v2286
      %v2288 = vpop.f32.mrf.mxu0
      %2289 = vmatprep.mubr.f32.mxu0 %v1572
      %2290 = vmatmul.mubr.f32.gmra.mxu0 %v1571
      %v2291 = vpop.f32.mrf.mxu0
      %v2292 = vadd.f32 %v2067, %v2291
      %v2293 = vpop.f32.mrf.mxu0
      %2294 = vmatprep.mubr.f32.mxu0 %v1581
      %2295 = vmatmul.mubr.f32.gmra.mxu0 %v1580
      %v2296 = vpop.f32.mrf.mxu0
      %v2297 = vadd.f32 %v2072, %v2296
      %v2298 = vpop.f32.mrf.mxu0
      %2299 = vmatprep.mubr.f32.mxu0 %v1590
      %2300 = vmatmul.mubr.f32.gmra.mxu0 %v1589
      %v2301 = vpop.f32.mrf.mxu0
      %v2302 = vadd.f32 %v2077, %v2301
      %v2303 = vpop.f32.mrf.mxu0
      %2304 = vmatprep.mubr.f32.mxu0 %v1599
      %2305 = vmatmul.mubr.f32.gmra.mxu0 %v1598
      %v2306 = vpop.f32.mrf.mxu0
      %v2307 = vadd.f32 %v2082, %v2306
      %v2308 = vpop.f32.mrf.mxu0
      %2309 = vmatprep.mubr.f32.mxu0 %v1608
      %2310 = vmatmul.mubr.f32.gmra.mxu0 %v1607
      %v2311 = vpop.f32.mrf.mxu0
      %v2312 = vadd.f32 %v2087, %v2311
      %v2313 = vpop.f32.mrf.mxu0
      %2314 = vmatprep.mubr.f32.mxu0 %v1617
      %2315 = vmatmul.mubr.f32.gmra.mxu0 %v1616
      %v2316 = vpop.f32.mrf.mxu0
      %v2317 = vadd.f32 %v2092, %v2316
      %v2318 = vpop.f32.mrf.mxu0
      %2319 = vmatprep.mubr.f32.mxu0 %v1626
      %2320 = vmatmul.mubr.f32.gmra.mxu0 %v1625
      %v2321 = vpop.f32.mrf.mxu0
      %v2322 = vadd.f32 %v2097, %v2321
      %v2323 = vpop.f32.mrf.mxu0
      %2324 = vmatprep.mubr.f32.mxu0 %v1635
      %2325 = vmatmul.mubr.f32.gmra.mxu0 %v1634
      %v2326 = vpop.f32.mrf.mxu0
      %v2327 = vadd.f32 %v2102, %v2326
      %v2328 = vpop.f32.mrf.mxu0
      %2329 = vmatprep.mubr.f32.mxu0 %v1644
      %2330 = vmatmul.mubr.f32.gmra.mxu0 %v1643
      %v2331 = vpop.f32.mrf.mxu0
      %v2332 = vadd.f32 %v2107, %v2331
      %v2333 = vpop.f32.mrf.mxu0
      %2334 = vmatprep.mubr.f32.mxu0 %v1653
      %2335 = vmatmul.mubr.f32.gmra.mxu0 %v1652
      %v2336 = vpop.f32.mrf.mxu0
      %v2337 = vadd.f32 %v2112, %v2336
      %v2338 = vpop.f32.mrf.mxu0
      %2339 = vmatprep.mubr.f32.mxu0 %v1662
      %2340 = vmatmul.mubr.f32.gmra.mxu0 %v1661
      %v2341 = vpop.f32.mrf.mxu0
      %v2342 = vadd.f32 %v2117, %v2341
      %v2343 = vpop.f32.mrf.mxu0
      %2344 = vmatprep.mubr.f32.mxu0 %v1671
      %2345 = vmatmul.mubr.f32.gmra.mxu0 %v1670
      %v2346 = vpop.f32.mrf.mxu0
      %v2347 = vadd.f32 %v2122, %v2346
      %v2348 = vpop.f32.mrf.mxu0
      %2349 = vmatprep.mubr.f32.mxu0 %v1680
      %2350 = vmatmul.mubr.f32.gmra.mxu0 %v1679
      %v2351 = vpop.f32.mrf.mxu0
      %v2352 = vadd.f32 %v2127, %v2351
      %v2353 = vpop.f32.mrf.mxu0
      %2354 = vmatprep.mubr.f32.mxu0 %v1689
      %2355 = vmatmul.mubr.f32.gmra.mxu0 %v1688
      %v2356 = vpop.f32.mrf.mxu0
      %v2357 = vadd.f32 %v2132, %v2356
      %v2358 = vpop.f32.mrf.mxu0
      %2359 = vmatprep.mubr.f32.mxu0 %v1698
      %2360 = vmatmul.mubr.f32.gmra.mxu0 %v1697
      %v2361 = vpop.f32.mrf.mxu0
      %v2362 = vadd.f32 %v2137, %v2361
      %v2363 = vpop.f32.mrf.mxu0
      %2364 = vmatprep.mubr.f32.mxu0 %v1707
      %2365 = vmatmul.mubr.f32.gmra.mxu0 %v1706
      %v2366 = vpop.f32.mrf.mxu0
      %v2367 = vadd.f32 %v2142, %v2366
      %v2368 = vpop.f32.mrf.mxu0
      %2369 = vmatprep.mubr.f32.mxu0 %v1716
      %2370 = vmatmul.mubr.f32.gmra.mxu0 %v1715
      %v2371 = vpop.f32.mrf.mxu0
      %v2372 = vadd.f32 %v2147, %v2371
      %v2373 = vpop.f32.mrf.mxu0
      %2374 = vmatprep.mubr.f32.mxu0 %v1725
      %2375 = vmatmul.mubr.f32.gmra.mxu0 %v1724
      %v2376 = vpop.f32.mrf.mxu0
      %v2377 = vadd.f32 %v2152, %v2376
      %v2378 = vpop.f32.mrf.mxu0
      %2379 = vmatprep.mubr.f32.mxu0 %v1734
      %2380 = vmatmul.mubr.f32.gmra.mxu0 %v1733
      %v2381 = vpop.f32.mrf.mxu0
      %v2382 = vadd.f32 %v2157, %v2381
      %v2383 = vpop.f32.mrf.mxu0
      %2384 = vmatprep.mubr.f32.mxu0 %v1743
      %2385 = vmatmul.mubr.f32.gmra.mxu0 %v1742
      %v2386 = vpop.f32.mrf.mxu0
      %v2387 = vadd.f32 %v2162, %v2386
      %v2388 = vpop.f32.mrf.mxu0
      %2389 = vmatprep.mubr.f32.mxu0 %v1752
      %2390 = vmatmul.mubr.f32.gmra.mxu0 %v1751
      %v2391 = vpop.f32.mrf.mxu0
      %v2392 = vadd.f32 %v2167, %v2391
      %v2393 = vpop.f32.mrf.mxu0
      %2394 = vmatprep.mubr.f32.mxu0 %v1761
      %2395 = vmatmul.mubr.f32.gmra.mxu0 %v1760
      %v2396 = vpop.f32.mrf.mxu0
      %v2397 = vadd.f32 %v2172, %v2396
      %v2398 = vpop.f32.mrf.mxu0
      %2399 = vmatprep.mubr.f32.mxu0 %v1770
      %2400 = vmatmul.mubr.f32.gmra.mxu0 %v1769
      %v2401 = vpop.f32.mrf.mxu0
      %v2402 = vadd.f32 %v2177, %v2401
      %v2403 = vpop.f32.mrf.mxu0
      %2404 = vmatprep.mubr.f32.mxu0 %v1779
      %2405 = vmatmul.mubr.f32.gmra.mxu0 %v1778
      %v2406 = vpop.f32.mrf.mxu0
      %v2407 = vadd.f32 %v2182, %v2406
      %v2408 = vpop.f32.mrf.mxu0
      %2409 = vmatprep.mubr.f32.mxu0 %v1788
      %2410 = vmatmul.mubr.f32.gmra.mxu0 %v1787
      %v2411 = vpop.f32.mrf.mxu0
      %v2412 = vadd.f32 %v2187, %v2411
      %v2413 = vpop.f32.mrf.mxu0
      %2414 = vmatprep.mubr.f32.mxu0 %v1797
      %2415 = vmatmul.mubr.f32.gmra.mxu0 %v1796
      %v2416 = vpop.f32.mrf.mxu0
      %v2417 = vadd.f32 %v2192, %v2416
      %v2418 = vpop.f32.mrf.mxu0
      %2419 = vmatprep.mubr.f32.mxu0 %v1806
      %2420 = vmatmul.mubr.f32.gmra.mxu0 %v1805
      %v2421 = vpop.f32.mrf.mxu0
      %v2422 = vadd.f32 %v2197, %v2421
      %v2423 = vpop.f32.mrf.mxu0
      %2424 = vmatprep.mubr.f32.mxu0 %v1815
      %2425 = vmatmul.mubr.f32.gmra.mxu0 %v1814
      %v2426 = vpop.f32.mrf.mxu0
      %v2427 = vadd.f32 %v2202, %v2426
      %v2428 = vpop.f32.mrf.mxu0
      %2429 = vmatprep.mubr.f32.mxu0 %v1824
      %2430 = vmatmul.mubr.f32.gmra.mxu0 %v1823
      %v2431 = vpop.f32.mrf.mxu0
      %v2432 = vadd.f32 %v2207, %v2431
      %v2433 = vpop.f32.mrf.mxu0
      %2434 = vmatprep.mubr.f32.mxu0 %v1833
      %2435 = vmatmul.mubr.f32.gmra.mxu0 %v1832
      %v2436 = vpop.f32.mrf.mxu0
      %v2437 = vadd.f32 %v2212, %v2436
      %v2438 = vpop.f32.mrf.mxu0
      %2439 = vdwg.mxu0
      %2440 = vmatprep.subr.mxu0 0.0
      %2441 = vmatpush1.msra.mxu0 %v1918
      %2442 = vmatprep.subr.mxu0 0.0
      %2443 = vmatpush1.msra.mxu0 %v1917
      %2444 = vmatprep.subr.mxu0 0.0
      %2445 = vmatpush1.msra.mxu0 %v1916
      %2446 = vmatprep.subr.mxu0 0.0
      %2447 = vmatpush1.msra.mxu0 %v1915
      %2448 = vmatprep.subr.mxu0 0.0
      %2449 = vmatpush1.msra.mxu0 %v1914
      %2450 = vmatprep.subr.mxu0 0.0
      %2451 = vmatpush1.msra.mxu0 %v1913
      %2452 = vmatprep.subr.mxu0 0.0
      %2453 = vmatpush1.msra.mxu0 %v1912
      %2454 = vmatprep.subr.mxu0 0.0
      %2455 = vmatpush1.msra.mxu0 %v1911
      %2456 = vmatprep.subr.mxu0 0.0
      %2457 = vmatpush1.msra.mxu0 %v1910
      %2458 = vmatprep.subr.mxu0 0.0
      %2459 = vmatpush1.msra.mxu0 %v1909
      %2460 = vmatprep.subr.mxu0 0.0
      %2461 = vmatpush1.msra.mxu0 %v1908
      %2462 = vmatprep.subr.mxu0 0.0
      %2463 = vmatpush1.msra.mxu0 %v1907
      %2464 = vmatprep.subr.mxu0 0.0
      %2465 = vmatpush1.msra.mxu0 %v1906
      %2466 = vmatprep.subr.mxu0 0.0
      %2467 = vmatpush1.msra.mxu0 %v1905
      %2468 = vmatprep.subr.mxu0 0.0
      %2469 = vmatpush1.msra.mxu0 %v1904
      %2470 = vmatprep.subr.mxu0 0.0
      %2471 = vmatpush1.msra.mxu0 %v1903
      %2472 = vmatprep.subr.mxu0 0.0
      %2473 = vmatpush2.msra.mxu0 %v1934
      %2474 = vmatprep.subr.mxu0 0.0
      %2475 = vmatpush2.msra.mxu0 %v1933
      %2476 = vmatprep.subr.mxu0 0.0
      %2477 = vmatpush2.msra.mxu0 %v1932
      %2478 = vmatprep.subr.mxu0 0.0
      %2479 = vmatpush2.msra.mxu0 %v1931
      %2480 = vmatprep.subr.mxu0 0.0
      %2481 = vmatpush2.msra.mxu0 %v1930
      %2482 = vmatprep.subr.mxu0 0.0
      %2483 = vmatpush2.msra.mxu0 %v1929
      %2484 = vmatprep.subr.mxu0 0.0
      %2485 = vmatpush2.msra.mxu0 %v1928
      %2486 = vmatprep.subr.mxu0 0.0
      %2487 = vmatpush2.msra.mxu0 %v1927
      %2488 = vmatprep.subr.mxu0 0.0
      %2489 = vmatpush2.msra.mxu0 %v1926
      %2490 = vmatprep.subr.mxu0 0.0
      %2491 = vmatpush2.msra.mxu0 %v1925
      %2492 = vmatprep.subr.mxu0 0.0
      %2493 = vmatpush2.msra.mxu0 %v1924
      %2494 = vmatprep.subr.mxu0 0.0
      %2495 = vmatpush2.msra.mxu0 %v1923
      %2496 = vmatprep.subr.mxu0 0.0
      %2497 = vmatpush2.msra.mxu0 %v1922
      %2498 = vmatprep.subr.mxu0 0.0
      %2499 = vmatpush2.msra.mxu0 %v1921
      %2500 = vmatprep.subr.mxu0 0.0
      %2501 = vmatpush2.msra.mxu0 %v1920
      %2502 = vmatprep.subr.mxu0 0.0
      %2503 = vmatpush2.msra.mxu0 %v1919
      %2504 = vmatprep.mubr.f32.mxu0 %v1556
      %2505 = vmatmul.mubr.f32.gmra.mxu0 %v1555
      %v2506 = vpop.f32.mrf.mxu0
      %v2507 = vadd.f32 %v2282, %v2506
      %v2508 = vpop.f32.mrf.mxu0
      %2509 = vmatprep.mubr.f32.mxu0 %v1565
      %2510 = vmatmul.mubr.f32.gmra.mxu0 %v1564
      %v2511 = vpop.f32.mrf.mxu0
      %v2512 = vadd.f32 %v2287, %v2511
      %v2513 = vpop.f32.mrf.mxu0
      %2514 = vmatprep.mubr.f32.mxu0 %v1574
      %2515 = vmatmul.mubr.f32.gmra.mxu0 %v1573
      %v2516 = vpop.f32.mrf.mxu0
      %v2517 = vadd.f32 %v2292, %v2516
      %v2518 = vpop.f32.mrf.mxu0
      %2519 = vmatprep.mubr.f32.mxu0 %v1583
      %2520 = vmatmul.mubr.f32.gmra.mxu0 %v1582
      %v2521 = vpop.f32.mrf.mxu0
      %v2522 = vadd.f32 %v2297, %v2521
      %v2523 = vpop.f32.mrf.mxu0
      %2524 = vmatprep.mubr.f32.mxu0 %v1592
      %2525 = vmatmul.mubr.f32.gmra.mxu0 %v1591
      %v2526 = vpop.f32.mrf.mxu0
      %v2527 = vadd.f32 %v2302, %v2526
      %v2528 = vpop.f32.mrf.mxu0
      %2529 = vmatprep.mubr.f32.mxu0 %v1601
      %2530 = vmatmul.mubr.f32.gmra.mxu0 %v1600
      %v2531 = vpop.f32.mrf.mxu0
      %v2532 = vadd.f32 %v2307, %v2531
      %v2533 = vpop.f32.mrf.mxu0
      %2534 = vmatprep.mubr.f32.mxu0 %v1610
      %2535 = vmatmul.mubr.f32.gmra.mxu0 %v1609
      %v2536 = vpop.f32.mrf.mxu0
      %v2537 = vadd.f32 %v2312, %v2536
      %v2538 = vpop.f32.mrf.mxu0
      %2539 = vmatprep.mubr.f32.mxu0 %v1619
      %2540 = vmatmul.mubr.f32.gmra.mxu0 %v1618
      %v2541 = vpop.f32.mrf.mxu0
      %v2542 = vadd.f32 %v2317, %v2541
      %v2543 = vpop.f32.mrf.mxu0
      %2544 = vmatprep.mubr.f32.mxu0 %v1628
      %2545 = vmatmul.mubr.f32.gmra.mxu0 %v1627
      %v2546 = vpop.f32.mrf.mxu0
      %v2547 = vadd.f32 %v2322, %v2546
      %v2548 = vpop.f32.mrf.mxu0
      %2549 = vmatprep.mubr.f32.mxu0 %v1637
      %2550 = vmatmul.mubr.f32.gmra.mxu0 %v1636
      %v2551 = vpop.f32.mrf.mxu0
      %v2552 = vadd.f32 %v2327, %v2551
      %v2553 = vpop.f32.mrf.mxu0
      %2554 = vmatprep.mubr.f32.mxu0 %v1646
      %2555 = vmatmul.mubr.f32.gmra.mxu0 %v1645
      %v2556 = vpop.f32.mrf.mxu0
      %v2557 = vadd.f32 %v2332, %v2556
      %v2558 = vpop.f32.mrf.mxu0
      %2559 = vmatprep.mubr.f32.mxu0 %v1655
      %2560 = vmatmul.mubr.f32.gmra.mxu0 %v1654
      %v2561 = vpop.f32.mrf.mxu0
      %v2562 = vadd.f32 %v2337, %v2561
      %v2563 = vpop.f32.mrf.mxu0
      %2564 = vmatprep.mubr.f32.mxu0 %v1664
      %2565 = vmatmul.mubr.f32.gmra.mxu0 %v1663
      %v2566 = vpop.f32.mrf.mxu0
      %v2567 = vadd.f32 %v2342, %v2566
      %v2568 = vpop.f32.mrf.mxu0
      %2569 = vmatprep.mubr.f32.mxu0 %v1673
      %2570 = vmatmul.mubr.f32.gmra.mxu0 %v1672
      %v2571 = vpop.f32.mrf.mxu0
      %v2572 = vadd.f32 %v2347, %v2571
      %v2573 = vpop.f32.mrf.mxu0
      %2574 = vmatprep.mubr.f32.mxu0 %v1682
      %2575 = vmatmul.mubr.f32.gmra.mxu0 %v1681
      %v2576 = vpop.f32.mrf.mxu0
      %v2577 = vadd.f32 %v2352, %v2576
      %v2578 = vpop.f32.mrf.mxu0
      %2579 = vmatprep.mubr.f32.mxu0 %v1691
      %2580 = vmatmul.mubr.f32.gmra.mxu0 %v1690
      %v2581 = vpop.f32.mrf.mxu0
      %v2582 = vadd.f32 %v2357, %v2581
      %v2583 = vpop.f32.mrf.mxu0
      %2584 = vmatprep.mubr.f32.mxu0 %v1700
      %2585 = vmatmul.mubr.f32.gmra.mxu0 %v1699
      %v2586 = vpop.f32.mrf.mxu0
      %v2587 = vadd.f32 %v2362, %v2586
      %v2588 = vpop.f32.mrf.mxu0
      %2589 = vmatprep.mubr.f32.mxu0 %v1709
      %2590 = vmatmul.mubr.f32.gmra.mxu0 %v1708
      %v2591 = vpop.f32.mrf.mxu0
      %v2592 = vadd.f32 %v2367, %v2591
      %v2593 = vpop.f32.mrf.mxu0
      %2594 = vmatprep.mubr.f32.mxu0 %v1718
      %2595 = vmatmul.mubr.f32.gmra.mxu0 %v1717
      %v2596 = vpop.f32.mrf.mxu0
      %v2597 = vadd.f32 %v2372, %v2596
      %v2598 = vpop.f32.mrf.mxu0
      %2599 = vmatprep.mubr.f32.mxu0 %v1727
      %2600 = vmatmul.mubr.f32.gmra.mxu0 %v1726
      %v2601 = vpop.f32.mrf.mxu0
      %v2602 = vadd.f32 %v2377, %v2601
      %v2603 = vpop.f32.mrf.mxu0
      %2604 = vmatprep.mubr.f32.mxu0 %v1736
      %2605 = vmatmul.mubr.f32.gmra.mxu0 %v1735
      %v2606 = vpop.f32.mrf.mxu0
      %v2607 = vadd.f32 %v2382, %v2606
      %v2608 = vpop.f32.mrf.mxu0
      %2609 = vmatprep.mubr.f32.mxu0 %v1745
      %2610 = vmatmul.mubr.f32.gmra.mxu0 %v1744
      %v2611 = vpop.f32.mrf.mxu0
      %v2612 = vadd.f32 %v2387, %v2611
      %v2613 = vpop.f32.mrf.mxu0
      %2614 = vmatprep.mubr.f32.mxu0 %v1754
      %2615 = vmatmul.mubr.f32.gmra.mxu0 %v1753
      %v2616 = vpop.f32.mrf.mxu0
      %v2617 = vadd.f32 %v2392, %v2616
      %v2618 = vpop.f32.mrf.mxu0
      %2619 = vmatprep.mubr.f32.mxu0 %v1763
      %2620 = vmatmul.mubr.f32.gmra.mxu0 %v1762
      %v2621 = vpop.f32.mrf.mxu0
      %v2622 = vadd.f32 %v2397, %v2621
      %v2623 = vpop.f32.mrf.mxu0
      %2624 = vmatprep.mubr.f32.mxu0 %v1772
      %2625 = vmatmul.mubr.f32.gmra.mxu0 %v1771
      %v2626 = vpop.f32.mrf.mxu0
      %v2627 = vadd.f32 %v2402, %v2626
      %v2628 = vpop.f32.mrf.mxu0
      %2629 = vmatprep.mubr.f32.mxu0 %v1781
      %2630 = vmatmul.mubr.f32.gmra.mxu0 %v1780
      %v2631 = vpop.f32.mrf.mxu0
      %v2632 = vadd.f32 %v2407, %v2631
      %v2633 = vpop.f32.mrf.mxu0
      %2634 = vmatprep.mubr.f32.mxu0 %v1790
      %2635 = vmatmul.mubr.f32.gmra.mxu0 %v1789
      %v2636 = vpop.f32.mrf.mxu0
      %v2637 = vadd.f32 %v2412, %v2636
      %v2638 = vpop.f32.mrf.mxu0
      %2639 = vmatprep.mubr.f32.mxu0 %v1799
      %2640 = vmatmul.mubr.f32.gmra.mxu0 %v1798
      %v2641 = vpop.f32.mrf.mxu0
      %v2642 = vadd.f32 %v2417, %v2641
      %v2643 = vpop.f32.mrf.mxu0
      %2644 = vmatprep.mubr.f32.mxu0 %v1808
      %2645 = vmatmul.mubr.f32.gmra.mxu0 %v1807
      %v2646 = vpop.f32.mrf.mxu0
      %v2647 = vadd.f32 %v2422, %v2646
      %v2648 = vpop.f32.mrf.mxu0
      %2649 = vmatprep.mubr.f32.mxu0 %v1817
      %2650 = vmatmul.mubr.f32.gmra.mxu0 %v1816
      %v2651 = vpop.f32.mrf.mxu0
      %v2652 = vadd.f32 %v2427, %v2651
      %v2653 = vpop.f32.mrf.mxu0
      %2654 = vmatprep.mubr.f32.mxu0 %v1826
      %2655 = vmatmul.mubr.f32.gmra.mxu0 %v1825
      %v2656 = vpop.f32.mrf.mxu0
      %v2657 = vadd.f32 %v2432, %v2656
      %v2658 = vpop.f32.mrf.mxu0
      %2659 = vmatprep.mubr.f32.mxu0 %v1835
      %2660 = vmatmul.mubr.f32.gmra.mxu0 %v1834
      %v2661 = vpop.f32.mrf.mxu0
      %v2662 = vadd.f32 %v2437, %v2661
      %v2663 = vpop.f32.mrf.mxu0
      %2664 = vdwg.mxu0
      %2665 = vmatprep.subr.mxu0 0.0
      %2666 = vmatpush1.msra.mxu0 %v1950
      %2667 = vmatprep.subr.mxu0 0.0
      %2668 = vmatpush1.msra.mxu0 %v1949
      %2669 = vmatprep.subr.mxu0 0.0
      %2670 = vmatpush1.msra.mxu0 %v1948
      %2671 = vmatprep.subr.mxu0 0.0
      %2672 = vmatpush1.msra.mxu0 %v1947
      %2673 = vmatprep.subr.mxu0 0.0
      %2674 = vmatpush1.msra.mxu0 %v1946
      %2675 = vmatprep.subr.mxu0 0.0
      %2676 = vmatpush1.msra.mxu0 %v1945
      %2677 = vmatprep.subr.mxu0 0.0
      %2678 = vmatpush1.msra.mxu0 %v1944
      %2679 = vmatprep.subr.mxu0 0.0
      %2680 = vmatpush1.msra.mxu0 %v1943
      %2681 = vmatprep.subr.mxu0 0.0
      %2682 = vmatpush1.msra.mxu0 %v1942
      %2683 = vmatprep.subr.mxu0 0.0
      %2684 = vmatpush1.msra.mxu0 %v1941
      %2685 = vmatprep.subr.mxu0 0.0
      %2686 = vmatpush1.msra.mxu0 %v1940
      %2687 = vmatprep.subr.mxu0 0.0
      %2688 = vmatpush1.msra.mxu0 %v1939
      %2689 = vmatprep.subr.mxu0 0.0
      %2690 = vmatpush1.msra.mxu0 %v1938
      %2691 = vmatprep.subr.mxu0 0.0
      %2692 = vmatpush1.msra.mxu0 %v1937
      %2693 = vmatprep.subr.mxu0 0.0
      %2694 = vmatpush1.msra.mxu0 %v1936
      %2695 = vmatprep.subr.mxu0 0.0
      %2696 = vmatpush1.msra.mxu0 %v1935
      %2697 = vmatprep.subr.mxu0 0.0
      %2698 = vmatpush2.msra.mxu0 %v1966
      %2699 = vmatprep.subr.mxu0 0.0
      %2700 = vmatpush2.msra.mxu0 %v1965
      %2701 = vmatprep.subr.mxu0 0.0
      %2702 = vmatpush2.msra.mxu0 %v1964
      %2703 = vmatprep.subr.mxu0 0.0
      %2704 = vmatpush2.msra.mxu0 %v1963
      %2705 = vmatprep.subr.mxu0 0.0
      %2706 = vmatpush2.msra.mxu0 %v1962
      %2707 = vmatprep.subr.mxu0 0.0
      %2708 = vmatpush2.msra.mxu0 %v1961
      %2709 = vmatprep.subr.mxu0 0.0
      %2710 = vmatpush2.msra.mxu0 %v1960
      %2711 = vmatprep.subr.mxu0 0.0
      %2712 = vmatpush2.msra.mxu0 %v1959
      %2713 = vmatprep.subr.mxu0 0.0
      %2714 = vmatpush2.msra.mxu0 %v1958
      %2715 = vmatprep.subr.mxu0 0.0
      %2716 = vmatpush2.msra.mxu0 %v1957
      %2717 = vmatprep.subr.mxu0 0.0
      %2718 = vmatpush2.msra.mxu0 %v1956
      %2719 = vmatprep.subr.mxu0 0.0
      %2720 = vmatpush2.msra.mxu0 %v1955
      %2721 = vmatprep.subr.mxu0 0.0
      %2722 = vmatpush2.msra.mxu0 %v1954
      %2723 = vmatprep.subr.mxu0 0.0
      %2724 = vmatpush2.msra.mxu0 %v1953
      %2725 = vmatprep.subr.mxu0 0.0
      %2726 = vmatpush2.msra.mxu0 %v1952
      %2727 = vmatprep.subr.mxu0 0.0
      %2728 = vmatpush2.msra.mxu0 %v1951
      %2729 = vmatprep.mubr.f32.mxu0 %v1558
      %2730 = vmatmul.mubr.f32.gmra.mxu0 %v1557
      %v2731 = vpop.f32.mrf.mxu0
      %v2732 = vadd.f32 %v2507, %v2731
      %v2733 = vpop.f32.mrf.mxu0
      %2734 = vmatprep.mubr.f32.mxu0 %v1567
      %2735 = vmatmul.mubr.f32.gmra.mxu0 %v1566
      %v2736 = vpop.f32.mrf.mxu0
      %v2737 = vadd.f32 %v2512, %v2736
      %v2738 = vpop.f32.mrf.mxu0
      %2739 = vmatprep.mubr.f32.mxu0 %v1576
      %2740 = vmatmul.mubr.f32.gmra.mxu0 %v1575
      %v2741 = vpop.f32.mrf.mxu0
      %v2742 = vadd.f32 %v2517, %v2741
      %v2743 = vpop.f32.mrf.mxu0
      %2744 = vmatprep.mubr.f32.mxu0 %v1585
      %2745 = vmatmul.mubr.f32.gmra.mxu0 %v1584
      %v2746 = vpop.f32.mrf.mxu0
      %v2747 = vadd.f32 %v2522, %v2746
      %v2748 = vpop.f32.mrf.mxu0
      %2749 = vmatprep.mubr.f32.mxu0 %v1594
      %2750 = vmatmul.mubr.f32.gmra.mxu0 %v1593
      %v2751 = vpop.f32.mrf.mxu0
      %v2752 = vadd.f32 %v2527, %v2751
      %v2753 = vpop.f32.mrf.mxu0
      %2754 = vmatprep.mubr.f32.mxu0 %v1603
      %2755 = vmatmul.mubr.f32.gmra.mxu0 %v1602
      %v2756 = vpop.f32.mrf.mxu0
      %v2757 = vadd.f32 %v2532, %v2756
      %v2758 = vpop.f32.mrf.mxu0
      %2759 = vmatprep.mubr.f32.mxu0 %v1612
      %2760 = vmatmul.mubr.f32.gmra.mxu0 %v1611
      %v2761 = vpop.f32.mrf.mxu0
      %v2762 = vadd.f32 %v2537, %v2761
      %v2763 = vpop.f32.mrf.mxu0
      %2764 = vmatprep.mubr.f32.mxu0 %v1621
      %2765 = vmatmul.mubr.f32.gmra.mxu0 %v1620
      %v2766 = vpop.f32.mrf.mxu0
      %v2767 = vadd.f32 %v2542, %v2766
      %v2768 = vpop.f32.mrf.mxu0
      %2769 = vmatprep.mubr.f32.mxu0 %v1630
      %2770 = vmatmul.mubr.f32.gmra.mxu0 %v1629
      %v2771 = vpop.f32.mrf.mxu0
      %v2772 = vadd.f32 %v2547, %v2771
      %v2773 = vpop.f32.mrf.mxu0
      %2774 = vmatprep.mubr.f32.mxu0 %v1639
      %2775 = vmatmul.mubr.f32.gmra.mxu0 %v1638
      %v2776 = vpop.f32.mrf.mxu0
      %v2777 = vadd.f32 %v2552, %v2776
      %v2778 = vpop.f32.mrf.mxu0
      %2779 = vmatprep.mubr.f32.mxu0 %v1648
      %2780 = vmatmul.mubr.f32.gmra.mxu0 %v1647
      %v2781 = vpop.f32.mrf.mxu0
      %v2782 = vadd.f32 %v2557, %v2781
      %v2783 = vpop.f32.mrf.mxu0
      %2784 = vmatprep.mubr.f32.mxu0 %v1657
      %2785 = vmatmul.mubr.f32.gmra.mxu0 %v1656
      %v2786 = vpop.f32.mrf.mxu0
      %v2787 = vadd.f32 %v2562, %v2786
      %v2788 = vpop.f32.mrf.mxu0
      %2789 = vmatprep.mubr.f32.mxu0 %v1666
      %2790 = vmatmul.mubr.f32.gmra.mxu0 %v1665
      %v2791 = vpop.f32.mrf.mxu0
      %v2792 = vadd.f32 %v2567, %v2791
      %v2793 = vpop.f32.mrf.mxu0
      %2794 = vmatprep.mubr.f32.mxu0 %v1675
      %2795 = vmatmul.mubr.f32.gmra.mxu0 %v1674
      %v2796 = vpop.f32.mrf.mxu0
      %v2797 = vadd.f32 %v2572, %v2796
      %v2798 = vpop.f32.mrf.mxu0
      %2799 = vmatprep.mubr.f32.mxu0 %v1684
      %2800 = vmatmul.mubr.f32.gmra.mxu0 %v1683
      %v2801 = vpop.f32.mrf.mxu0
      %v2802 = vadd.f32 %v2577, %v2801
      %v2803 = vpop.f32.mrf.mxu0
      %2804 = vmatprep.mubr.f32.mxu0 %v1693
      %2805 = vmatmul.mubr.f32.gmra.mxu0 %v1692
      %v2806 = vpop.f32.mrf.mxu0
      %v2807 = vadd.f32 %v2582, %v2806
      %v2808 = vpop.f32.mrf.mxu0
      %2809 = vmatprep.mubr.f32.mxu0 %v1702
      %2810 = vmatmul.mubr.f32.gmra.mxu0 %v1701
      %v2811 = vpop.f32.mrf.mxu0
      %v2812 = vadd.f32 %v2587, %v2811
      %v2813 = vpop.f32.mrf.mxu0
      %2814 = vmatprep.mubr.f32.mxu0 %v1711
      %2815 = vmatmul.mubr.f32.gmra.mxu0 %v1710
      %v2816 = vpop.f32.mrf.mxu0
      %v2817 = vadd.f32 %v2592, %v2816
      %v2818 = vpop.f32.mrf.mxu0
      %2819 = vmatprep.mubr.f32.mxu0 %v1720
      %2820 = vmatmul.mubr.f32.gmra.mxu0 %v1719
      %v2821 = vpop.f32.mrf.mxu0
      %v2822 = vadd.f32 %v2597, %v2821
      %v2823 = vpop.f32.mrf.mxu0
      %2824 = vmatprep.mubr.f32.mxu0 %v1729
      %2825 = vmatmul.mubr.f32.gmra.mxu0 %v1728
      %v2826 = vpop.f32.mrf.mxu0
      %v2827 = vadd.f32 %v2602, %v2826
      %v2828 = vpop.f32.mrf.mxu0
      %2829 = vmatprep.mubr.f32.mxu0 %v1738
      %2830 = vmatmul.mubr.f32.gmra.mxu0 %v1737
      %v2831 = vpop.f32.mrf.mxu0
      %v2832 = vadd.f32 %v2607, %v2831
      %v2833 = vpop.f32.mrf.mxu0
      %2834 = vmatprep.mubr.f32.mxu0 %v1747
      %2835 = vmatmul.mubr.f32.gmra.mxu0 %v1746
      %v2836 = vpop.f32.mrf.mxu0
      %v2837 = vadd.f32 %v2612, %v2836
      %v2838 = vpop.f32.mrf.mxu0
      %2839 = vmatprep.mubr.f32.mxu0 %v1756
      %2840 = vmatmul.mubr.f32.gmra.mxu0 %v1755
      %v2841 = vpop.f32.mrf.mxu0
      %v2842 = vadd.f32 %v2617, %v2841
      %v2843 = vpop.f32.mrf.mxu0
      %2844 = vmatprep.mubr.f32.mxu0 %v1765
      %2845 = vmatmul.mubr.f32.gmra.mxu0 %v1764
      %v2846 = vpop.f32.mrf.mxu0
      %v2847 = vadd.f32 %v2622, %v2846
      %v2848 = vpop.f32.mrf.mxu0
      %2849 = vmatprep.mubr.f32.mxu0 %v1774
      %2850 = vmatmul.mubr.f32.gmra.mxu0 %v1773
      %v2851 = vpop.f32.mrf.mxu0
      %v2852 = vadd.f32 %v2627, %v2851
      %v2853 = vpop.f32.mrf.mxu0
      %2854 = vmatprep.mubr.f32.mxu0 %v1783
      %2855 = vmatmul.mubr.f32.gmra.mxu0 %v1782
      %v2856 = vpop.f32.mrf.mxu0
      %v2857 = vadd.f32 %v2632, %v2856
      %v2858 = vpop.f32.mrf.mxu0
      %2859 = vmatprep.mubr.f32.mxu0 %v1792
      %2860 = vmatmul.mubr.f32.gmra.mxu0 %v1791
      %v2861 = vpop.f32.mrf.mxu0
      %v2862 = vadd.f32 %v2637, %v2861
      %v2863 = vpop.f32.mrf.mxu0
      %2864 = vmatprep.mubr.f32.mxu0 %v1801
      %2865 = vmatmul.mubr.f32.gmra.mxu0 %v1800
      %v2866 = vpop.f32.mrf.mxu0
      %v2867 = vadd.f32 %v2642, %v2866
      %v2868 = vpop.f32.mrf.mxu0
      %2869 = vmatprep.mubr.f32.mxu0 %v1810
      %2870 = vmatmul.mubr.f32.gmra.mxu0 %v1809
      %v2871 = vpop.f32.mrf.mxu0
      %v2872 = vadd.f32 %v2647, %v2871
      %v2873 = vpop.f32.mrf.mxu0
      %2874 = vmatprep.mubr.f32.mxu0 %v1819
      %2875 = vmatmul.mubr.f32.gmra.mxu0 %v1818
      %v2876 = vpop.f32.mrf.mxu0
      %v2877 = vadd.f32 %v2652, %v2876
      %v2878 = vpop.f32.mrf.mxu0
      %2879 = vmatprep.mubr.f32.mxu0 %v1828
      %2880 = vmatmul.mubr.f32.gmra.mxu0 %v1827
      %v2881 = vpop.f32.mrf.mxu0
      %v2882 = vadd.f32 %v2657, %v2881
      %v2883 = vpop.f32.mrf.mxu0
      %2884 = vmatprep.mubr.f32.mxu0 %v1837
      %2885 = vmatmul.mubr.f32.gmra.mxu0 %v1836
      %v2886 = vpop.f32.mrf.mxu0
      %v2887 = vadd.f32 %v2662, %v2886
      %v2888 = vpop.f32.mrf.mxu0
      %2889 = vdwg.mxu0
      %2890 = vmatprep.subr.mxu0 0.0
      %2891 = vmatpush1.msra.mxu0 %v1982
      %2892 = vmatprep.subr.mxu0 0.0
      %2893 = vmatpush1.msra.mxu0 %v1981
      %2894 = vmatprep.subr.mxu0 0.0
      %2895 = vmatpush1.msra.mxu0 %v1980
      %2896 = vmatprep.subr.mxu0 0.0
      %2897 = vmatpush1.msra.mxu0 %v1979
      %2898 = vmatprep.subr.mxu0 0.0
      %2899 = vmatpush1.msra.mxu0 %v1978
      %2900 = vmatprep.subr.mxu0 0.0
      %2901 = vmatpush1.msra.mxu0 %v1977
      %2902 = vmatprep.subr.mxu0 0.0
      %2903 = vmatpush1.msra.mxu0 %v1976
      %2904 = vmatprep.subr.mxu0 0.0
      %2905 = vmatpush1.msra.mxu0 %v1975
      %2906 = vmatprep.subr.mxu0 0.0
      %2907 = vmatpush1.msra.mxu0 %v1974
      %2908 = vmatprep.subr.mxu0 0.0
      %2909 = vmatpush1.msra.mxu0 %v1973
      %2910 = vmatprep.subr.mxu0 0.0
      %2911 = vmatpush1.msra.mxu0 %v1972
      %2912 = vmatprep.subr.mxu0 0.0
      %2913 = vmatpush1.msra.mxu0 %v1971
      %2914 = vmatprep.subr.mxu0 0.0
      %2915 = vmatpush1.msra.mxu0 %v1970
      %2916 = vmatprep.subr.mxu0 0.0
      %2917 = vmatpush1.msra.mxu0 %v1969
      %2918 = vmatprep.subr.mxu0 0.0
      %2919 = vmatpush1.msra.mxu0 %v1968
      %2920 = vmatprep.subr.mxu0 0.0
      %2921 = vmatpush1.msra.mxu0 %v1967
      %2922 = vmatprep.subr.mxu0 0.0
      %2923 = vmatpush2.msra.mxu0 0.0
      %2924 = vmatprep.subr.mxu0 0.0
      %2925 = vmatpush2.msra.mxu0 0.0
      %2926 = vmatprep.subr.mxu0 0.0
      %2927 = vmatpush2.msra.mxu0 0.0
      %2928 = vmatprep.subr.mxu0 0.0
      %2929 = vmatpush2.msra.mxu0 0.0
      %2930 = vmatprep.subr.mxu0 0.0
      %2931 = vmatpush2.msra.mxu0 0.0
      %2932 = vmatprep.subr.mxu0 0.0
      %2933 = vmatpush2.msra.mxu0 0.0
      %2934 = vmatprep.subr.mxu0 0.0
      %2935 = vmatpush2.msra.mxu0 0.0
      %2936 = vmatprep.subr.mxu0 0.0
      %2937 = vmatpush2.msra.mxu0 0.0
      %2938 = vmatprep.subr.mxu0 0.0
      %2939 = vmatpush2.msra.mxu0 0.0
      %2940 = vmatprep.subr.mxu0 0.0
      %2941 = vmatpush2.msra.mxu0 0.0
      %2942 = vmatprep.subr.mxu0 0.0
      %2943 = vmatpush2.msra.mxu0 0.0
      %2944 = vmatprep.subr.mxu0 0.0
      %2945 = vmatpush2.msra.mxu0 0.0
      %2946 = vmatprep.subr.mxu0 0.0
      %2947 = vmatpush2.msra.mxu0 0.0
      %2948 = vmatprep.subr.mxu0 0.0
      %2949 = vmatpush2.msra.mxu0 0.0
      %2950 = vmatprep.subr.mxu0 0.0
      %2951 = vmatpush2.msra.mxu0 0.0
      %2952 = vmatprep.subr.mxu0 0.0
      %2953 = vmatpush2.msra.mxu0 0.0
      %2954 = vmatprep.mubr.f32.mxu0 0.0
      %2955 = vmatmul.mubr.f32.gmra.mxu0 %v1559
      %v2956 = vpop.f32.mrf.mxu0
      %v2957 = vadd.f32 %v2732, %v2956
      %v2958 = vpop.f32.mrf.mxu0
      %2959 = vmatprep.mubr.f32.mxu0 0.0
      %2960 = vmatmul.mubr.f32.gmra.mxu0 %v1568
      %v2961 = vpop.f32.mrf.mxu0
      %v2962 = vadd.f32 %v2737, %v2961
      %v2963 = vpop.f32.mrf.mxu0
      %2964 = vmatprep.mubr.f32.mxu0 0.0
      %2965 = vmatmul.mubr.f32.gmra.mxu0 %v1577
      %v2966 = vpop.f32.mrf.mxu0
      %v2967 = vadd.f32 %v2742, %v2966
      %v2968 = vpop.f32.mrf.mxu0
      %2969 = vmatprep.mubr.f32.mxu0 0.0
      %2970 = vmatmul.mubr.f32.gmra.mxu0 %v1586
      %v2971 = vpop.f32.mrf.mxu0
      %v2972 = vadd.f32 %v2747, %v2971
      %v2973 = vpop.f32.mrf.mxu0
      %2974 = vmatprep.mubr.f32.mxu0 0.0
      %2975 = vmatmul.mubr.f32.gmra.mxu0 %v1595
      %v2976 = vpop.f32.mrf.mxu0
      %v2977 = vadd.f32 %v2752, %v2976
      %v2978 = vpop.f32.mrf.mxu0
      %2979 = vmatprep.mubr.f32.mxu0 0.0
      %2980 = vmatmul.mubr.f32.gmra.mxu0 %v1604
      %v2981 = vpop.f32.mrf.mxu0
      %v2982 = vadd.f32 %v2757, %v2981
      %v2983 = vpop.f32.mrf.mxu0
      %2984 = vmatprep.mubr.f32.mxu0 0.0
      %2985 = vmatmul.mubr.f32.gmra.mxu0 %v1613
      %v2986 = vpop.f32.mrf.mxu0
      %v2987 = vadd.f32 %v2762, %v2986
      %v2988 = vpop.f32.mrf.mxu0
      %2989 = vmatprep.mubr.f32.mxu0 0.0
      %2990 = vmatmul.mubr.f32.gmra.mxu0 %v1622
      %v2991 = vpop.f32.mrf.mxu0
      %v2992 = vadd.f32 %v2767, %v2991
      %v2993 = vpop.f32.mrf.mxu0
      %2994 = vmatprep.mubr.f32.mxu0 0.0
      %2995 = vmatmul.mubr.f32.gmra.mxu0 %v1631
      %v2996 = vpop.f32.mrf.mxu0
      %v2997 = vadd.f32 %v2772, %v2996
      %v2998 = vpop.f32.mrf.mxu0
      %2999 = vmatprep.mubr.f32.mxu0 0.0
      %3000 = vmatmul.mubr.f32.gmra.mxu0 %v1640
      %v3001 = vpop.f32.mrf.mxu0
      %v3002 = vadd.f32 %v2777, %v3001
      %v3003 = vpop.f32.mrf.mxu0
      %3004 = vmatprep.mubr.f32.mxu0 0.0
      %3005 = vmatmul.mubr.f32.gmra.mxu0 %v1649
      %v3006 = vpop.f32.mrf.mxu0
      %v3007 = vadd.f32 %v2782, %v3006
      %v3008 = vpop.f32.mrf.mxu0
      %3009 = vmatprep.mubr.f32.mxu0 0.0
      %3010 = vmatmul.mubr.f32.gmra.mxu0 %v1658
      %v3011 = vpop.f32.mrf.mxu0
      %v3012 = vadd.f32 %v2787, %v3011
      %v3013 = vpop.f32.mrf.mxu0
      %3014 = vmatprep.mubr.f32.mxu0 0.0
      %3015 = vmatmul.mubr.f32.gmra.mxu0 %v1667
      %v3016 = vpop.f32.mrf.mxu0
      %v3017 = vadd.f32 %v2792, %v3016
      %v3018 = vpop.f32.mrf.mxu0
      %3019 = vmatprep.mubr.f32.mxu0 0.0
      %3020 = vmatmul.mubr.f32.gmra.mxu0 %v1676
      %v3021 = vpop.f32.mrf.mxu0
      %v3022 = vadd.f32 %v2797, %v3021
      %v3023 = vpop.f32.mrf.mxu0
      %3024 = vmatprep.mubr.f32.mxu0 0.0
      %3025 = vmatmul.mubr.f32.gmra.mxu0 %v1685
      %v3026 = vpop.f32.mrf.mxu0
      %v3027 = vadd.f32 %v2802, %v3026
      %v3028 = vpop.f32.mrf.mxu0
      %3029 = vmatprep.mubr.f32.mxu0 0.0
      %3030 = vmatmul.mubr.f32.gmra.mxu0 %v1694
      %v3031 = vpop.f32.mrf.mxu0
      %v3032 = vadd.f32 %v2807, %v3031
      %v3033 = vpop.f32.mrf.mxu0
      %3034 = vmatprep.mubr.f32.mxu0 0.0
      %3035 = vmatmul.mubr.f32.gmra.mxu0 %v1703
      %v3036 = vpop.f32.mrf.mxu0
      %v3037 = vadd.f32 %v2812, %v3036
      %v3038 = vpop.f32.mrf.mxu0
      %3039 = vmatprep.mubr.f32.mxu0 0.0
      %3040 = vmatmul.mubr.f32.gmra.mxu0 %v1712
      %v3041 = vpop.f32.mrf.mxu0
      %v3042 = vadd.f32 %v2817, %v3041
      %v3043 = vpop.f32.mrf.mxu0
      %3044 = vmatprep.mubr.f32.mxu0 0.0
      %3045 = vmatmul.mubr.f32.gmra.mxu0 %v1721
      %v3046 = vpop.f32.mrf.mxu0
      %v3047 = vadd.f32 %v2822, %v3046
      %v3048 = vpop.f32.mrf.mxu0
      %3049 = vmatprep.mubr.f32.mxu0 0.0
      %3050 = vmatmul.mubr.f32.gmra.mxu0 %v1730
      %v3051 = vpop.f32.mrf.mxu0
      %v3052 = vadd.f32 %v2827, %v3051
      %v3053 = vpop.f32.mrf.mxu0
      %3054 = vmatprep.mubr.f32.mxu0 0.0
      %3055 = vmatmul.mubr.f32.gmra.mxu0 %v1739
      %v3056 = vpop.f32.mrf.mxu0
      %v3057 = vadd.f32 %v2832, %v3056
      %v3058 = vpop.f32.mrf.mxu0
      %3059 = vmatprep.mubr.f32.mxu0 0.0
      %3060 = vmatmul.mubr.f32.gmra.mxu0 %v1748
      %v3061 = vpop.f32.mrf.mxu0
      %v3062 = vadd.f32 %v2837, %v3061
      %v3063 = vpop.f32.mrf.mxu0
      %3064 = vmatprep.mubr.f32.mxu0 0.0
      %3065 = vmatmul.mubr.f32.gmra.mxu0 %v1757
      %v3066 = vpop.f32.mrf.mxu0
      %v3067 = vadd.f32 %v2842, %v3066
      %v3068 = vpop.f32.mrf.mxu0
      %3069 = vmatprep.mubr.f32.mxu0 0.0
      %3070 = vmatmul.mubr.f32.gmra.mxu0 %v1766
      %v3071 = vpop.f32.mrf.mxu0
      %v3072 = vadd.f32 %v2847, %v3071
      %v3073 = vpop.f32.mrf.mxu0
      %3074 = vmatprep.mubr.f32.mxu0 0.0
      %3075 = vmatmul.mubr.f32.gmra.mxu0 %v1775
      %v3076 = vpop.f32.mrf.mxu0
      %v3077 = vadd.f32 %v2852, %v3076
      %v3078 = vpop.f32.mrf.mxu0
      %3079 = vmatprep.mubr.f32.mxu0 0.0
      %3080 = vmatmul.mubr.f32.gmra.mxu0 %v1784
      %v3081 = vpop.f32.mrf.mxu0
      %v3082 = vadd.f32 %v2857, %v3081
      %v3083 = vpop.f32.mrf.mxu0
      %3084 = vmatprep.mubr.f32.mxu0 0.0
      %3085 = vmatmul.mubr.f32.gmra.mxu0 %v1793
      %v3086 = vpop.f32.mrf.mxu0
      %v3087 = vadd.f32 %v2862, %v3086
      %v3088 = vpop.f32.mrf.mxu0
      %3089 = vmatprep.mubr.f32.mxu0 0.0
      %3090 = vmatmul.mubr.f32.gmra.mxu0 %v1802
      %v3091 = vpop.f32.mrf.mxu0
      %v3092 = vadd.f32 %v2867, %v3091
      %v3093 = vpop.f32.mrf.mxu0
      %3094 = vmatprep.mubr.f32.mxu0 0.0
      %3095 = vmatmul.mubr.f32.gmra.mxu0 %v1811
      %v3096 = vpop.f32.mrf.mxu0
      %v3097 = vadd.f32 %v2872, %v3096
      %v3098 = vpop.f32.mrf.mxu0
      %3099 = vmatprep.mubr.f32.mxu0 0.0
      %3100 = vmatmul.mubr.f32.gmra.mxu0 %v1820
      %v3101 = vpop.f32.mrf.mxu0
      %v3102 = vadd.f32 %v2877, %v3101
      %v3103 = vpop.f32.mrf.mxu0
      %3104 = vmatprep.mubr.f32.mxu0 0.0
      %3105 = vmatmul.mubr.f32.gmra.mxu0 %v1829
      %v3106 = vpop.f32.mrf.mxu0
      %v3107 = vadd.f32 %v2882, %v3106
      %v3108 = vpop.f32.mrf.mxu0
      %3109 = vmatprep.mubr.f32.mxu0 0.0
      %3110 = vmatmul.mubr.f32.gmra.mxu0 %v1838
      %v3111 = vpop.f32.mrf.mxu0
      %v3112 = vadd.f32 %v2887, %v3111
      %v3113 = vpop.f32.mrf.mxu0
      %3114 = vdwg.mxu0
      %v3115 = vmax.f32 %v2957, 0.0
      %v3116 = vmax.f32 %v2962, 0.0
      %v3117 = vmax.f32 %v2967, 0.0
      %v3118 = vmax.f32 %v2972, 0.0
      %v3119 = vmax.f32 %v2977, 0.0
      %v3120 = vmax.f32 %v2982, 0.0
      %v3121 = vmax.f32 %v2987, 0.0
      %v3122 = vmax.f32 %v2992, 0.0
      %v3123 = vmax.f32 %v2997, 0.0
      %v3124 = vmax.f32 %v3002, 0.0
      %v3125 = vmax.f32 %v3007, 0.0
      %v3126 = vmax.f32 %v3012, 0.0
      %v3127 = vmax.f32 %v3017, 0.0
      %v3128 = vmax.f32 %v3022, 0.0
      %v3129 = vmax.f32 %v3027, 0.0
      %v3130 = vmax.f32 %v3032, 0.0
      %v3131 = vmax.f32 %v3037, 0.0
      %v3132 = vmax.f32 %v3042, 0.0
      %v3133 = vmax.f32 %v3047, 0.0
      %v3134 = vmax.f32 %v3052, 0.0
      %v3135 = vmax.f32 %v3057, 0.0
      %v3136 = vmax.f32 %v3062, 0.0
      %v3137 = vmax.f32 %v3067, 0.0
      %v3138 = vmax.f32 %v3072, 0.0
      %v3139 = vmax.f32 %v3077, 0.0
      %v3140 = vmax.f32 %v3082, 0.0
      %v3141 = vmax.f32 %v3087, 0.0
      %v3142 = vmax.f32 %v3092, 0.0
      %v3143 = vmax.f32 %v3097, 0.0
      %v3144 = vmax.f32 %v3102, 0.0
      %v3145 = vmax.f32 %v3107, 0.0
      %v3146 = vmax.f32 %v3112, 0.0
      %v3147 = vld [vmem:[%s6] sm:$0xff]
      %v3148 = vld [vmem:[%s6 + $0x8] sm:$0xff]
      %v3149 = vld [vmem:[%s6 + $0x10] sm:$0xff]
      %v3150 = vld [vmem:[%s6 + $0x18] sm:$0xff]
      %v3151 = vld [vmem:[%s6 + $0x20] sm:$0xff]
      %v3152 = vld [vmem:[%s6 + $0x28] sm:$0xff]
      %v3153 = vld [vmem:[%s6 + $0x30] sm:$0xff]
      %v3154 = vld [vmem:[%s6 + $0x38] sm:$0xff]
      %v3155 = vld [vmem:[%s7] sm:$0x1]
      %v3157 = vlaneseq
      %v3158 = vshrl.u32 %v3157, 7
      %v3159 = vsub.s32 0, %v3158
      %v3160 = vrot.slane %v3155, %v3159
      %vm3162 = vcmask 523264
      %v3164 = vsel %vm3162, %v3115, 0
      %v3167 = vsel %vm3162, %v3116, 0
      %v3170 = vsel %vm3162, %v3117, 0
      %v3173 = vsel %vm3162, %v3118, 0
      %v3176 = vsel %vm3162, %v3119, 0
      %v3179 = vsel %vm3162, %v3120, 0
      %v3182 = vsel %vm3162, %v3121, 0
      %v3185 = vsel %vm3162, %v3122, 0
      %v3188 = vsel %vm3162, %v3123, 0
      %v3191 = vsel %vm3162, %v3124, 0
      %v3194 = vsel %vm3162, %v3125, 0
      %v3197 = vsel %vm3162, %v3126, 0
      %v3200 = vsel %vm3162, %v3127, 0
      %v3203 = vsel %vm3162, %v3128, 0
      %v3206 = vsel %vm3162, %v3129, 0
      %v3209 = vsel %vm3162, %v3130, 0
      %v3212 = vsel %vm3162, %v3131, 0
      %v3215 = vsel %vm3162, %v3132, 0
      %v3218 = vsel %vm3162, %v3133, 0
      %v3221 = vsel %vm3162, %v3134, 0
      %v3224 = vsel %vm3162, %v3135, 0
      %v3227 = vsel %vm3162, %v3136, 0
      %v3230 = vsel %vm3162, %v3137, 0
      %v3233 = vsel %vm3162, %v3138, 0
      %v3236 = vsel %vm3162, %v3139, 0
      %v3239 = vsel %vm3162, %v3140, 0
      %v3242 = vsel %vm3162, %v3141, 0
      %v3245 = vsel %vm3162, %v3142, 0
      %v3248 = vsel %vm3162, %v3143, 0
      %v3251 = vsel %vm3162, %v3144, 0
      %v3254 = vsel %vm3162, %v3145, 0
      %v3257 = vsel %vm3162, %v3146, 0
      %3259 = vmatprep.subr.mxu0 0.0
      %3260 = vmatpush1.msra.mxu0 0.0
      %3261 = vmatprep.subr.mxu0 0.0
      %3262 = vmatpush1.msra.mxu0 0.0
      %3263 = vmatprep.subr.mxu0 0.0
      %3264 = vmatpush1.msra.mxu0 0.0
      %3265 = vmatprep.subr.mxu0 0.0
      %3266 = vmatpush1.msra.mxu0 0.0
      %3267 = vmatprep.subr.mxu0 0.0
      %3268 = vmatpush1.msra.mxu0 0.0
      %3269 = vmatprep.subr.mxu0 0.0
      %3270 = vmatpush1.msra.mxu0 0.0
      %3271 = vmatprep.subr.mxu0 0.0
      %3272 = vmatpush1.msra.mxu0 0.0
      %3273 = vmatprep.subr.mxu0 0.0
      %3274 = vmatpush1.msra.mxu0 0.0
      %3275 = vmatprep.subr.mxu0 0.0
      %3276 = vmatpush1.msra.mxu0 %v3154
      %3277 = vmatprep.subr.mxu0 0.0
      %3278 = vmatpush1.msra.mxu0 %v3153
      %3279 = vmatprep.subr.mxu0 0.0
      %3280 = vmatpush1.msra.mxu0 %v3152
      %3281 = vmatprep.subr.mxu0 0.0
      %3282 = vmatpush1.msra.mxu0 %v3151
      %3283 = vmatprep.subr.mxu0 0.0
      %3284 = vmatpush1.msra.mxu0 %v3150
      %3285 = vmatprep.subr.mxu0 0.0
      %3286 = vmatpush1.msra.mxu0 %v3149
      %3287 = vmatprep.subr.mxu0 0.0
      %3288 = vmatpush1.msra.mxu0 %v3148
      %3289 = vmatprep.subr.mxu0 0.0
      %3290 = vmatpush1.msra.mxu0 %v3147
      %3291 = vmatprep.subr.mxu0 0.0
      %3292 = vmatpush2.msra.mxu0 0.0
      %3293 = vmatprep.subr.mxu0 0.0
      %3294 = vmatpush2.msra.mxu0 0.0
      %3295 = vmatprep.subr.mxu0 0.0
      %3296 = vmatpush2.msra.mxu0 0.0
      %3297 = vmatprep.subr.mxu0 0.0
      %3298 = vmatpush2.msra.mxu0 0.0
      %3299 = vmatprep.subr.mxu0 0.0
      %3300 = vmatpush2.msra.mxu0 0.0
      %3301 = vmatprep.subr.mxu0 0.0
      %3302 = vmatpush2.msra.mxu0 0.0
      %3303 = vmatprep.subr.mxu0 0.0
      %3304 = vmatpush2.msra.mxu0 0.0
      %3305 = vmatprep.subr.mxu0 0.0
      %3306 = vmatpush2.msra.mxu0 0.0
      %3307 = vmatprep.subr.mxu0 0.0
      %3308 = vmatpush2.msra.mxu0 0.0
      %3309 = vmatprep.subr.mxu0 0.0
      %3310 = vmatpush2.msra.mxu0 0.0
      %3311 = vmatprep.subr.mxu0 0.0
      %3312 = vmatpush2.msra.mxu0 0.0
      %3313 = vmatprep.subr.mxu0 0.0
      %3314 = vmatpush2.msra.mxu0 0.0
      %3315 = vmatprep.subr.mxu0 0.0
      %3316 = vmatpush2.msra.mxu0 0.0
      %3317 = vmatprep.subr.mxu0 0.0
      %3318 = vmatpush2.msra.mxu0 0.0
      %3319 = vmatprep.subr.mxu0 0.0
      %3320 = vmatpush2.msra.mxu0 0.0
      %3321 = vmatprep.subr.mxu0 0.0
      %3322 = vmatpush2.msra.mxu0 0.0
      %3323 = vmatprep.mubr.f32.mxu0 0.0
      %3324 = vmatmul.mubr.f32.gmra.mxu0 %v3164
      %v3325 = vpop.f32.mrf.mxu0
      %v3326 = vadd.f32 %v3160, %v3325
      %v3327 = vpop.f32.mrf.mxu0
      %3328 = vmatprep.mubr.f32.mxu0 0.0
      %3329 = vmatmul.mubr.f32.gmra.mxu0 %v3167
      %v3330 = vpop.f32.mrf.mxu0
      %v3331 = vadd.f32 %v3160, %v3330
      %v3332 = vpop.f32.mrf.mxu0
      %3333 = vmatprep.mubr.f32.mxu0 0.0
      %3334 = vmatmul.mubr.f32.gmra.mxu0 %v3170
      %v3335 = vpop.f32.mrf.mxu0
      %v3336 = vadd.f32 %v3160, %v3335
      %v3337 = vpop.f32.mrf.mxu0
      %3338 = vmatprep.mubr.f32.mxu0 0.0
      %3339 = vmatmul.mubr.f32.gmra.mxu0 %v3173
      %v3340 = vpop.f32.mrf.mxu0
      %v3341 = vadd.f32 %v3160, %v3340
      %v3342 = vpop.f32.mrf.mxu0
      %3343 = vmatprep.mubr.f32.mxu0 0.0
      %3344 = vmatmul.mubr.f32.gmra.mxu0 %v3176
      %v3345 = vpop.f32.mrf.mxu0
      %v3346 = vadd.f32 %v3160, %v3345
      %v3347 = vpop.f32.mrf.mxu0
      %3348 = vmatprep.mubr.f32.mxu0 0.0
      %3349 = vmatmul.mubr.f32.gmra.mxu0 %v3179
      %v3350 = vpop.f32.mrf.mxu0
      %v3351 = vadd.f32 %v3160, %v3350
      %v3352 = vpop.f32.mrf.mxu0
      %3353 = vmatprep.mubr.f32.mxu0 0.0
      %3354 = vmatmul.mubr.f32.gmra.mxu0 %v3182
      %v3355 = vpop.f32.mrf.mxu0
      %v3356 = vadd.f32 %v3160, %v3355
      %v3357 = vpop.f32.mrf.mxu0
      %3358 = vmatprep.mubr.f32.mxu0 0.0
      %3359 = vmatmul.mubr.f32.gmra.mxu0 %v3185
      %v3360 = vpop.f32.mrf.mxu0
      %v3361 = vadd.f32 %v3160, %v3360
      %v3362 = vpop.f32.mrf.mxu0
      %3363 = vmatprep.mubr.f32.mxu0 0.0
      %3364 = vmatmul.mubr.f32.gmra.mxu0 %v3188
      %v3365 = vpop.f32.mrf.mxu0
      %v3366 = vadd.f32 %v3160, %v3365
      %v3367 = vpop.f32.mrf.mxu0
      %3368 = vmatprep.mubr.f32.mxu0 0.0
      %3369 = vmatmul.mubr.f32.gmra.mxu0 %v3191
      %v3370 = vpop.f32.mrf.mxu0
      %v3371 = vadd.f32 %v3160, %v3370
      %v3372 = vpop.f32.mrf.mxu0
      %3373 = vmatprep.mubr.f32.mxu0 0.0
      %3374 = vmatmul.mubr.f32.gmra.mxu0 %v3194
      %v3375 = vpop.f32.mrf.mxu0
      %v3376 = vadd.f32 %v3160, %v3375
      %v3377 = vpop.f32.mrf.mxu0
      %3378 = vmatprep.mubr.f32.mxu0 0.0
      %3379 = vmatmul.mubr.f32.gmra.mxu0 %v3197
      %v3380 = vpop.f32.mrf.mxu0
      %v3381 = vadd.f32 %v3160, %v3380
      %v3382 = vpop.f32.mrf.mxu0
      %3383 = vmatprep.mubr.f32.mxu0 0.0
      %3384 = vmatmul.mubr.f32.gmra.mxu0 %v3200
      %v3385 = vpop.f32.mrf.mxu0
      %v3386 = vadd.f32 %v3160, %v3385
      %v3387 = vpop.f32.mrf.mxu0
      %3388 = vmatprep.mubr.f32.mxu0 0.0
      %3389 = vmatmul.mubr.f32.gmra.mxu0 %v3203
      %v3390 = vpop.f32.mrf.mxu0
      %v3391 = vadd.f32 %v3160, %v3390
      %v3392 = vpop.f32.mrf.mxu0
      %3393 = vmatprep.mubr.f32.mxu0 0.0
      %3394 = vmatmul.mubr.f32.gmra.mxu0 %v3206
      %v3395 = vpop.f32.mrf.mxu0
      %v3396 = vadd.f32 %v3160, %v3395
      %v3397 = vpop.f32.mrf.mxu0
      %3398 = vmatprep.mubr.f32.mxu0 0.0
      %3399 = vmatmul.mubr.f32.gmra.mxu0 %v3209
      %v3400 = vpop.f32.mrf.mxu0
      %v3401 = vadd.f32 %v3160, %v3400
      %v3402 = vpop.f32.mrf.mxu0
      %3403 = vmatprep.mubr.f32.mxu0 0.0
      %3404 = vmatmul.mubr.f32.gmra.mxu0 %v3212
      %v3405 = vpop.f32.mrf.mxu0
      %v3406 = vadd.f32 %v3160, %v3405
      %v3407 = vpop.f32.mrf.mxu0
      %3408 = vmatprep.mubr.f32.mxu0 0.0
      %3409 = vmatmul.mubr.f32.gmra.mxu0 %v3215
      %v3410 = vpop.f32.mrf.mxu0
      %v3411 = vadd.f32 %v3160, %v3410
      %v3412 = vpop.f32.mrf.mxu0
      %3413 = vmatprep.mubr.f32.mxu0 0.0
      %3414 = vmatmul.mubr.f32.gmra.mxu0 %v3218
      %v3415 = vpop.f32.mrf.mxu0
      %v3416 = vadd.f32 %v3160, %v3415
      %v3417 = vpop.f32.mrf.mxu0
      %3418 = vmatprep.mubr.f32.mxu0 0.0
      %3419 = vmatmul.mubr.f32.gmra.mxu0 %v3221
      %v3420 = vpop.f32.mrf.mxu0
      %v3421 = vadd.f32 %v3160, %v3420
      %v3422 = vpop.f32.mrf.mxu0
      %3423 = vmatprep.mubr.f32.mxu0 0.0
      %3424 = vmatmul.mubr.f32.gmra.mxu0 %v3224
      %v3425 = vpop.f32.mrf.mxu0
      %v3426 = vadd.f32 %v3160, %v3425
      %v3427 = vpop.f32.mrf.mxu0
      %3428 = vmatprep.mubr.f32.mxu0 0.0
      %3429 = vmatmul.mubr.f32.gmra.mxu0 %v3227
      %v3430 = vpop.f32.mrf.mxu0
      %v3431 = vadd.f32 %v3160, %v3430
      %v3432 = vpop.f32.mrf.mxu0
      %3433 = vmatprep.mubr.f32.mxu0 0.0
      %3434 = vmatmul.mubr.f32.gmra.mxu0 %v3230
      %v3435 = vpop.f32.mrf.mxu0
      %v3436 = vadd.f32 %v3160, %v3435
      %v3437 = vpop.f32.mrf.mxu0
      %3438 = vmatprep.mubr.f32.mxu0 0.0
      %3439 = vmatmul.mubr.f32.gmra.mxu0 %v3233
      %v3440 = vpop.f32.mrf.mxu0
      %v3441 = vadd.f32 %v3160, %v3440
      %v3442 = vpop.f32.mrf.mxu0
      %3443 = vmatprep.mubr.f32.mxu0 0.0
      %3444 = vmatmul.mubr.f32.gmra.mxu0 %v3236
      %v3445 = vpop.f32.mrf.mxu0
      %v3446 = vadd.f32 %v3160, %v3445
      %v3447 = vpop.f32.mrf.mxu0
      %3448 = vmatprep.mubr.f32.mxu0 0.0
      %3449 = vmatmul.mubr.f32.gmra.mxu0 %v3239
      %v3450 = vpop.f32.mrf.mxu0
      %v3451 = vadd.f32 %v3160, %v3450
      %v3452 = vpop.f32.mrf.mxu0
      %3453 = vmatprep.mubr.f32.mxu0 0.0
      %3454 = vmatmul.mubr.f32.gmra.mxu0 %v3242
      %v3455 = vpop.f32.mrf.mxu0
      %v3456 = vadd.f32 %v3160, %v3455
      %v3457 = vpop.f32.mrf.mxu0
      %3458 = vmatprep.mubr.f32.mxu0 0.0
      %3459 = vmatmul.mubr.f32.gmra.mxu0 %v3245
      %v3460 = vpop.f32.mrf.mxu0
      %v3461 = vadd.f32 %v3160, %v3460
      %v3462 = vpop.f32.mrf.mxu0
      %3463 = vmatprep.mubr.f32.mxu0 0.0
      %3464 = vmatmul.mubr.f32.gmra.mxu0 %v3248
      %v3465 = vpop.f32.mrf.mxu0
      %v3466 = vadd.f32 %v3160, %v3465
      %v3467 = vpop.f32.mrf.mxu0
      %3468 = vmatprep.mubr.f32.mxu0 0.0
      %3469 = vmatmul.mubr.f32.gmra.mxu0 %v3251
      %v3470 = vpop.f32.mrf.mxu0
      %v3471 = vadd.f32 %v3160, %v3470
      %v3472 = vpop.f32.mrf.mxu0
      %3473 = vmatprep.mubr.f32.mxu0 0.0
      %3474 = vmatmul.mubr.f32.gmra.mxu0 %v3254
      %v3475 = vpop.f32.mrf.mxu0
      %v3476 = vadd.f32 %v3160, %v3475
      %v3477 = vpop.f32.mrf.mxu0
      %3478 = vmatprep.mubr.f32.mxu0 0.0
      %3479 = vmatmul.mubr.f32.gmra.mxu0 %v3257
      %v3480 = vpop.f32.mrf.mxu0
      %v3481 = vadd.f32 %v3160, %v3480
      %v3482 = vpop.f32.mrf.mxu0
      %3483 = vdwg.mxu0
      %v3484 = vmax.f32 %v3326, 0.0
      %v3485 = vmax.f32 %v3331, 0.0
      %v3486 = vmax.f32 %v3336, 0.0
      %v3487 = vmax.f32 %v3341, 0.0
      %v3488 = vmax.f32 %v3346, 0.0
      %v3489 = vmax.f32 %v3351, 0.0
      %v3490 = vmax.f32 %v3356, 0.0
      %v3491 = vmax.f32 %v3361, 0.0
      %v3492 = vmax.f32 %v3366, 0.0
      %v3493 = vmax.f32 %v3371, 0.0
      %v3494 = vmax.f32 %v3376, 0.0
      %v3495 = vmax.f32 %v3381, 0.0
      %v3496 = vmax.f32 %v3386, 0.0
      %v3497 = vmax.f32 %v3391, 0.0
      %v3498 = vmax.f32 %v3396, 0.0
      %v3499 = vmax.f32 %v3401, 0.0
      %v3500 = vmax.f32 %v3406, 0.0
      %v3501 = vmax.f32 %v3411, 0.0
      %v3502 = vmax.f32 %v3416, 0.0
      %v3503 = vmax.f32 %v3421, 0.0
      %v3504 = vmax.f32 %v3426, 0.0
      %v3505 = vmax.f32 %v3431, 0.0
      %v3506 = vmax.f32 %v3436, 0.0
      %v3507 = vmax.f32 %v3441, 0.0
      %v3508 = vmax.f32 %v3446, 0.0
      %v3509 = vmax.f32 %v3451, 0.0
      %v3510 = vmax.f32 %v3456, 0.0
      %v3511 = vmax.f32 %v3461, 0.0
      %v3512 = vmax.f32 %v3466, 0.0
      %v3513 = vmax.f32 %v3471, 0.0
      %v3514 = vmax.f32 %v3476, 0.0
      %v3515 = vmax.f32 %v3481, 0.0
      %v3516 = vmax.f32 %v3155, 0.0
      %vm3517 = vcmp.gt.f32.partialorder %v306, 0.0
      %vm3518 = vcmp.gt.f32.partialorder %v307, 0.0
      %vm3519 = vcmp.gt.f32.partialorder %v308, 0.0
      %vm3520 = vcmp.gt.f32.partialorder %v309, 0.0
      %vm3521 = vcmp.gt.f32.partialorder %v310, 0.0
      %vm3522 = vcmp.gt.f32.partialorder %v311, 0.0
      %vm3523 = vcmp.gt.f32.partialorder %v312, 0.0
      %vm3524 = vcmp.gt.f32.partialorder %v313, 0.0
      %vm3525 = vcmp.gt.f32.partialorder %v314, 0.0
      %vm3526 = vcmp.gt.f32.partialorder %v315, 0.0
      %vm3527 = vcmp.gt.f32.partialorder %v316, 0.0
      %vm3528 = vcmp.gt.f32.partialorder %v317, 0.0
      %vm3529 = vcmp.gt.f32.partialorder %v318, 0.0
      %vm3530 = vcmp.gt.f32.partialorder %v319, 0.0
      %vm3531 = vcmp.gt.f32.partialorder %v320, 0.0
      %vm3532 = vcmp.gt.f32.partialorder %v321, 0.0
      %vm3533 = vcmp.gt.f32.partialorder %v322, 0.0
      %vm3534 = vcmp.gt.f32.partialorder %v323, 0.0
      %vm3535 = vcmp.gt.f32.partialorder %v324, 0.0
      %vm3536 = vcmp.gt.f32.partialorder %v325, 0.0
      %vm3537 = vcmp.gt.f32.partialorder %v326, 0.0
      %vm3538 = vcmp.gt.f32.partialorder %v327, 0.0
      %vm3539 = vcmp.gt.f32.partialorder %v328, 0.0
      %vm3540 = vcmp.gt.f32.partialorder %v329, 0.0
      %vm3541 = vcmp.gt.f32.partialorder %v330, 0.0
      %vm3542 = vcmp.gt.f32.partialorder %v331, 0.0
      %vm3543 = vcmp.gt.f32.partialorder %v332, 0.0
      %vm3544 = vcmp.gt.f32.partialorder %v333, 0.0
      %vm3545 = vcmp.gt.f32.partialorder %v334, 0.0
      %vm3546 = vcmp.gt.f32.partialorder %v335, 0.0
      %vm3547 = vcmp.gt.f32.partialorder %v336, 0.0
      %vm3548 = vcmp.gt.f32.partialorder %v337, 0.0
      %v3549 = vsel %vm3517, 1, 0
      %v3550 = vsel %vm3518, 1, 0
      %v3551 = vsel %vm3519, 1, 0
      %v3552 = vsel %vm3520, 1, 0
      %v3553 = vsel %vm3521, 1, 0
      %v3554 = vsel %vm3522, 1, 0
      %v3555 = vsel %vm3523, 1, 0
      %v3556 = vsel %vm3524, 1, 0
      %v3557 = vsel %vm3525, 1, 0
      %v3558 = vsel %vm3526, 1, 0
      %v3559 = vsel %vm3527, 1, 0
      %v3560 = vsel %vm3528, 1, 0
      %v3561 = vsel %vm3529, 1, 0
      %v3562 = vsel %vm3530, 1, 0
      %v3563 = vsel %vm3531, 1, 0
      %v3564 = vsel %vm3532, 1, 0
      %v3565 = vsel %vm3533, 1, 0
      %v3566 = vsel %vm3534, 1, 0
      %v3567 = vsel %vm3535, 1, 0
      %v3568 = vsel %vm3536, 1, 0
      %v3569 = vsel %vm3537, 1, 0
      %v3570 = vsel %vm3538, 1, 0
      %v3571 = vsel %vm3539, 1, 0
      %v3572 = vsel %vm3540, 1, 0
      %v3573 = vsel %vm3541, 1, 0
      %v3574 = vsel %vm3542, 1, 0
      %v3575 = vsel %vm3543, 1, 0
      %v3576 = vsel %vm3544, 1, 0
      %v3577 = vsel %vm3545, 1, 0
      %v3578 = vsel %vm3546, 1, 0
      %v3579 = vsel %vm3547, 1, 0
      %v3580 = vsel %vm3548, 1, 0
      %3581 = vset.pattern.permute.xlu0 0
      %3582 = vperm.xlu0 %3581, %v3549
      %v3583 = vpop.permute.xlu0 %3582
      %3584 = vset.pattern.permute.xlu0 0
      %3585 = vperm.xlu0 %3584, %v3550
      %v3586 = vpop.permute.xlu0 %3585
      %3587 = vset.pattern.permute.xlu0 0
      %3588 = vperm.xlu0 %3587, %v3551
      %v3589 = vpop.permute.xlu0 %3588
      %3590 = vset.pattern.permute.xlu0 0
      %3591 = vperm.xlu0 %3590, %v3552
      %v3592 = vpop.permute.xlu0 %3591
      %3593 = vset.pattern.permute.xlu0 0
      %3594 = vperm.xlu0 %3593, %v3553
      %v3595 = vpop.permute.xlu0 %3594
      %3596 = vset.pattern.permute.xlu0 0
      %3597 = vperm.xlu0 %3596, %v3554
      %v3598 = vpop.permute.xlu0 %3597
      %3599 = vset.pattern.permute.xlu0 0
      %3600 = vperm.xlu0 %3599, %v3555
      %v3601 = vpop.permute.xlu0 %3600
      %3602 = vset.pattern.permute.xlu0 0
      %3603 = vperm.xlu0 %3602, %v3556
      %v3604 = vpop.permute.xlu0 %3603
      %3605 = vset.pattern.permute.xlu0 0
      %3606 = vperm.xlu0 %3605, %v3557
      %v3607 = vpop.permute.xlu0 %3606
      %3608 = vset.pattern.permute.xlu0 0
      %3609 = vperm.xlu0 %3608, %v3558
      %v3610 = vpop.permute.xlu0 %3609
      %3611 = vset.pattern.permute.xlu0 0
      %3612 = vperm.xlu0 %3611, %v3559
      %v3613 = vpop.permute.xlu0 %3612
      %3614 = vset.pattern.permute.xlu0 0
      %3615 = vperm.xlu0 %3614, %v3560
      %v3616 = vpop.permute.xlu0 %3615
      %3617 = vset.pattern.permute.xlu0 0
      %3618 = vperm.xlu0 %3617, %v3561
      %v3619 = vpop.permute.xlu0 %3618
      %3620 = vset.pattern.permute.xlu0 0
      %3621 = vperm.xlu0 %3620, %v3562
      %v3622 = vpop.permute.xlu0 %3621
      %3623 = vset.pattern.permute.xlu0 0
      %3624 = vperm.xlu0 %3623, %v3563
      %v3625 = vpop.permute.xlu0 %3624
      %3626 = vset.pattern.permute.xlu0 0
      %3627 = vperm.xlu0 %3626, %v3564
      %v3628 = vpop.permute.xlu0 %3627
      %3629 = vset.pattern.permute.xlu0 0
      %3630 = vperm.xlu0 %3629, %v3565
      %v3631 = vpop.permute.xlu0 %3630
      %3632 = vset.pattern.permute.xlu0 0
      %3633 = vperm.xlu0 %3632, %v3566
      %v3634 = vpop.permute.xlu0 %3633
      %3635 = vset.pattern.permute.xlu0 0
      %3636 = vperm.xlu0 %3635, %v3567
      %v3637 = vpop.permute.xlu0 %3636
      %3638 = vset.pattern.permute.xlu0 0
      %3639 = vperm.xlu0 %3638, %v3568
      %v3640 = vpop.permute.xlu0 %3639
      %3641 = vset.pattern.permute.xlu0 0
      %3642 = vperm.xlu0 %3641, %v3569
      %v3643 = vpop.permute.xlu0 %3642
      %3644 = vset.pattern.permute.xlu0 0
      %3645 = vperm.xlu0 %3644, %v3570
      %v3646 = vpop.permute.xlu0 %3645
      %3647 = vset.pattern.permute.xlu0 0
      %3648 = vperm.xlu0 %3647, %v3571
      %v3649 = vpop.permute.xlu0 %3648
      %3650 = vset.pattern.permute.xlu0 0
      %3651 = vperm.xlu0 %3650, %v3572
      %v3652 = vpop.permute.xlu0 %3651
      %3653 = vset.pattern.permute.xlu0 0
      %3654 = vperm.xlu0 %3653, %v3573
      %v3655 = vpop.permute.xlu0 %3654
      %3656 = vset.pattern.permute.xlu0 0
      %3657 = vperm.xlu0 %3656, %v3574
      %v3658 = vpop.permute.xlu0 %3657
      %3659 = vset.pattern.permute.xlu0 0
      %3660 = vperm.xlu0 %3659, %v3575
      %v3661 = vpop.permute.xlu0 %3660
      %3662 = vset.pattern.permute.xlu0 0
      %3663 = vperm.xlu0 %3662, %v3576
      %v3664 = vpop.permute.xlu0 %3663
      %3665 = vset.pattern.permute.xlu0 0
      %3666 = vperm.xlu0 %3665, %v3577
      %v3667 = vpop.permute.xlu0 %3666
      %3668 = vset.pattern.permute.xlu0 0
      %3669 = vperm.xlu0 %3668, %v3578
      %v3670 = vpop.permute.xlu0 %3669
      %3671 = vset.pattern.permute.xlu0 0
      %3672 = vperm.xlu0 %3671, %v3579
      %v3673 = vpop.permute.xlu0 %3672
      %3674 = vset.pattern.permute.xlu0 0
      %3675 = vperm.xlu0 %3674, %v3580
      %v3676 = vpop.permute.xlu0 %3675
      %vm3677 = vcmp.eq.s32.totalorder %v3583, 1
      %vm3678 = vcmp.eq.s32.totalorder %v3586, 1
      %vm3679 = vcmp.eq.s32.totalorder %v3589, 1
      %vm3680 = vcmp.eq.s32.totalorder %v3592, 1
      %vm3681 = vcmp.eq.s32.totalorder %v3595, 1
      %vm3682 = vcmp.eq.s32.totalorder %v3598, 1
      %vm3683 = vcmp.eq.s32.totalorder %v3601, 1
      %vm3684 = vcmp.eq.s32.totalorder %v3604, 1
      %vm3685 = vcmp.eq.s32.totalorder %v3607, 1
      %vm3686 = vcmp.eq.s32.totalorder %v3610, 1
      %vm3687 = vcmp.eq.s32.totalorder %v3613, 1
      %vm3688 = vcmp.eq.s32.totalorder %v3616, 1
      %vm3689 = vcmp.eq.s32.totalorder %v3619, 1
      %vm3690 = vcmp.eq.s32.totalorder %v3622, 1
      %vm3691 = vcmp.eq.s32.totalorder %v3625, 1
      %vm3692 = vcmp.eq.s32.totalorder %v3628, 1
      %vm3693 = vcmp.eq.s32.totalorder %v3631, 1
      %vm3694 = vcmp.eq.s32.totalorder %v3634, 1
      %vm3695 = vcmp.eq.s32.totalorder %v3637, 1
      %vm3696 = vcmp.eq.s32.totalorder %v3640, 1
      %vm3697 = vcmp.eq.s32.totalorder %v3643, 1
      %vm3698 = vcmp.eq.s32.totalorder %v3646, 1
      %vm3699 = vcmp.eq.s32.totalorder %v3649, 1
      %vm3700 = vcmp.eq.s32.totalorder %v3652, 1
      %vm3701 = vcmp.eq.s32.totalorder %v3655, 1
      %vm3702 = vcmp.eq.s32.totalorder %v3658, 1
      %vm3703 = vcmp.eq.s32.totalorder %v3661, 1
      %vm3704 = vcmp.eq.s32.totalorder %v3664, 1
      %vm3705 = vcmp.eq.s32.totalorder %v3667, 1
      %vm3706 = vcmp.eq.s32.totalorder %v3670, 1
      %vm3707 = vcmp.eq.s32.totalorder %v3673, 1
      %vm3708 = vcmp.eq.s32.totalorder %v3676, 1
      %v3710 = vlaneseq
      %v3711 = vshrl.u32 %v3710, 7
      %v3712 = vsub.s32 0, %v3711
      %v3713 = vrot.slane %v3516, %v3712
      %v3715 = vsel %vm3677, %v3484, %v3713
      %v3716 = vsel %vm3678, %v3485, %v3713
      %v3717 = vsel %vm3679, %v3486, %v3713
      %v3718 = vsel %vm3680, %v3487, %v3713
      %v3719 = vsel %vm3681, %v3488, %v3713
      %v3720 = vsel %vm3682, %v3489, %v3713
      %v3721 = vsel %vm3683, %v3490, %v3713
      %v3722 = vsel %vm3684, %v3491, %v3713
      %v3723 = vsel %vm3685, %v3492, %v3713
      %v3724 = vsel %vm3686, %v3493, %v3713
      %v3725 = vsel %vm3687, %v3494, %v3713
      %v3726 = vsel %vm3688, %v3495, %v3713
      %v3727 = vsel %vm3689, %v3496, %v3713
      %v3728 = vsel %vm3690, %v3497, %v3713
      %v3729 = vsel %vm3691, %v3498, %v3713
      %v3730 = vsel %vm3692, %v3499, %v3713
      %v3731 = vsel %vm3693, %v3500, %v3713
      %v3732 = vsel %vm3694, %v3501, %v3713
      %v3733 = vsel %vm3695, %v3502, %v3713
      %v3734 = vsel %vm3696, %v3503, %v3713
      %v3735 = vsel %vm3697, %v3504, %v3713
      %v3736 = vsel %vm3698, %v3505, %v3713
      %v3737 = vsel %vm3699, %v3506, %v3713
      %v3738 = vsel %vm3700, %v3507, %v3713
      %v3739 = vsel %vm3701, %v3508, %v3713
      %v3740 = vsel %vm3702, %v3509, %v3713
      %v3741 = vsel %vm3703, %v3510, %v3713
      %v3742 = vsel %vm3704, %v3511, %v3713
      %v3743 = vsel %vm3705, %v3512, %v3713
      %v3744 = vsel %vm3706, %v3513, %v3713
      %v3745 = vsel %vm3707, %v3514, %v3713
      %v3746 = vsel %vm3708, %v3515, %v3713
      %vm3747 = vcmask 23552
      %3748 = vst.msk [vmem:[%s305] sm:$0xff] %vm3747, %v3715
      %3749 = vst.msk [vmem:[%s305 + $0x8] sm:$0xff] %vm3747, %v3716
      %3750 = vst.msk [vmem:[%s305 + $0x10] sm:$0xff] %vm3747, %v3717
      %3751 = vst.msk [vmem:[%s305 + $0x18] sm:$0xff] %vm3747, %v3718
      %3752 = vst.msk [vmem:[%s305 + $0x20] sm:$0xff] %vm3747, %v3719
      %3753 = vst.msk [vmem:[%s305 + $0x28] sm:$0xff] %vm3747, %v3720
      %3754 = vst.msk [vmem:[%s305 + $0x30] sm:$0xff] %vm3747, %v3721
      %3755 = vst.msk [vmem:[%s305 + $0x38] sm:$0xff] %vm3747, %v3722
      %3756 = vst.msk [vmem:[%s305 + $0x40] sm:$0xff] %vm3747, %v3723
      %3757 = vst.msk [vmem:[%s305 + $0x48] sm:$0xff] %vm3747, %v3724
      %3758 = vst.msk [vmem:[%s305 + $0x50] sm:$0xff] %vm3747, %v3725
      %3759 = vst.msk [vmem:[%s305 + $0x58] sm:$0xff] %vm3747, %v3726
      %3760 = vst.msk [vmem:[%s305 + $0x60] sm:$0xff] %vm3747, %v3727
      %3761 = vst.msk [vmem:[%s305 + $0x68] sm:$0xff] %vm3747, %v3728
      %3762 = vst.msk [vmem:[%s305 + $0x70] sm:$0xff] %vm3747, %v3729
      %3763 = vst.msk [vmem:[%s305 + $0x78] sm:$0xff] %vm3747, %v3730
      %3764 = vst.msk [vmem:[%s305 + $0x80] sm:$0xff] %vm3747, %v3731
      %3765 = vst.msk [vmem:[%s305 + $0x88] sm:$0xff] %vm3747, %v3732
      %3766 = vst.msk [vmem:[%s305 + $0x90] sm:$0xff] %vm3747, %v3733
      %3767 = vst.msk [vmem:[%s305 + $0x98] sm:$0xff] %vm3747, %v3734
      %3768 = vst.msk [vmem:[%s305 + $0xa0] sm:$0xff] %vm3747, %v3735
      %3769 = vst.msk [vmem:[%s305 + $0xa8] sm:$0xff] %vm3747, %v3736
      %3770 = vst.msk [vmem:[%s305 + $0xb0] sm:$0xff] %vm3747, %v3737
      %3771 = vst.msk [vmem:[%s305 + $0xb8] sm:$0xff] %vm3747, %v3738
      %3772 = vst.msk [vmem:[%s305 + $0xc0] sm:$0xff] %vm3747, %v3739
      %3773 = vst.msk [vmem:[%s305 + $0xc8] sm:$0xff] %vm3747, %v3740
      %3774 = vst.msk [vmem:[%s305 + $0xd0] sm:$0xff] %vm3747, %v3741
      %3775 = vst.msk [vmem:[%s305 + $0xd8] sm:$0xff] %vm3747, %v3742
      %3776 = vst.msk [vmem:[%s305 + $0xe0] sm:$0xff] %vm3747, %v3743
      %3777 = vst.msk [vmem:[%s305 + $0xe8] sm:$0xff] %vm3747, %v3744
      %3778 = vst.msk [vmem:[%s305 + $0xf0] sm:$0xff] %vm3747, %v3745
      %3779 = vst.msk [vmem:[%s305 + $0xf8] sm:$0xff] %vm3747, %v3746
      %p3780 = scmp.lt.s32.totalorder %s19, 1
      %s3781 = scalar_select %p3780, %s19, 1
      %s3782 = smul.addr %s3781, 32
      %s3783 = smul.addr %s3782, 8
      %s3784 = scalar_lea.vmem %s8, %s3783
      // Predicated region
      $region53: #{cnn_forward.1} parent=51 // pred_check
        %p3785 = pneg %p210
      $region54: #{cnn_forward.1} parent=51 // pred_check_branch
        %3787 = sbr.rel (%p3785) target = $region56
      $region55: #{cnn_forward.1} parent=51 // pred_region
        _
      $region56: #{cnn_forward.1} parent=51 // pred_fallthru
        _
    $region52: #{cnn_forward.1} parent=5 // pred_fallthru
      _
    %p3788 = scmp.le.s32.totalorder 2, %s14
    // Predicated region
    $region57: #{cnn_forward.1} parent=5 // pred_check
      %p3789 = pneg %p3788
    $region58: #{cnn_forward.1} parent=5 // pred_check_branch
      %3791 = sbr.rel (%p3789) target = $region60
    $region59: #{cnn_forward.1} parent=5 // pred_region
      %s3792 = ssub.s32 %s14, 2
      // Predicated region
      $region61: #{cnn_forward.1} parent=59 // pred_check
        %p3793 = pneg %p216
      $region62: #{cnn_forward.1} parent=59 // pred_check_branch
        %3795 = sbr.rel (%p3793) target = $region64
      $region63: #{cnn_forward.1} parent=59 // pred_region
        %p3796 = scmp.lt.s32.totalorder %s20, 1
        %s3797 = scalar_select %p3796, %s20, 1
        %s3798 = smul.addr %s3797, 32
        %s3799 = smul.addr %s3798, 8
        %s3800 = scalar_lea.vmem %s8, %s3799
      $region64: #{cnn_forward.1} parent=59 // pred_fallthru
        _
    $region60: #{cnn_forward.1} parent=5 // pred_fallthru
      _
  $region6: #{cnn_forward.1} parent=0 // loop_footer
    %s18 = sadd.s32 1, %s14
  $region7: #{cnn_forward.1} parent=0 // loop_footer_branch
    %13 = sbr.rel target = $region3
  $region8: #{cnn_forward.1} parent=0 // loop_exit
    _

</llo_original>
